<compile_context>
chip_gen: v5e
topology: v5e:2x2
jax: 0.10.0
libtpu: 0.0.40
codegen_flags: <defaults>
</compile_context>

<pallas_src>
import functools
import math

import jax
import jax.numpy as jnp
from jax.experimental import pallas as pl
from jax.experimental.pallas import tpu as pltpu

BLOCK_KEYS = ("ln1_g", "ln1_b", "wqkv", "bqkv", "wo", "bo",
              "ln2_g", "ln2_b", "w1", "b1", "w2", "b2")


# ----------------------------- math helpers ---------------------------------
def _layernorm(z, g, b, eps=1e-5):
    mu = jnp.mean(z, axis=-1, keepdims=True)
    var = jnp.mean(jnp.square(z - mu), axis=-1, keepdims=True)
    return (z - mu) * jax.lax.rsqrt(var + eps) * g + b


def _gelu(x):
    # tanh-approx GELU (tanh -> EUP slot). PyTorch nn.GELU() default is the
    # exact erf form; max abs difference ~1e-3, inside the test tolerance.
    c = math.sqrt(2.0 / math.pi)
    return 0.5 * x * (1.0 + jnp.tanh(c * (x + 0.044715 * x * x * x)))


# ----------------------------- fused Pallas kernel ---------------------------
def _fused_kernel(n_heads, n_layers, B, S,
                  x_ref, mask_ref,
                  ln1_g_ref, ln1_b_ref, wqkv_ref, bqkv_ref, wo_ref, bo_ref,
                  ln2_g_ref, ln2_b_ref, w1_ref, b1_ref, w2_ref, b2_ref,
                  lnf_g_ref, lnf_b_ref, wh_ref, bh_ref,
                  out_ref, act_ref, ctx_ref):
    """grid = (L,).  Whole batch processed per layer; act_ref is (B*S, D)."""
    l = pl.program_id(0)

    # Load the embedded input into the VMEM-resident residual stream once.
    @pl.when(l == 0)
    def _():
        act_ref[...] = x_ref[...]

    x = act_ref[...]                                   # (B*S, D) f32
    D = x.shape[-1]
    hd = D // n_heads
    scale = 1.0 / math.sqrt(hd)

    # --- LN1 + fused QKV projection over the batch-flattened M = B*S rows ---
    a = _layernorm(x, ln1_g_ref[0], ln1_b_ref[0])
    qkv = jnp.dot(a.astype(wqkv_ref.dtype), wqkv_ref[0],
                  preferred_element_type=jnp.float32) + bqkv_ref[0]   # (B*S, 3D)

    # --- causal multi-head self-attention (f32 softmax, tiny S x S tiles) ---
    bias = mask_ref[...]                               # (S, S) additive, 0 / -1e30
    for b in range(B):                                 # static unroll, sublane-aligned rows
        rows = slice(b * S, (b + 1) * S)
        for h in range(n_heads):                       # hd = 128 -> lane-aligned slices
            lo = h * hd
            qh = qkv[rows, lo:lo + hd] * scale         # scale folded into q
            kh = qkv[rows, D + lo:D + lo + hd]
            vh = qkv[rows, 2 * D + lo:2 * D + lo + hd]
            s = jax.lax.dot_general(qh, kh, (((1,), (1,)), ((), ())),
                                    preferred_element_type=jnp.float32) + bias
            m = jnp.max(s, axis=-1, keepdims=True)
            e = jnp.exp(s - m)
            denom = jnp.sum(e, axis=-1, keepdims=True)
            p = e * pl.reciprocal(denom, approx=True)  # divide -> EUP slot
            # Write the head output straight into its 128-aligned ctx slice.
            ctx_ref[rows, lo:lo + hd] = jnp.dot(p, vh,
                                                preferred_element_type=jnp.float32)

    x = x + (jnp.dot(ctx_ref[...].astype(wo_ref.dtype), wo_ref[0],
                     preferred_element_type=jnp.float32) + bo_ref[0])   # dropout1=id

    # --- LN2 + MLP ---
    m2 = _layernorm(x, ln2_g_ref[0], ln2_b_ref[0])
    h1 = jnp.dot(m2.astype(w1_ref.dtype), w1_ref[0],
                 preferred_element_type=jnp.float32) + b1_ref[0]
    h1 = _gelu(h1)
    h2 = jnp.dot(h1.astype(w2_ref.dtype), w2_ref[0],
                 preferred_element_type=jnp.float32) + b2_ref[0]
    x = x + h2                                                          # dropout2=id
    act_ref[...] = x

    # --- final LayerNorm + output head fused into the last grid step ---
    @pl.when(l == n_layers - 1)
    def _():
        z = _layernorm(x, lnf_g_ref[...], lnf_b_ref[...])
        out_ref[...] = (jnp.dot(z.astype(wh_ref.dtype), wh_ref[...],
                                preferred_element_type=jnp.float32)
                        + bh_ref[...])


# ----------------------------- wrapper ----------------------------------------
def pallas_forward(params, x, n_heads):
    B, S = x.shape
    # Embedding gather + positional add are XLA glue around the fused kernel.
    h = params["embedding"][x] + params["pos"][:, :S, :]        # (B, S, D) f32
    D = h.shape[-1]
    V = params["w_head"].shape[-1]
    stk = params["stacked"]
    L = stk["wqkv"].shape[0]

    # Pad S to a sublane multiple of 8; padded key columns are masked off and
    # padded query rows sliced off the output.
    S_pad = max(8, ((S + 7) // 8) * 8)
    if S_pad != S:
        h = jnp.pad(h, ((0, 0), (0, S_pad - S), (0, 0)))
    h_flat = h.reshape(B * S_pad, D)

    # Additive causal mask, built once (loop-invariant across layers).
    qi = jax.lax.broadcasted_iota(jnp.int32, (S_pad, S_pad), 0)
    ki = jax.lax.broadcasted_iota(jnp.int32, (S_pad, S_pad), 1)
    bias = jnp.where((ki <= qi) & (ki < S), 0.0, -1e30).astype(jnp.float32)

    block_ws = [stk[k] for k in BLOCK_KEYS]
    head_ws = [params["lnf_g"], params["lnf_b"],
               params["w_head"], params["b_head"]]

    def stacked_spec(a):
        nd = a.ndim
        return pl.BlockSpec((1,) + a.shape[1:],
                            lambda l, _nd=nd: (l,) + (0,) * (_nd - 1))

    def full_spec(a):
        nd = a.ndim
        return pl.BlockSpec(a.shape, lambda l, _nd=nd: (0,) * _nd)

    out_flat = pl.pallas_call(
        functools.partial(_fused_kernel, n_heads, L, B, S_pad),
        out_shape=jax.ShapeDtypeStruct((B * S_pad, V), jnp.float32),
        grid=(L,),
        in_specs=[full_spec(h_flat), full_spec(bias)]
                 + [stacked_spec(w) for w in block_ws]
                 + [full_spec(w) for w in head_ws],
        out_specs=pl.BlockSpec((B * S_pad, V), lambda l: (0, 0)),
        scratch_shapes=[pltpu.VMEM((B * S_pad, D), jnp.float32),   # residual stream
                        pltpu.VMEM((B * S_pad, D), jnp.float32)],  # attention ctx
        compiler_params=pltpu.CompilerParams(
            dimension_semantics=("arbitrary",),
            # bf16 double-buffered layer weights ~3 MiB here; budget kept well
            # under v7x's 64 MiB physical VMEM per the review.
            vmem_limit_bytes=48 * 1024 * 1024,
        ),
    )(h_flat, bias, *block_ws, *head_ws)
    return out_flat.reshape(B, S_pad, V)[:, :S, :]


# ----------------------------- pure-JAX reference ----------------------------
def ref_forward(params, x, n_heads):
    """f32 reference (bf16 weights upcast), exact softmax reciprocal."""
    B, S = x.shape
    h = params["embedding"][x] + params["pos"][:, :S, :]
    stk = params["stacked"]
    L = stk["wqkv"].shape[0]
    D = h.shape[-1]
    hd = D // n_heads
    scale = 1.0 / math.sqrt(hd)
    qi = jax.lax.broadcasted_iota(jnp.int32, (S, S), 0)
    ki = jax.lax.broadcasted_iota(jnp.int32, (S, S), 1)
    causal = ki <= qi
    f32 = lambda a: a.astype(jnp.float32)

    for l in range(L):
        a = _layernorm(h, f32(stk["ln1_g"][l]), f32(stk["ln1_b"][l]))
        qkv = a @ f32(stk["wqkv"][l]) + f32(stk["bqkv"][l])
        heads = []
        for hh in range(n_heads):
            lo = hh * hd
            qh = qkv[..., lo:lo + hd] * scale
            kh = qkv[..., D + lo:D + lo + hd]
            vh = qkv[..., 2 * D + lo:2 * D + lo + hd]
            s = jnp.einsum('bqd,bkd->bqk', qh, kh)
            s = jnp.where(causal, s, -1e30)
            p = jax.nn.softmax(s, axis=-1)
            heads.append(jnp.einsum('bqk,bkd->bqd', p, vh))
        ctx = jnp.concatenate(heads, axis=-1)
        h = h + ctx @ f32(stk["wo"][l]) + f32(stk["bo"][l])
        m2 = _layernorm(h, f32(stk["ln2_g"][l]), f32(stk["ln2_b"][l]))
        mlp = _gelu(m2 @ f32(stk["w1"][l]) + f32(stk["b1"][l]))
        mlp = mlp @ f32(stk["w2"][l]) + f32(stk["b2"][l])
        h = h + mlp
    z = _layernorm(h, params["lnf_g"], params["lnf_b"])
    return z @ f32(params["w_head"]) + f32(params["b_head"])


# ----------------------------- param init ------------------------------------
def init_params(key, vocab_in, d_model, n_heads, n_layers, max_pos, vocab_out):
    f32, bf16 = jnp.float32, jnp.bfloat16
    keys = jax.random.split(key, 6)
    D, L = d_model, n_layers
    # Matmul weights stored/streamed as bf16 (f32 accumulation in-kernel);
    # LayerNorm params and biases stay f32.
    w = lambda k, shape: (0.02 * jax.random.normal(k, shape, f32)).astype(bf16)
    return {
        "embedding": 0.02 * jax.random.normal(keys[0], (vocab_in, D), f32),
        "pos": jnp.zeros((1, max_pos, D), f32),        # matches torch.zeros init
        "lnf_g": jnp.ones((1, D), f32),
        "lnf_b": jnp.zeros((1, D), f32),
        "w_head": w(keys[1], (D, vocab_out)),
        "b_head": jnp.zeros((1, vocab_out), f32),
        "stacked": {                                   # per-layer weights, stacked on L
            "ln1_g": jnp.ones((L, 1, D), f32),
            "ln1_b": jnp.zeros((L, 1, D), f32),
            "wqkv": w(keys[2], (L, D, 3 * D)),
            "bqkv": jnp.zeros((L, 1, 3 * D), f32),
            "wo": w(keys[3], (L, D, D)),
            "bo": jnp.zeros((L, 1, D), f32),
            "ln2_g": jnp.ones((L, 1, D), f32),
            "ln2_b": jnp.zeros((L, 1, D), f32),
            "w1": w(keys[4], (L, D, 4 * D)),
            "b1": jnp.zeros((L, 1, 4 * D), f32),
            "w2": w(keys[5], (L, 4 * D, D)),
            "b2": jnp.zeros((L, 1, D), f32),
        },
    }


# ----------------------------- main -------------------------------------------
if __name__ == "__main__":
    # Small but lane-dense shapes (all matmul dims multiples of 128; hd = 128).
    B, S = 2, 8
    d_model, n_heads, n_layers = 256, 2, 2
    vocab_size, max_pos = 512, 16
    vocab_in = vocab_size + 10          # nn.Embedding(vocab_size + 10, d_model)

    key = jax.random.PRNGKey(0)
    pkey, xkey = jax.random.split(key)
    params = init_params(pkey, vocab_in, d_model, n_heads, n_layers,
                         max_pos, vocab_size)
    x = jax.random.randint(xkey, (B, S), 0, vocab_in, dtype=jnp.int32)

    fwd = jax.jit(functools.partial(pallas_forward, n_heads=n_heads))
    logits = jax.block_until_ready(fwd(params, x))

    assert logits.shape == (B, S, vocab_size)
    assert bool(jnp.all(jnp.isfinite(logits)))

    # Tolerance covers bf16 activation casts at the matmul inputs, the
    # tanh-approx GELU and the approximate softmax reciprocal (all ~1e-3).
    ref = ref_forward(params, x, n_heads)
    max_err = float(jnp.max(jnp.abs(logits - ref)))
    assert bool(jnp.allclose(logits, ref, atol=2e-2, rtol=2e-2)), \
        f"mismatch vs reference, max abs err {max_err}"

    print("KERNEL_OK")
</pallas_src>

<mosaic_0001>
module attributes {stable_mosaic.version = 11 : i64} {
  func.func @_fused_kernel(%arg0: i32, %arg1: memref<16x256xf32, #tpu.memory_space<vmem>>, %arg2: memref<8x8xf32, #tpu.memory_space<vmem>>, %arg3: memref<1x1x256xf32, #tpu.memory_space<vmem>>, %arg4: memref<1x1x256xf32, #tpu.memory_space<vmem>>, %arg5: memref<1x256x768xbf16, #tpu.memory_space<vmem>>, %arg6: memref<1x1x768xf32, #tpu.memory_space<vmem>>, %arg7: memref<1x256x256xbf16, #tpu.memory_space<vmem>>, %arg8: memref<1x1x256xf32, #tpu.memory_space<vmem>>, %arg9: memref<1x1x256xf32, #tpu.memory_space<vmem>>, %arg10: memref<1x1x256xf32, #tpu.memory_space<vmem>>, %arg11: memref<1x256x1024xbf16, #tpu.memory_space<vmem>>, %arg12: memref<1x1x1024xf32, #tpu.memory_space<vmem>>, %arg13: memref<1x1024x256xbf16, #tpu.memory_space<vmem>>, %arg14: memref<1x1x256xf32, #tpu.memory_space<vmem>>, %arg15: memref<1x256xf32, #tpu.memory_space<vmem>>, %arg16: memref<1x256xf32, #tpu.memory_space<vmem>>, %arg17: memref<256x512xbf16, #tpu.memory_space<vmem>>, %arg18: memref<1x512xf32, #tpu.memory_space<vmem>>, %arg19: memref<16x512xf32, #tpu.memory_space<vmem>>, %arg20: memref<16x256xf32, #tpu.memory_space<vmem>>, %arg21: memref<16x256xf32, #tpu.memory_space<vmem>>) attributes {dimension_semantics = [#tpu.dimension_semantics<arbitrary>], iteration_bounds = array<i64: 2>, scalar_prefetch = 0 : i64, scratch_operands = 2 : i64, tpu.core_type = #tpu.core_type<tc>, window_params = [{pipeline_mode = #tpu.pipeline_mode<synchronous>, transform_indices = @transform_0, window_bounds = array<i64: 16, 256>}, {pipeline_mode = #tpu.pipeline_mode<synchronous>, transform_indices = @transform_1, window_bounds = array<i64: 8, 8>}, {transform_indices = @transform_2, window_bounds = array<i64: 1, 1, 256>}, {transform_indices = @transform_3, window_bounds = array<i64: 1, 1, 256>}, {transform_indices = @transform_4, window_bounds = array<i64: 1, 256, 768>}, {transform_indices = @transform_5, window_bounds = array<i64: 1, 1, 768>}, {transform_indices = @transform_6, window_bounds = array<i64: 1, 256, 256>}, {transform_indices = @transform_7, window_bounds = array<i64: 1, 1, 256>}, {transform_indices = @transform_8, window_bounds = array<i64: 1, 1, 256>}, {transform_indices = @transform_9, window_bounds = array<i64: 1, 1, 256>}, {transform_indices = @transform_10, window_bounds = array<i64: 1, 256, 1024>}, {transform_indices = @transform_11, window_bounds = array<i64: 1, 1, 1024>}, {transform_indices = @transform_12, window_bounds = array<i64: 1, 1024, 256>}, {transform_indices = @transform_13, window_bounds = array<i64: 1, 1, 256>}, {pipeline_mode = #tpu.pipeline_mode<synchronous>, transform_indices = @transform_14, window_bounds = array<i64: 1, 256>}, {pipeline_mode = #tpu.pipeline_mode<synchronous>, transform_indices = @transform_15, window_bounds = array<i64: 1, 256>}, {pipeline_mode = #tpu.pipeline_mode<synchronous>, transform_indices = @transform_16, window_bounds = array<i64: 256, 512>}, {pipeline_mode = #tpu.pipeline_mode<synchronous>, transform_indices = @transform_17, window_bounds = array<i64: 1, 512>}, {pipeline_mode = #tpu.pipeline_mode<synchronous>, transform_indices = @transform_18, window_bounds = array<i64: 16, 512>}]} {
    %c0_i32 = arith.constant 0 : i32
    %0 = arith.cmpi eq, %arg0, %c0_i32 : i32
    %1 = arith.extui %0 : i1 to i32
    %c0_i32_0 = arith.constant 0 : i32
    %2 = arith.cmpi ne, %1, %c0_i32_0 : i32
    scf.if %2 {
      %c0_88 = arith.constant 0 : index
      %c0_89 = arith.constant 0 : index
      %185 = vector.load %arg1[%c0_88, %c0_89] : memref<16x256xf32, #tpu.memory_space<vmem>>, vector<16x256xf32>
      %c0_90 = arith.constant 0 : index
      %c0_91 = arith.constant 0 : index
      %186 = vector.load %arg20[%c0_90, %c0_91] : memref<16x256xf32, #tpu.memory_space<vmem>>, vector<16x256xf32>
      tpu.vector_store %arg20[%c0_90, %c0_91], %185 {strides = array<i32>} : memref<16x256xf32, #tpu.memory_space<vmem>>, vector<16x256xf32>,
    } else {
    }
    %c0 = arith.constant 0 : index
    %c0_1 = arith.constant 0 : index
    %3 = vector.load %arg20[%c0, %c0_1] : memref<16x256xf32, #tpu.memory_space<vmem>>, vector<16x256xf32>
    %c0_2 = arith.constant 0 : index
    %c0_3 = arith.constant 0 : index
    %c0_4 = arith.constant 0 : index
    %4 = vector.load %arg3[%c0_2, %c0_3, %c0_4] : memref<1x1x256xf32, #tpu.memory_space<vmem>>, vector<1x1x256xf32>
    %5 = vector.shape_cast %4 : vector<1x1x256xf32> to vector<1x256xf32>
    %c0_5 = arith.constant 0 : index
    %c0_6 = arith.constant 0 : index
    %c0_7 = arith.constant 0 : index
    %6 = vector.load %arg4[%c0_5, %c0_6, %c0_7] : memref<1x1x256xf32, #tpu.memory_space<vmem>>, vector<1x1x256xf32>
    %7 = vector.shape_cast %6 : vector<1x1x256xf32> to vector<1x256xf32>
    %cst = arith.constant dense<0.000000e+00> : vector<16xf32>
    %8 = vector.multi_reduction <add>, %3, %cst [1] : vector<16x256xf32> to vector<16xf32>
    %9 = vector.shape_cast %8 : vector<16xf32> to vector<16x1xf32>
    %cst_8 = arith.constant 2.560000e+02 : f32
    %10 = vector.broadcast %cst_8 : f32 to vector<16x1xf32>
    %11 = arith.divf %9, %10 : vector<16x1xf32>
    %12 = vector.broadcast %11 : vector<16x1xf32> to vector<16x256xf32>
    %13 = arith.subf %3, %12 : vector<16x256xf32>
    %14 = arith.mulf %13, %13 : vector<16x256xf32>
    %cst_9 = arith.constant dense<0.000000e+00> : vector<16xf32>
    %15 = vector.multi_reduction <add>, %14, %cst_9 [1] : vector<16x256xf32> to vector<16xf32>
    %16 = vector.shape_cast %15 : vector<16xf32> to vector<16x1xf32>
    %cst_10 = arith.constant 2.560000e+02 : f32
    %17 = vector.broadcast %cst_10 : f32 to vector<16x1xf32>
    %18 = arith.divf %16, %17 : vector<16x1xf32>
    %19 = vector.broadcast %11 : vector<16x1xf32> to vector<16x256xf32>
    %20 = arith.subf %3, %19 : vector<16x256xf32>
    %cst_11 = arith.constant 9.99999974E-6 : f32
    %21 = vector.broadcast %cst_11 : f32 to vector<16x1xf32>
    %22 = arith.addf %18, %21 : vector<16x1xf32>
    %23 = math.rsqrt %22 : vector<16x1xf32>
    %24 = vector.broadcast %23 : vector<16x1xf32> to vector<16x256xf32>
    %25 = arith.mulf %20, %24 : vector<16x256xf32>
    %26 = vector.broadcast %5 : vector<1x256xf32> to vector<16x256xf32>
    %27 = arith.mulf %25, %26 : vector<16x256xf32>
    %28 = vector.broadcast %7 : vector<1x256xf32> to vector<16x256xf32>
    %29 = arith.addf %27, %28 : vector<16x256xf32>
    %30 = arith.truncf %29 : vector<16x256xf32> to vector<16x256xbf16>
    %c0_12 = arith.constant 0 : index
    %c0_13 = arith.constant 0 : index
    %c0_14 = arith.constant 0 : index
    %31 = vector.load %arg5[%c0_12, %c0_13, %c0_14] : memref<1x256x768xbf16, #tpu.memory_space<vmem>>, vector<1x256x768xbf16>
    %32 = vector.shape_cast %31 : vector<1x256x768xbf16> to vector<256x768xbf16>
    %cst_15 = arith.constant dense<0.000000e+00> : vector<16x768xf32>
    %33 = tpu.matmul %30, %32, %cst_15 {dimension_numbers = #tpu.dot_dimension_numbers<[1], [0], [0], [1], [0, 0, 1, 1], [], []>} : vector<16x256xbf16>, vector<256x768xbf16>, vector<16x768xf32> -> vector<16x768xf32>
    %c0_16 = arith.constant 0 : index
    %c0_17 = arith.constant 0 : index
    %c0_18 = arith.constant 0 : index
    %34 = vector.load %arg6[%c0_16, %c0_17, %c0_18] : memref<1x1x768xf32, #tpu.memory_space<vmem>>, vector<1x1x768xf32>
    %35 = vector.shape_cast %34 : vector<1x1x768xf32> to vector<1x768xf32>
    %36 = vector.broadcast %35 : vector<1x768xf32> to vector<16x768xf32>
    %37 = arith.addf %33, %36 : vector<16x768xf32>
    %c0_19 = arith.constant 0 : index
    %c0_20 = arith.constant 0 : index
    %38 = vector.load %arg2[%c0_19, %c0_20] : memref<8x8xf32, #tpu.memory_space<vmem>>, vector<8x8xf32>
    %39 = vector.extract_strided_slice %37 {offsets = [0, 0], sizes = [8, 128], strides = [1, 1]} : vector<16x768xf32> to vector<8x128xf32>
    %cst_21 = arith.constant 0.0883883461 : f32
    %40 = vector.broadcast %cst_21 : f32 to vector<8x128xf32>
    %41 = arith.mulf %39, %40 : vector<8x128xf32>
    %42 = vector.extract_strided_slice %37 {offsets = [0, 256], sizes = [8, 128], strides = [1, 1]} : vector<16x768xf32> to vector<8x128xf32>
    %43 = vector.extract_strided_slice %37 {offsets = [0, 512], sizes = [8, 128], strides = [1, 1]} : vector<16x768xf32> to vector<8x128xf32>
    %cst_22 = arith.constant dense<0.000000e+00> : vector<8x8xf32>
    %44 = tpu.matmul %41, %42, %cst_22 {dimension_numbers = #tpu.dot_dimension_numbers<[1], [1], [0], [0], [0, 0, 1, 0], [], []>} : vector<8x128xf32>, vector<8x128xf32>, vector<8x8xf32> -> vector<8x8xf32>
    %45 = arith.addf %44, %38 : vector<8x8xf32>
    %cst_23 = arith.constant dense<0xFF800000> : vector<8xf32>
    %46 = vector.multi_reduction <maximumf>, %45, %cst_23 [1] : vector<8x8xf32> to vector<8xf32>
    %47 = vector.shape_cast %46 : vector<8xf32> to vector<8x1xf32>
    %48 = vector.broadcast %47 : vector<8x1xf32> to vector<8x8xf32>
    %49 = arith.subf %45, %48 : vector<8x8xf32>
    %50 = math.exp %49 : vector<8x8xf32>
    %cst_24 = arith.constant dense<0.000000e+00> : vector<8xf32>
    %51 = vector.multi_reduction <add>, %50, %cst_24 [1] : vector<8x8xf32> to vector<8xf32>
    %52 = vector.shape_cast %51 : vector<8xf32> to vector<8x1xf32>
    %53 = tpu.reciprocal %52 {approx = true} : vector<8x1xf32> -> vector<8x1xf32>
    %54 = vector.broadcast %53 : vector<8x1xf32> to vector<8x8xf32>
    %55 = arith.mulf %50, %54 : vector<8x8xf32>
    %cst_25 = arith.constant dense<0.000000e+00> : vector<8x128xf32>
    %56 = tpu.matmul %55, %43, %cst_25 {dimension_numbers = #tpu.dot_dimension_numbers<[1], [0], [0], [1], [0, 0, 1, 1], [], []>} : vector<8x8xf32>, vector<8x128xf32>, vector<8x128xf32> -> vector<8x128xf32>
    %c0_26 = arith.constant 0 : index
    %c0_27 = arith.constant 0 : index
    %57 = vector.load %arg21[%c0_26, %c0_27] : memref<16x256xf32, #tpu.memory_space<vmem>>, vector<8x128xf32>
    tpu.vector_store %arg21[%c0_26, %c0_27], %56 {strides = array<i32>} : memref<16x256xf32, #tpu.memory_space<vmem>>, vector<8x128xf32>,
    %58 = vector.extract_strided_slice %37 {offsets = [0, 128], sizes = [8, 128], strides = [1, 1]} : vector<16x768xf32> to vector<8x128xf32>
    %cst_28 = arith.constant 0.0883883461 : f32
    %59 = vector.broadcast %cst_28 : f32 to vector<8x128xf32>
    %60 = arith.mulf %58, %59 : vector<8x128xf32>
    %61 = vector.extract_strided_slice %37 {offsets = [0, 384], sizes = [8, 128], strides = [1, 1]} : vector<16x768xf32> to vector<8x128xf32>
    %62 = vector.extract_strided_slice %37 {offsets = [0, 640], sizes = [8, 128], strides = [1, 1]} : vector<16x768xf32> to vector<8x128xf32>
    %cst_29 = arith.constant dense<0.000000e+00> : vector<8x8xf32>
    %63 = tpu.matmul %60, %61, %cst_29 {dimension_numbers = #tpu.dot_dimension_numbers<[1], [1], [0], [0], [0, 0, 1, 0], [], []>} : vector<8x128xf32>, vector<8x128xf32>, vector<8x8xf32> -> vector<8x8xf32>
    %64 = arith.addf %63, %38 : vector<8x8xf32>
    %cst_30 = arith.constant dense<0xFF800000> : vector<8xf32>
    %65 = vector.multi_reduction <maximumf>, %64, %cst_30 [1] : vector<8x8xf32> to vector<8xf32>
    %66 = vector.shape_cast %65 : vector<8xf32> to vector<8x1xf32>
    %67 = vector.broadcast %66 : vector<8x1xf32> to vector<8x8xf32>
    %68 = arith.subf %64, %67 : vector<8x8xf32>
    %69 = math.exp %68 : vector<8x8xf32>
    %cst_31 = arith.constant dense<0.000000e+00> : vector<8xf32>
    %70 = vector.multi_reduction <add>, %69, %cst_31 [1] : vector<8x8xf32> to vector<8xf32>
    %71 = vector.shape_cast %70 : vector<8xf32> to vector<8x1xf32>
    %72 = tpu.reciprocal %71 {approx = true} : vector<8x1xf32> -> vector<8x1xf32>
    %73 = vector.broadcast %72 : vector<8x1xf32> to vector<8x8xf32>
    %74 = arith.mulf %69, %73 : vector<8x8xf32>
    %cst_32 = arith.constant dense<0.000000e+00> : vector<8x128xf32>
    %75 = tpu.matmul %74, %62, %cst_32 {dimension_numbers = #tpu.dot_dimension_numbers<[1], [0], [0], [1], [0, 0, 1, 1], [], []>} : vector<8x8xf32>, vector<8x128xf32>, vector<8x128xf32> -> vector<8x128xf32>
    %c0_33 = arith.constant 0 : index
    %c128 = arith.constant 128 : index
    %76 = vector.load %arg21[%c0_33, %c128] : memref<16x256xf32, #tpu.memory_space<vmem>>, vector<8x128xf32>
    tpu.vector_store %arg21[%c0_33, %c128], %75 {strides = array<i32>} : memref<16x256xf32, #tpu.memory_space<vmem>>, vector<8x128xf32>,
    %77 = vector.extract_strided_slice %37 {offsets = [8, 0], sizes = [8, 128], strides = [1, 1]} : vector<16x768xf32> to vector<8x128xf32>
    %cst_34 = arith.constant 0.0883883461 : f32
    %78 = vector.broadcast %cst_34 : f32 to vector<8x128xf32>
    %79 = arith.mulf %77, %78 : vector<8x128xf32>
    %80 = vector.extract_strided_slice %37 {offsets = [8, 256], sizes = [8, 128], strides = [1, 1]} : vector<16x768xf32> to vector<8x128xf32>
    %81 = vector.extract_strided_slice %37 {offsets = [8, 512], sizes = [8, 128], strides = [1, 1]} : vector<16x768xf32> to vector<8x128xf32>
    %cst_35 = arith.constant dense<0.000000e+00> : vector<8x8xf32>
    %82 = tpu.matmul %79, %80, %cst_35 {dimension_numbers = #tpu.dot_dimension_numbers<[1], [1], [0], [0], [0, 0, 1, 0], [], []>} : vector<8x128xf32>, vector<8x128xf32>, vector<8x8xf32> -> vector<8x8xf32>
    %83 = arith.addf %82, %38 : vector<8x8xf32>
    %cst_36 = arith.constant dense<0xFF800000> : vector<8xf32>
    %84 = vector.multi_reduction <maximumf>, %83, %cst_36 [1] : vector<8x8xf32> to vector<8xf32>
    %85 = vector.shape_cast %84 : vector<8xf32> to vector<8x1xf32>
    %86 = vector.broadcast %85 : vector<8x1xf32> to vector<8x8xf32>
    %87 = arith.subf %83, %86 : vector<8x8xf32>
    %88 = math.exp %87 : vector<8x8xf32>
    %cst_37 = arith.constant dense<0.000000e+00> : vector<8xf32>
    %89 = vector.multi_reduction <add>, %88, %cst_37 [1] : vector<8x8xf32> to vector<8xf32>
    %90 = vector.shape_cast %89 : vector<8xf32> to vector<8x1xf32>
    %91 = tpu.reciprocal %90 {approx = true} : vector<8x1xf32> -> vector<8x1xf32>
    %92 = vector.broadcast %91 : vector<8x1xf32> to vector<8x8xf32>
    %93 = arith.mulf %88, %92 : vector<8x8xf32>
    %cst_38 = arith.constant dense<0.000000e+00> : vector<8x128xf32>
    %94 = tpu.matmul %93, %81, %cst_38 {dimension_numbers = #tpu.dot_dimension_numbers<[1], [0], [0], [1], [0, 0, 1, 1], [], []>} : vector<8x8xf32>, vector<8x128xf32>, vector<8x128xf32> -> vector<8x128xf32>
    %c8 = arith.constant 8 : index
    %c0_39 = arith.constant 0 : index
    %95 = vector.load %arg21[%c8, %c0_39] : memref<16x256xf32, #tpu.memory_space<vmem>>, vector<8x128xf32>
    tpu.vector_store %arg21[%c8, %c0_39], %94 {strides = array<i32>} : memref<16x256xf32, #tpu.memory_space<vmem>>, vector<8x128xf32>,
    %96 = vector.extract_strided_slice %37 {offsets = [8, 128], sizes = [8, 128], strides = [1, 1]} : vector<16x768xf32> to vector<8x128xf32>
    %cst_40 = arith.constant 0.0883883461 : f32
    %97 = vector.broadcast %cst_40 : f32 to vector<8x128xf32>
    %98 = arith.mulf %96, %97 : vector<8x128xf32>
    %99 = vector.extract_strided_slice %37 {offsets = [8, 384], sizes = [8, 128], strides = [1, 1]} : vector<16x768xf32> to vector<8x128xf32>
    %100 = vector.extract_strided_slice %37 {offsets = [8, 640], sizes = [8, 128], strides = [1, 1]} : vector<16x768xf32> to vector<8x128xf32>
    %cst_41 = arith.constant dense<0.000000e+00> : vector<8x8xf32>
    %101 = tpu.matmul %98, %99, %cst_41 {dimension_numbers = #tpu.dot_dimension_numbers<[1], [1], [0], [0], [0, 0, 1, 0], [], []>} : vector<8x128xf32>, vector<8x128xf32>, vector<8x8xf32> -> vector<8x8xf32>
    %102 = arith.addf %101, %38 : vector<8x8xf32>
    %cst_42 = arith.constant dense<0xFF800000> : vector<8xf32>
    %103 = vector.multi_reduction <maximumf>, %102, %cst_42 [1] : vector<8x8xf32> to vector<8xf32>
    %104 = vector.shape_cast %103 : vector<8xf32> to vector<8x1xf32>
    %105 = vector.broadcast %104 : vector<8x1xf32> to vector<8x8xf32>
    %106 = arith.subf %102, %105 : vector<8x8xf32>
    %107 = math.exp %106 : vector<8x8xf32>
    %cst_43 = arith.constant dense<0.000000e+00> : vector<8xf32>
    %108 = vector.multi_reduction <add>, %107, %cst_43 [1] : vector<8x8xf32> to vector<8xf32>
    %109 = vector.shape_cast %108 : vector<8xf32> to vector<8x1xf32>
    %110 = tpu.reciprocal %109 {approx = true} : vector<8x1xf32> -> vector<8x1xf32>
    %111 = vector.broadcast %110 : vector<8x1xf32> to vector<8x8xf32>
    %112 = arith.mulf %107, %111 : vector<8x8xf32>
    %cst_44 = arith.constant dense<0.000000e+00> : vector<8x128xf32>
    %113 = tpu.matmul %112, %100, %cst_44 {dimension_numbers = #tpu.dot_dimension_numbers<[1], [0], [0], [1], [0, 0, 1, 1], [], []>} : vector<8x8xf32>, vector<8x128xf32>, vector<8x128xf32> -> vector<8x128xf32>
    %c8_45 = arith.constant 8 : index
    %c128_46 = arith.constant 128 : index
    %114 = vector.load %arg21[%c8_45, %c128_46] : memref<16x256xf32, #tpu.memory_space<vmem>>, vector<8x128xf32>
    tpu.vector_store %arg21[%c8_45, %c128_46], %113 {strides = array<i32>} : memref<16x256xf32, #tpu.memory_space<vmem>>, vector<8x128xf32>,
    %c0_47 = arith.constant 0 : index
    %c0_48 = arith.constant 0 : index
    %115 = vector.load %arg21[%c0_47, %c0_48] : memref<16x256xf32, #tpu.memory_space<vmem>>, vector<16x256xf32>
    %116 = arith.truncf %115 : vector<16x256xf32> to vector<16x256xbf16>
    %c0_49 = arith.constant 0 : index
    %c0_50 = arith.constant 0 : index
    %c0_51 = arith.constant 0 : index
    %117 = vector.load %arg7[%c0_49, %c0_50, %c0_51] : memref<1x256x256xbf16, #tpu.memory_space<vmem>>, vector<1x256x256xbf16>
    %118 = vector.shape_cast %117 : vector<1x256x256xbf16> to vector<256x256xbf16>
    %cst_52 = arith.constant dense<0.000000e+00> : vector<16x256xf32>
    %119 = tpu.matmul %116, %118, %cst_52 {dimension_numbers = #tpu.dot_dimension_numbers<[1], [0], [0], [1], [0, 0, 1, 1], [], []>} : vector<16x256xbf16>, vector<256x256xbf16>, vector<16x256xf32> -> vector<16x256xf32>
    %c0_53 = arith.constant 0 : index
    %c0_54 = arith.constant 0 : index
    %c0_55 = arith.constant 0 : index
    %120 = vector.load %arg8[%c0_53, %c0_54, %c0_55] : memref<1x1x256xf32, #tpu.memory_space<vmem>>, vector<1x1x256xf32>
    %121 = vector.shape_cast %120 : vector<1x1x256xf32> to vector<1x256xf32>
    %122 = vector.broadcast %121 : vector<1x256xf32> to vector<16x256xf32>
    %123 = arith.addf %119, %122 : vector<16x256xf32>
    %124 = arith.addf %3, %123 : vector<16x256xf32>
    %c0_56 = arith.constant 0 : index
    %c0_57 = arith.constant 0 : index
    %c0_58 = arith.constant 0 : index
    %125 = vector.load %arg9[%c0_56, %c0_57, %c0_58] : memref<1x1x256xf32, #tpu.memory_space<vmem>>, vector<1x1x256xf32>
    %126 = vector.shape_cast %125 : vector<1x1x256xf32> to vector<1x256xf32>
    %c0_59 = arith.constant 0 : index
    %c0_60 = arith.constant 0 : index
    %c0_61 = arith.constant 0 : index
    %127 = vector.load %arg10[%c0_59, %c0_60, %c0_61] : memref<1x1x256xf32, #tpu.memory_space<vmem>>, vector<1x1x256xf32>
    %128 = vector.shape_cast %127 : vector<1x1x256xf32> to vector<1x256xf32>
    %cst_62 = arith.constant dense<0.000000e+00> : vector<16xf32>
    %129 = vector.multi_reduction <add>, %124, %cst_62 [1] : vector<16x256xf32> to vector<16xf32>
    %130 = vector.shape_cast %129 : vector<16xf32> to vector<16x1xf32>
    %cst_63 = arith.constant 2.560000e+02 : f32
    %131 = vector.broadcast %cst_63 : f32 to vector<16x1xf32>
    %132 = arith.divf %130, %131 : vector<16x1xf32>
    %133 = vector.broadcast %132 : vector<16x1xf32> to vector<16x256xf32>
    %134 = arith.subf %124, %133 : vector<16x256xf32>
    %135 = arith.mulf %134, %134 : vector<16x256xf32>
    %cst_64 = arith.constant dense<0.000000e+00> : vector<16xf32>
    %136 = vector.multi_reduction <add>, %135, %cst_64 [1] : vector<16x256xf32> to vector<16xf32>
    %137 = vector.shape_cast %136 : vector<16xf32> to vector<16x1xf32>
    %cst_65 = arith.constant 2.560000e+02 : f32
    %138 = vector.broadcast %cst_65 : f32 to vector<16x1xf32>
    %139 = arith.divf %137, %138 : vector<16x1xf32>
    %140 = vector.broadcast %132 : vector<16x1xf32> to vector<16x256xf32>
    %141 = arith.subf %124, %140 : vector<16x256xf32>
    %cst_66 = arith.constant 9.99999974E-6 : f32
    %142 = vector.broadcast %cst_66 : f32 to vector<16x1xf32>
    %143 = arith.addf %139, %142 : vector<16x1xf32>
    %144 = math.rsqrt %143 : vector<16x1xf32>
    %145 = vector.broadcast %144 : vector<16x1xf32> to vector<16x256xf32>
    %146 = arith.mulf %141, %145 : vector<16x256xf32>
    %147 = vector.broadcast %126 : vector<1x256xf32> to vector<16x256xf32>
    %148 = arith.mulf %146, %147 : vector<16x256xf32>
    %149 = vector.broadcast %128 : vector<1x256xf32> to vector<16x256xf32>
    %150 = arith.addf %148, %149 : vector<16x256xf32>
    %151 = arith.truncf %150 : vector<16x256xf32> to vector<16x256xbf16>
    %c0_67 = arith.constant 0 : index
    %c0_68 = arith.constant 0 : index
    %c0_69 = arith.constant 0 : index
    %152 = vector.load %arg11[%c0_67, %c0_68, %c0_69] : memref<1x256x1024xbf16, #tpu.memory_space<vmem>>, vector<1x256x1024xbf16>
    %153 = vector.shape_cast %152 : vector<1x256x1024xbf16> to vector<256x1024xbf16>
    %cst_70 = arith.constant dense<0.000000e+00> : vector<16x1024xf32>
    %154 = tpu.matmul %151, %153, %cst_70 {dimension_numbers = #tpu.dot_dimension_numbers<[1], [0], [0], [1], [0, 0, 1, 1], [], []>} : vector<16x256xbf16>, vector<256x1024xbf16>, vector<16x1024xf32> -> vector<16x1024xf32>
    %c0_71 = arith.constant 0 : index
    %c0_72 = arith.constant 0 : index
    %c0_73 = arith.constant 0 : index
    %155 = vector.load %arg12[%c0_71, %c0_72, %c0_73] : memref<1x1x1024xf32, #tpu.memory_space<vmem>>, vector<1x1x1024xf32>
    %156 = vector.shape_cast %155 : vector<1x1x1024xf32> to vector<1x1024xf32>
    %157 = vector.broadcast %156 : vector<1x1024xf32> to vector<16x1024xf32>
    %158 = arith.addf %154, %157 : vector<16x1024xf32>
    %cst_74 = arith.constant 5.000000e-01 : f32
    %159 = vector.broadcast %cst_74 : f32 to vector<16x1024xf32>
    %160 = arith.mulf %159, %158 : vector<16x1024xf32>
    %cst_75 = arith.constant 4.471500e-02 : f32
    %161 = vector.broadcast %cst_75 : f32 to vector<16x1024xf32>
    %162 = arith.mulf %161, %158 : vector<16x1024xf32>
    %163 = arith.mulf %162, %158 : vector<16x1024xf32>
    %164 = arith.mulf %163, %158 : vector<16x1024xf32>
    %165 = arith.addf %158, %164 : vector<16x1024xf32>
    %cst_76 = arith.constant 0.797884583 : f32
    %166 = vector.broadcast %cst_76 : f32 to vector<16x1024xf32>
    %167 = arith.mulf %166, %165 : vector<16x1024xf32>
    %168 = math.tanh %167 : vector<16x1024xf32>
    %cst_77 = arith.constant 1.000000e+00 : f32
    %169 = vector.broadcast %cst_77 : f32 to vector<16x1024xf32>
    %170 = arith.addf %169, %168 : vector<16x1024xf32>
    %171 = arith.mulf %160, %170 : vector<16x1024xf32>
    %172 = arith.truncf %171 : vector<16x1024xf32> to vector<16x1024xbf16>
    %c0_78 = arith.constant 0 : index
    %c0_79 = arith.constant 0 : index
    %c0_80 = arith.constant 0 : index
    %173 = vector.load %arg13[%c0_78, %c0_79, %c0_80] : memref<1x1024x256xbf16, #tpu.memory_space<vmem>>, vector<1x1024x256xbf16>
    %174 = vector.shape_cast %173 : vector<1x1024x256xbf16> to vector<1024x256xbf16>
    %cst_81 = arith.constant dense<0.000000e+00> : vector<16x256xf32>
    %175 = tpu.matmul %172, %174, %cst_81 {dimension_numbers = #tpu.dot_dimension_numbers<[1], [0], [0], [1], [0, 0, 1, 1], [], []>} : vector<16x1024xbf16>, vector<1024x256xbf16>, vector<16x256xf32> -> vector<16x256xf32>
    %c0_82 = arith.constant 0 : index
    %c0_83 = arith.constant 0 : index
    %c0_84 = arith.constant 0 : index
    %176 = vector.load %arg14[%c0_82, %c0_83, %c0_84] : memref<1x1x256xf32, #tpu.memory_space<vmem>>, vector<1x1x256xf32>
    %177 = vector.shape_cast %176 : vector<1x1x256xf32> to vector<1x256xf32>
    %178 = vector.broadcast %177 : vector<1x256xf32> to vector<16x256xf32>
    %179 = arith.addf %175, %178 : vector<16x256xf32>
    %180 = arith.addf %124, %179 : vector<16x256xf32>
    %c0_85 = arith.constant 0 : index
    %c0_86 = arith.constant 0 : index
    %181 = vector.load %arg20[%c0_85, %c0_86] : memref<16x256xf32, #tpu.memory_space<vmem>>, vector<16x256xf32>
    tpu.vector_store %arg20[%c0_85, %c0_86], %180 {strides = array<i32>} : memref<16x256xf32, #tpu.memory_space<vmem>>, vector<16x256xf32>,
    %c1_i32 = arith.constant 1 : i32
    %182 = arith.cmpi eq, %arg0, %c1_i32 : i32
    %183 = arith.extui %182 : i1 to i32
    %c0_i32_87 = arith.constant 0 : i32
    %184 = arith.cmpi ne, %183, %c0_i32_87 : i32
    scf.if %184 {
      %c0_88 = arith.constant 0 : index
      %c0_89 = arith.constant 0 : index
      %185 = vector.load %arg15[%c0_88, %c0_89] : memref<1x256xf32, #tpu.memory_space<vmem>>, vector<1x256xf32>
      %c0_90 = arith.constant 0 : index
      %c0_91 = arith.constant 0 : index
      %186 = vector.load %arg16[%c0_90, %c0_91] : memref<1x256xf32, #tpu.memory_space<vmem>>, vector<1x256xf32>
      %cst_92 = arith.constant dense<0.000000e+00> : vector<16xf32>
      %187 = vector.multi_reduction <add>, %180, %cst_92 [1] : vector<16x256xf32> to vector<16xf32>
      %188 = vector.shape_cast %187 : vector<16xf32> to vector<16x1xf32>
      %cst_93 = arith.constant 2.560000e+02 : f32
      %189 = vector.broadcast %cst_93 : f32 to vector<16x1xf32>
      %190 = arith.divf %188, %189 : vector<16x1xf32>
      %191 = vector.broadcast %190 : vector<16x1xf32> to vector<16x256xf32>
      %192 = arith.subf %180, %191 : vector<16x256xf32>
      %193 = arith.mulf %192, %192 : vector<16x256xf32>
      %cst_94 = arith.constant dense<0.000000e+00> : vector<16xf32>
      %194 = vector.multi_reduction <add>, %193, %cst_94 [1] : vector<16x256xf32> to vector<16xf32>
      %195 = vector.shape_cast %194 : vector<16xf32> to vector<16x1xf32>
      %cst_95 = arith.constant 2.560000e+02 : f32
      %196 = vector.broadcast %cst_95 : f32 to vector<16x1xf32>
      %197 = arith.divf %195, %196 : vector<16x1xf32>
      %198 = vector.broadcast %190 : vector<16x1xf32> to vector<16x256xf32>
      %199 = arith.subf %180, %198 : vector<16x256xf32>
      %cst_96 = arith.constant 9.99999974E-6 : f32
      %200 = vector.broadcast %cst_96 : f32 to vector<16x1xf32>
      %201 = arith.addf %197, %200 : vector<16x1xf32>
      %202 = math.rsqrt %201 : vector<16x1xf32>
      %203 = vector.broadcast %202 : vector<16x1xf32> to vector<16x256xf32>
      %204 = arith.mulf %199, %203 : vector<16x256xf32>
      %205 = vector.broadcast %185 : vector<1x256xf32> to vector<16x256xf32>
      %206 = arith.mulf %204, %205 : vector<16x256xf32>
      %207 = vector.broadcast %186 : vector<1x256xf32> to vector<16x256xf32>
      %208 = arith.addf %206, %207 : vector<16x256xf32>
      %209 = arith.truncf %208 : vector<16x256xf32> to vector<16x256xbf16>
      %c0_97 = arith.constant 0 : index
      %c0_98 = arith.constant 0 : index
      %210 = vector.load %arg17[%c0_97, %c0_98] : memref<256x512xbf16, #tpu.memory_space<vmem>>, vector<256x512xbf16>
      %cst_99 = arith.constant dense<0.000000e+00> : vector<16x512xf32>
      %211 = tpu.matmul %209, %210, %cst_99 {dimension_numbers = #tpu.dot_dimension_numbers<[1], [0], [0], [1], [0, 0, 1, 1], [], []>} : vector<16x256xbf16>, vector<256x512xbf16>, vector<16x512xf32> -> vector<16x512xf32>
      %c0_100 = arith.constant 0 : index
      %c0_101 = arith.constant 0 : index
      %212 = vector.load %arg18[%c0_100, %c0_101] : memref<1x512xf32, #tpu.memory_space<vmem>>, vector<1x512xf32>
      %213 = vector.broadcast %212 : vector<1x512xf32> to vector<16x512xf32>
      %214 = arith.addf %211, %213 : vector<16x512xf32>
      %c0_102 = arith.constant 0 : index
      %c0_103 = arith.constant 0 : index
      %215 = vector.load %arg19[%c0_102, %c0_103] : memref<16x512xf32, #tpu.memory_space<vmem>>, vector<16x512xf32>
      tpu.vector_store %arg19[%c0_102, %c0_103], %214 {strides = array<i32>} : memref<16x512xf32, #tpu.memory_space<vmem>>, vector<16x512xf32>,
    } else {
    }
    return
  }
  func.func @transform_0(%arg0: i32) -> (i32, i32) {
    %c0_i32 = arith.constant 0 : i32
    %c0_i32_0 = arith.constant 0 : i32
    %c0_i32_1 = arith.constant 0 : i32
    return %c0_i32, %c0_i32_0 : i32, i32
  }
  func.func @transform_1(%arg0: i32) -> (i32, i32) {
    %c0_i32 = arith.constant 0 : i32
    %c0_i32_0 = arith.constant 0 : i32
    %c0_i32_1 = arith.constant 0 : i32
    return %c0_i32, %c0_i32_0 : i32, i32
  }
  func.func @transform_2(%arg0: i32) -> (i32, i32, i32) {
    %c0_i32 = arith.constant 0 : i32
    %c0_i32_0 = arith.constant 0 : i32
    %c0_i32_1 = arith.constant 0 : i32
    return %arg0, %c0_i32, %c0_i32_0 : i32, i32, i32
  }
  func.func @transform_3(%arg0: i32) -> (i32, i32, i32) {
    %c0_i32 = arith.constant 0 : i32
    %c0_i32_0 = arith.constant 0 : i32
    %c0_i32_1 = arith.constant 0 : i32
    return %arg0, %c0_i32, %c0_i32_0 : i32, i32, i32
  }
  func.func @transform_4(%arg0: i32) -> (i32, i32, i32) {
    %c0_i32 = arith.constant 0 : i32
    %c0_i32_0 = arith.constant 0 : i32
    %c0_i32_1 = arith.constant 0 : i32
    return %arg0, %c0_i32, %c0_i32_0 : i32, i32, i32
  }
  func.func @transform_5(%arg0: i32) -> (i32, i32, i32) {
    %c0_i32 = arith.constant 0 : i32
    %c0_i32_0 = arith.constant 0 : i32
    %c0_i32_1 = arith.constant 0 : i32
    return %arg0, %c0_i32, %c0_i32_0 : i32, i32, i32
  }
  func.func @transform_6(%arg0: i32) -> (i32, i32, i32) {
    %c0_i32 = arith.constant 0 : i32
    %c0_i32_0 = arith.constant 0 : i32
    %c0_i32_1 = arith.constant 0 : i32
    return %arg0, %c0_i32, %c0_i32_0 : i32, i32, i32
  }
  func.func @transform_7(%arg0: i32) -> (i32, i32, i32) {
    %c0_i32 = arith.constant 0 : i32
    %c0_i32_0 = arith.constant 0 : i32
    %c0_i32_1 = arith.constant 0 : i32
    return %arg0, %c0_i32, %c0_i32_0 : i32, i32, i32
  }
  func.func @transform_8(%arg0: i32) -> (i32, i32, i32) {
    %c0_i32 = arith.constant 0 : i32
    %c0_i32_0 = arith.constant 0 : i32
    %c0_i32_1 = arith.constant 0 : i32
    return %arg0, %c0_i32, %c0_i32_0 : i32, i32, i32
  }
  func.func @transform_9(%arg0: i32) -> (i32, i32, i32) {
    %c0_i32 = arith.constant 0 : i32
    %c0_i32_0 = arith.constant 0 : i32
    %c0_i32_1 = arith.constant 0 : i32
    return %arg0, %c0_i32, %c0_i32_0 : i32, i32, i32
  }
  func.func @transform_10(%arg0: i32) -> (i32, i32, i32) {
    %c0_i32 = arith.constant 0 : i32
    %c0_i32_0 = arith.constant 0 : i32
    %c0_i32_1 = arith.constant 0 : i32
    return %arg0, %c0_i32, %c0_i32_0 : i32, i32, i32
  }
  func.func @transform_11(%arg0: i32) -> (i32, i32, i32) {
    %c0_i32 = arith.constant 0 : i32
    %c0_i32_0 = arith.constant 0 : i32
    %c0_i32_1 = arith.constant 0 : i32
    return %arg0, %c0_i32, %c0_i32_0 : i32, i32, i32
  }
  func.func @transform_12(%arg0: i32) -> (i32, i32, i32) {
    %c0_i32 = arith.constant 0 : i32
    %c0_i32_0 = arith.constant 0 : i32
    %c0_i32_1 = arith.constant 0 : i32
    return %arg0, %c0_i32, %c0_i32_0 : i32, i32, i32
  }
  func.func @transform_13(%arg0: i32) -> (i32, i32, i32) {
    %c0_i32 = arith.constant 0 : i32
    %c0_i32_0 = arith.constant 0 : i32
    %c0_i32_1 = arith.constant 0 : i32
    return %arg0, %c0_i32, %c0_i32_0 : i32, i32, i32
  }
  func.func @transform_14(%arg0: i32) -> (i32, i32) {
    %c0_i32 = arith.constant 0 : i32
    %c0_i32_0 = arith.constant 0 : i32
    %c0_i32_1 = arith.constant 0 : i32
    return %c0_i32, %c0_i32_0 : i32, i32
  }
  func.func @transform_15(%arg0: i32) -> (i32, i32) {
    %c0_i32 = arith.constant 0 : i32
    %c0_i32_0 = arith.constant 0 : i32
    %c0_i32_1 = arith.constant 0 : i32
    return %c0_i32, %c0_i32_0 : i32, i32
  }
  func.func @transform_16(%arg0: i32) -> (i32, i32) {
    %c0_i32 = arith.constant 0 : i32
    %c0_i32_0 = arith.constant 0 : i32
    %c0_i32_1 = arith.constant 0 : i32
    return %c0_i32, %c0_i32_0 : i32, i32
  }
  func.func @transform_17(%arg0: i32) -> (i32, i32) {
    %c0_i32 = arith.constant 0 : i32
    %c0_i32_0 = arith.constant 0 : i32
    %c0_i32_1 = arith.constant 0 : i32
    return %c0_i32, %c0_i32_0 : i32, i32
  }
  func.func @transform_18(%arg0: i32) -> (i32, i32) {
    %c0_i32 = arith.constant 0 : i32
    %c0_i32_0 = arith.constant 0 : i32
    %c0_i32_1 = arith.constant 0 : i32
    return %c0_i32, %c0_i32_0 : i32, i32
  }
}

</mosaic_0001>

<llo_original>
// kernel: pallas_forward.1
$region0: #{pallas_forward.1}
  #allocation0 [shape = 'u32[]', space=smem, size = 0x4, offset = 0x4, fixed_abs, tag = 'smem constant byte address 0x4 - core index']
  #allocation1 [shape = 'u32[72,128]{1,0:T(1,128)}', space=vmem, size = 0x9000, scoped, tag = 'internal scratch']
  #allocation2 [shape = 'f32[16,256]{1,0:T(8,128)}', space=vmem, size = 0x4000, scoped, tag = 'scratch operand']
  #allocation3 [shape = 'f32[16,256]{1,0:T(8,128)}', space=vmem, size = 0x4000, scoped, tag = 'scratch operand']
  %s0 = inlined_call_operand.vmem [shape: f32[16,256], index: 0, kind: input, shape index: {}]
  %s1 = inlined_call_operand.vmem [shape: f32[8,8], index: 1, kind: input, shape index: {}]
  %s2 = inlined_call_operand.vmem [shape: f32[2,1,256], index: 2, kind: input, shape index: {}]
  %s3 = inlined_call_operand.vmem [shape: f32[2,1,256], index: 3, kind: input, shape index: {}]
  %s4 = inlined_call_operand.hbm [shape: bf16[2,256,768], index: 4, kind: input, shape index: {}]
  %s5 = inlined_call_operand.vmem [shape: f32[2,1,768], index: 5, kind: input, shape index: {}]
  %s6 = inlined_call_operand.hbm [shape: bf16[2,256,256], index: 6, kind: input, shape index: {}]
  %s7 = inlined_call_operand.vmem [shape: f32[2,1,256], index: 7, kind: input, shape index: {}]
  %s8 = inlined_call_operand.vmem [shape: f32[2,1,256], index: 8, kind: input, shape index: {}]
  %s9 = inlined_call_operand.vmem [shape: f32[2,1,256], index: 9, kind: input, shape index: {}]
  %s10 = inlined_call_operand.hbm [shape: bf16[2,256,1024], index: 10, kind: input, shape index: {}]
  %s11 = inlined_call_operand.vmem [shape: f32[2,1,1024], index: 11, kind: input, shape index: {}]
  %s12 = inlined_call_operand.hbm [shape: bf16[2,1024,256], index: 12, kind: input, shape index: {}]
  %s13 = inlined_call_operand.vmem [shape: f32[2,1,256], index: 13, kind: input, shape index: {}]
  %s14 = inlined_call_operand.vmem [shape: f32[1,256], index: 14, kind: input, shape index: {}]
  %s15 = inlined_call_operand.vmem [shape: f32[1,256], index: 15, kind: input, shape index: {}]
  %s16 = inlined_call_operand.hbm [shape: bf16[256,512], index: 16, kind: input, shape index: {}]
  %s17 = inlined_call_operand.vmem [shape: f32[1,512], index: 17, kind: input, shape index: {}]
  %s18 = inlined_call_operand.hbm [shape: f32[16,512], index: 18, kind: output, shape index: {}]
  %s19 = sld [smem:[#allocation0]]
  $region133: #{pallas_forward.1} parent=0
    _
  %s21 = ssub.s32 1, %s19
  %s22 = scalar_select 0, %s21, %s19
  $region1: #{pallas_forward.1} parent=0
    #allocation4 [shape = 'u8[786432]{0}', space=vmem, size = 0xc0000, scoped, tag = 'input window, operand 4']
    #allocation5 [shape = 's32[2]{0}', space=sflag, size = 0x8, scoped, tag = 'scoped memory for pallas_forward.1']
    #allocation6 [shape = 's32[2]{0}', space=sflag, size = 0x8, scoped, tag = 'scoped memory for pallas_forward.1']
    #allocation7 [shape = 'u8[262144]{0}', space=vmem, size = 0x40000, scoped, tag = 'input window, operand 6']
    #allocation8 [shape = 's32[2]{0}', space=sflag, size = 0x8, scoped, tag = 'scoped memory for pallas_forward.1']
    #allocation9 [shape = 'u8[1048576]{0}', space=vmem, size = 0x100000, scoped, tag = 'input window, operand 10']
    #allocation10 [shape = 'u8[1048576]{0}', space=vmem, size = 0x100000, scoped, tag = 'input window, operand 12']
    #allocation11 [shape = 's32[2]{0}', space=sflag, size = 0x8, scoped, tag = 'scoped memory for pallas_forward.1']
    #allocation12 [shape = 'u8[262144]{0}', space=vmem, size = 0x40000, scoped, tag = 'input window, operand 16, single buffered']
    #allocation13 [shape = 'u8[32768]{0}', space=vmem, size = 0x8000, scoped, tag = 'output window, operand 0, single buffered']
    %23 = vsyncpa [#allocation5], 0
    %s24 = scalar_lea.sflag [#allocation5], 1
    %25 = vsyncpa %s24, 0
    %26 = vsyncpa [#allocation8], 0
    %s27 = scalar_lea.sflag [#allocation8], 1
    %28 = vsyncpa %s27, 0
    %29 = vsyncpa [#allocation11], 0
    %s30 = scalar_lea.sflag [#allocation11], 1
    %31 = vsyncpa %s30, 0
    %32 = vsyncpa [#allocation6], 0
    loop: start=0, step=1, limit=4
    $region2: #{pallas_forward.1} parent=1 // loop_pre_header
      _
    $region3: #{pallas_forward.1} parent=1 // loop_header
      %s34 = sphi 0, %s38
      %p35 = scmp.ge.s32.totalorder %s34, 4
      %s42 = sphi 0, %s42
      %s44 = sphi 0, %s42
      %s45 = sphi 0, %s44
      %s59 = sphi 0, %s45
      %s63 = sphi 0, %s63
      %s65 = sphi 0, %s63
      %s66 = sphi 0, %s65
      %s80 = sphi 0, %s66
      %s86 = sphi 0, %s88
      %s89 = sphi 0, %s86
      %s90 = sphi 0, %s89
      %s106 = sphi 0, %s90
      %s112 = sphi 0, %s114
      %s115 = sphi 0, %s112
      %s116 = sphi 0, %s115
      %s132 = sphi 0, %s116
      %s138 = sphi 0, %s140
      %s141 = sphi 0, %s138
      %s142 = sphi 0, %s141
      %s158 = sphi 0, %s142
      %s164 = sphi 0, %s166
      %s167 = sphi 0, %s164
      %s168 = sphi 0, %s167
      %s184 = sphi 0, %s168
      %s190 = sphi 0, %s192
      %s193 = sphi 0, %s190
      %s194 = sphi 0, %s193
      %s210 = sphi 0, %s194
      %s216 = sphi 0, %s218
      %s219 = sphi 0, %s216
      %s220 = sphi 0, %s219
      %s236 = sphi 0, %s220
      %s242 = sphi 0, %s244
      %s245 = sphi 0, %s242
      %s246 = sphi 0, %s245
      %s262 = sphi 0, %s246
      %s268 = sphi 0, %s270
      %s271 = sphi 0, %s268
      %s272 = sphi 0, %s271
      %s288 = sphi 0, %s272
      %s294 = sphi 0, %s296
      %s297 = sphi 0, %s294
      %s298 = sphi 0, %s297
      %s314 = sphi 0, %s298
      %s320 = sphi 0, %s322
      %s323 = sphi 0, %s320
      %s324 = sphi 0, %s323
      %s340 = sphi 0, %s324
      %s346 = sphi 0, %s348
      %s349 = sphi 0, %s346
      %s350 = sphi 0, %s349
      %s366 = sphi 0, %s350
      %s372 = sphi 0, %s374
      %s375 = sphi 0, %s372
      %s376 = sphi 0, %s375
      %s392 = sphi 0, %s376
      %s396 = sphi 0, %s396
      %s398 = sphi 0, %s396
      %s399 = sphi 0, %s398
      %s413 = sphi 0, %s399
      %s417 = sphi 0, %s417
      %s419 = sphi 0, %s417
      %s420 = sphi 0, %s419
      %s434 = sphi 0, %s420
      %s438 = sphi 0, %s438
      %s440 = sphi 0, %s438
      %s441 = sphi 0, %s440
      %s455 = sphi 0, %s441
      %s459 = sphi 0, %s459
      %s461 = sphi 0, %s459
      %s462 = sphi 0, %s461
      %s476 = sphi 0, %s462
      %s480 = sphi 0, %s480
      %s482 = sphi 0, %s480
      %s483 = sphi 0, %s482
      %s497 = sphi 0, %s483
    $region4: #{pallas_forward.1} parent=1 // loop_header_branch
      %37 = sbr.rel (%p35) target = $region8
    $region5: #{pallas_forward.1} parent=1 // loop_body
      %s39 = ssub.s32 %s34, 1
      %s40 = ssub.s32 %s34, 2
      %s41 = sadd.s32 %s34, 1
      %s43 = sadd.s32 %s42, 1
      %p46 = scmp.eq.s32.totalorder %s34, 1
      %p47 = scmp.ne.s32.totalorder %s42, %s44
      %p48 = scmp.eq.s32.totalorder %s34, 0
      %p49 = por %p47, %p48
      %p50 = scmp.ne.s32.totalorder %s42, %s44
      %p51 = scmp.eq.s32.totalorder %s39, 1
      %p52 = por %p50, %p51
      %p53 = scmp.ne.s32.totalorder %s44, %s45
      %p54 = scmp.eq.s32.totalorder %s39, 0
      %p55 = por %p53, %p54
      %p56 = scmp.ne.s32.totalorder %s44, %s45
      %p57 = scmp.eq.s32.totalorder %s40, 1
      %p58 = por %p56, %p57
      %p60 = scmp.ne.s32.totalorder %s45, %s59
      %p61 = scmp.eq.s32.totalorder %s40, 0
      %p62 = por %p60, %p61
      %s64 = sadd.s32 %s63, 1
      %p67 = scmp.eq.s32.totalorder %s34, 1
      %p68 = scmp.ne.s32.totalorder %s63, %s65
      %p69 = scmp.eq.s32.totalorder %s34, 0
      %p70 = por %p68, %p69
      %p71 = scmp.ne.s32.totalorder %s63, %s65
      %p72 = scmp.eq.s32.totalorder %s39, 1
      %p73 = por %p71, %p72
      %p74 = scmp.ne.s32.totalorder %s65, %s66
      %p75 = scmp.eq.s32.totalorder %s39, 0
      %p76 = por %p74, %p75
      %p77 = scmp.ne.s32.totalorder %s65, %s66
      %p78 = scmp.eq.s32.totalorder %s40, 1
      %p79 = por %p77, %p78
      %p81 = scmp.ne.s32.totalorder %s66, %s80
      %p82 = scmp.eq.s32.totalorder %s40, 0
      %p83 = por %p81, %p82
      %s84 = ssub.s32 %s34, %s41
      %p85 = scmp.eq.s32.totalorder %s84, 0
      %s87 = sadd.s32 %s86, 1
      %s88 = scalar_select %p85, %s86, %s87
      %p91 = pneg %p85
      %p92 = scmp.eq.s32.totalorder %s34, 1
      %p93 = por %p91, %p92
      %p94 = scmp.ne.s32.totalorder %s86, %s89
      %p95 = scmp.eq.s32.totalorder %s34, 0
      %p96 = por %p94, %p95
      %p97 = scmp.ne.s32.totalorder %s86, %s89
      %p98 = scmp.eq.s32.totalorder %s39, 1
      %p99 = por %p97, %p98
      %p100 = scmp.ne.s32.totalorder %s89, %s90
      %p101 = scmp.eq.s32.totalorder %s39, 0
      %p102 = por %p100, %p101
      %p103 = scmp.ne.s32.totalorder %s89, %s90
      %p104 = scmp.eq.s32.totalorder %s40, 1
      %p105 = por %p103, %p104
      %p107 = scmp.ne.s32.totalorder %s90, %s106
      %p108 = scmp.eq.s32.totalorder %s40, 0
      %p109 = por %p107, %p108
      %s110 = ssub.s32 %s34, %s41
      %p111 = scmp.eq.s32.totalorder %s110, 0
      %s113 = sadd.s32 %s112, 1
      %s114 = scalar_select %p111, %s112, %s113
      %p117 = pneg %p111
      %p118 = scmp.eq.s32.totalorder %s34, 1
      %p119 = por %p117, %p118
      %p120 = scmp.ne.s32.totalorder %s112, %s115
      %p121 = scmp.eq.s32.totalorder %s34, 0
      %p122 = por %p120, %p121
      %p123 = scmp.ne.s32.totalorder %s112, %s115
      %p124 = scmp.eq.s32.totalorder %s39, 1
      %p125 = por %p123, %p124
      %p126 = scmp.ne.s32.totalorder %s115, %s116
      %p127 = scmp.eq.s32.totalorder %s39, 0
      %p128 = por %p126, %p127
      %p129 = scmp.ne.s32.totalorder %s115, %s116
      %p130 = scmp.eq.s32.totalorder %s40, 1
      %p131 = por %p129, %p130
      %p133 = scmp.ne.s32.totalorder %s116, %s132
      %p134 = scmp.eq.s32.totalorder %s40, 0
      %p135 = por %p133, %p134
      %s136 = ssub.s32 %s34, %s41
      %p137 = scmp.eq.s32.totalorder %s136, 0
      %s139 = sadd.s32 %s138, 1
      %s140 = scalar_select %p137, %s138, %s139
      %p143 = pneg %p137
      %p144 = scmp.eq.s32.totalorder %s34, 1
      %p145 = por %p143, %p144
      %p146 = scmp.ne.s32.totalorder %s138, %s141
      %p147 = scmp.eq.s32.totalorder %s34, 0
      %p148 = por %p146, %p147
      %p149 = scmp.ne.s32.totalorder %s138, %s141
      %p150 = scmp.eq.s32.totalorder %s39, 1
      %p151 = por %p149, %p150
      %p152 = scmp.ne.s32.totalorder %s141, %s142
      %p153 = scmp.eq.s32.totalorder %s39, 0
      %p154 = por %p152, %p153
      %p155 = scmp.ne.s32.totalorder %s141, %s142
      %p156 = scmp.eq.s32.totalorder %s40, 1
      %p157 = por %p155, %p156
      %p159 = scmp.ne.s32.totalorder %s142, %s158
      %p160 = scmp.eq.s32.totalorder %s40, 0
      %p161 = por %p159, %p160
      %s162 = ssub.s32 %s34, %s41
      %p163 = scmp.eq.s32.totalorder %s162, 0
      %s165 = sadd.s32 %s164, 1
      %s166 = scalar_select %p163, %s164, %s165
      %p169 = pneg %p163
      %p170 = scmp.eq.s32.totalorder %s34, 1
      %p171 = por %p169, %p170
      %p172 = scmp.ne.s32.totalorder %s164, %s167
      %p173 = scmp.eq.s32.totalorder %s34, 0
      %p174 = por %p172, %p173
      %p175 = scmp.ne.s32.totalorder %s164, %s167
      %p176 = scmp.eq.s32.totalorder %s39, 1
      %p177 = por %p175, %p176
      %p178 = scmp.ne.s32.totalorder %s167, %s168
      %p179 = scmp.eq.s32.totalorder %s39, 0
      %p180 = por %p178, %p179
      %p181 = scmp.ne.s32.totalorder %s167, %s168
      %p182 = scmp.eq.s32.totalorder %s40, 1
      %p183 = por %p181, %p182
      %p185 = scmp.ne.s32.totalorder %s168, %s184
      %p186 = scmp.eq.s32.totalorder %s40, 0
      %p187 = por %p185, %p186
      %s188 = ssub.s32 %s34, %s41
      %p189 = scmp.eq.s32.totalorder %s188, 0
      %s191 = sadd.s32 %s190, 1
      %s192 = scalar_select %p189, %s190, %s191
      %p195 = pneg %p189
      %p196 = scmp.eq.s32.totalorder %s34, 1
      %p197 = por %p195, %p196
      %p198 = scmp.ne.s32.totalorder %s190, %s193
      %p199 = scmp.eq.s32.totalorder %s34, 0
      %p200 = por %p198, %p199
      %p201 = scmp.ne.s32.totalorder %s190, %s193
      %p202 = scmp.eq.s32.totalorder %s39, 1
      %p203 = por %p201, %p202
      %p204 = scmp.ne.s32.totalorder %s193, %s194
      %p205 = scmp.eq.s32.totalorder %s39, 0
      %p206 = por %p204, %p205
      %p207 = scmp.ne.s32.totalorder %s193, %s194
      %p208 = scmp.eq.s32.totalorder %s40, 1
      %p209 = por %p207, %p208
      %p211 = scmp.ne.s32.totalorder %s194, %s210
      %p212 = scmp.eq.s32.totalorder %s40, 0
      %p213 = por %p211, %p212
      %s214 = ssub.s32 %s34, %s41
      %p215 = scmp.eq.s32.totalorder %s214, 0
      %s217 = sadd.s32 %s216, 1
      %s218 = scalar_select %p215, %s216, %s217
      %p221 = pneg %p215
      %p222 = scmp.eq.s32.totalorder %s34, 1
      %p223 = por %p221, %p222
      %p224 = scmp.ne.s32.totalorder %s216, %s219
      %p225 = scmp.eq.s32.totalorder %s34, 0
      %p226 = por %p224, %p225
      %p227 = scmp.ne.s32.totalorder %s216, %s219
      %p228 = scmp.eq.s32.totalorder %s39, 1
      %p229 = por %p227, %p228
      %p230 = scmp.ne.s32.totalorder %s219, %s220
      %p231 = scmp.eq.s32.totalorder %s39, 0
      %p232 = por %p230, %p231
      %p233 = scmp.ne.s32.totalorder %s219, %s220
      %p234 = scmp.eq.s32.totalorder %s40, 1
      %p235 = por %p233, %p234
      %p237 = scmp.ne.s32.totalorder %s220, %s236
      %p238 = scmp.eq.s32.totalorder %s40, 0
      %p239 = por %p237, %p238
      %s240 = ssub.s32 %s34, %s41
      %p241 = scmp.eq.s32.totalorder %s240, 0
      %s243 = sadd.s32 %s242, 1
      %s244 = scalar_select %p241, %s242, %s243
      %p247 = pneg %p241
      %p248 = scmp.eq.s32.totalorder %s34, 1
      %p249 = por %p247, %p248
      %p250 = scmp.ne.s32.totalorder %s242, %s245
      %p251 = scmp.eq.s32.totalorder %s34, 0
      %p252 = por %p250, %p251
      %p253 = scmp.ne.s32.totalorder %s242, %s245
      %p254 = scmp.eq.s32.totalorder %s39, 1
      %p255 = por %p253, %p254
      %p256 = scmp.ne.s32.totalorder %s245, %s246
      %p257 = scmp.eq.s32.totalorder %s39, 0
      %p258 = por %p256, %p257
      %p259 = scmp.ne.s32.totalorder %s245, %s246
      %p260 = scmp.eq.s32.totalorder %s40, 1
      %p261 = por %p259, %p260
      %p263 = scmp.ne.s32.totalorder %s246, %s262
      %p264 = scmp.eq.s32.totalorder %s40, 0
      %p265 = por %p263, %p264
      %s266 = ssub.s32 %s34, %s41
      %p267 = scmp.eq.s32.totalorder %s266, 0
      %s269 = sadd.s32 %s268, 1
      %s270 = scalar_select %p267, %s268, %s269
      %p273 = pneg %p267
      %p274 = scmp.eq.s32.totalorder %s34, 1
      %p275 = por %p273, %p274
      %p276 = scmp.ne.s32.totalorder %s268, %s271
      %p277 = scmp.eq.s32.totalorder %s34, 0
      %p278 = por %p276, %p277
      %p279 = scmp.ne.s32.totalorder %s268, %s271
      %p280 = scmp.eq.s32.totalorder %s39, 1
      %p281 = por %p279, %p280
      %p282 = scmp.ne.s32.totalorder %s271, %s272
      %p283 = scmp.eq.s32.totalorder %s39, 0
      %p284 = por %p282, %p283
      %p285 = scmp.ne.s32.totalorder %s271, %s272
      %p286 = scmp.eq.s32.totalorder %s40, 1
      %p287 = por %p285, %p286
      %p289 = scmp.ne.s32.totalorder %s272, %s288
      %p290 = scmp.eq.s32.totalorder %s40, 0
      %p291 = por %p289, %p290
      %s292 = ssub.s32 %s34, %s41
      %p293 = scmp.eq.s32.totalorder %s292, 0
      %s295 = sadd.s32 %s294, 1
      %s296 = scalar_select %p293, %s294, %s295
      %p299 = pneg %p293
      %p300 = scmp.eq.s32.totalorder %s34, 1
      %p301 = por %p299, %p300
      %p302 = scmp.ne.s32.totalorder %s294, %s297
      %p303 = scmp.eq.s32.totalorder %s34, 0
      %p304 = por %p302, %p303
      %p305 = scmp.ne.s32.totalorder %s294, %s297
      %p306 = scmp.eq.s32.totalorder %s39, 1
      %p307 = por %p305, %p306
      %p308 = scmp.ne.s32.totalorder %s297, %s298
      %p309 = scmp.eq.s32.totalorder %s39, 0
      %p310 = por %p308, %p309
      %p311 = scmp.ne.s32.totalorder %s297, %s298
      %p312 = scmp.eq.s32.totalorder %s40, 1
      %p313 = por %p311, %p312
      %p315 = scmp.ne.s32.totalorder %s298, %s314
      %p316 = scmp.eq.s32.totalorder %s40, 0
      %p317 = por %p315, %p316
      %s318 = ssub.s32 %s34, %s41
      %p319 = scmp.eq.s32.totalorder %s318, 0
      %s321 = sadd.s32 %s320, 1
      %s322 = scalar_select %p319, %s320, %s321
      %p325 = pneg %p319
      %p326 = scmp.eq.s32.totalorder %s34, 1
      %p327 = por %p325, %p326
      %p328 = scmp.ne.s32.totalorder %s320, %s323
      %p329 = scmp.eq.s32.totalorder %s34, 0
      %p330 = por %p328, %p329
      %p331 = scmp.ne.s32.totalorder %s320, %s323
      %p332 = scmp.eq.s32.totalorder %s39, 1
      %p333 = por %p331, %p332
      %p334 = scmp.ne.s32.totalorder %s323, %s324
      %p335 = scmp.eq.s32.totalorder %s39, 0
      %p336 = por %p334, %p335
      %p337 = scmp.ne.s32.totalorder %s323, %s324
      %p338 = scmp.eq.s32.totalorder %s40, 1
      %p339 = por %p337, %p338
      %p341 = scmp.ne.s32.totalorder %s324, %s340
      %p342 = scmp.eq.s32.totalorder %s40, 0
      %p343 = por %p341, %p342
      %s344 = ssub.s32 %s34, %s41
      %p345 = scmp.eq.s32.totalorder %s344, 0
      %s347 = sadd.s32 %s346, 1
      %s348 = scalar_select %p345, %s346, %s347
      %p351 = pneg %p345
      %p352 = scmp.eq.s32.totalorder %s34, 1
      %p353 = por %p351, %p352
      %p354 = scmp.ne.s32.totalorder %s346, %s349
      %p355 = scmp.eq.s32.totalorder %s34, 0
      %p356 = por %p354, %p355
      %p357 = scmp.ne.s32.totalorder %s346, %s349
      %p358 = scmp.eq.s32.totalorder %s39, 1
      %p359 = por %p357, %p358
      %p360 = scmp.ne.s32.totalorder %s349, %s350
      %p361 = scmp.eq.s32.totalorder %s39, 0
      %p362 = por %p360, %p361
      %p363 = scmp.ne.s32.totalorder %s349, %s350
      %p364 = scmp.eq.s32.totalorder %s40, 1
      %p365 = por %p363, %p364
      %p367 = scmp.ne.s32.totalorder %s350, %s366
      %p368 = scmp.eq.s32.totalorder %s40, 0
      %p369 = por %p367, %p368
      %s370 = ssub.s32 %s34, %s41
      %p371 = scmp.eq.s32.totalorder %s370, 0
      %s373 = sadd.s32 %s372, 1
      %s374 = scalar_select %p371, %s372, %s373
      %p377 = pneg %p371
      %p378 = scmp.eq.s32.totalorder %s34, 1
      %p379 = por %p377, %p378
      %p380 = scmp.ne.s32.totalorder %s372, %s375
      %p381 = scmp.eq.s32.totalorder %s34, 0
      %p382 = por %p380, %p381
      %p383 = scmp.ne.s32.totalorder %s372, %s375
      %p384 = scmp.eq.s32.totalorder %s39, 1
      %p385 = por %p383, %p384
      %p386 = scmp.ne.s32.totalorder %s375, %s376
      %p387 = scmp.eq.s32.totalorder %s39, 0
      %p388 = por %p386, %p387
      %p389 = scmp.ne.s32.totalorder %s375, %s376
      %p390 = scmp.eq.s32.totalorder %s40, 1
      %p391 = por %p389, %p390
      %p393 = scmp.ne.s32.totalorder %s376, %s392
      %p394 = scmp.eq.s32.totalorder %s40, 0
      %p395 = por %p393, %p394
      %s397 = sadd.s32 %s396, 1
      %p400 = scmp.eq.s32.totalorder %s34, 1
      %p401 = scmp.ne.s32.totalorder %s396, %s398
      %p402 = scmp.eq.s32.totalorder %s34, 0
      %p403 = por %p401, %p402
      %p404 = scmp.ne.s32.totalorder %s396, %s398
      %p405 = scmp.eq.s32.totalorder %s39, 1
      %p406 = por %p404, %p405
      %p407 = scmp.ne.s32.totalorder %s398, %s399
      %p408 = scmp.eq.s32.totalorder %s39, 0
      %p409 = por %p407, %p408
      %p410 = scmp.ne.s32.totalorder %s398, %s399
      %p411 = scmp.eq.s32.totalorder %s40, 1
      %p412 = por %p410, %p411
      %p414 = scmp.ne.s32.totalorder %s399, %s413
      %p415 = scmp.eq.s32.totalorder %s40, 0
      %p416 = por %p414, %p415
      %s418 = sadd.s32 %s417, 1
      %p421 = scmp.eq.s32.totalorder %s34, 1
      %p422 = scmp.ne.s32.totalorder %s417, %s419
      %p423 = scmp.eq.s32.totalorder %s34, 0
      %p424 = por %p422, %p423
      %p425 = scmp.ne.s32.totalorder %s417, %s419
      %p426 = scmp.eq.s32.totalorder %s39, 1
      %p427 = por %p425, %p426
      %p428 = scmp.ne.s32.totalorder %s419, %s420
      %p429 = scmp.eq.s32.totalorder %s39, 0
      %p430 = por %p428, %p429
      %p431 = scmp.ne.s32.totalorder %s419, %s420
      %p432 = scmp.eq.s32.totalorder %s40, 1
      %p433 = por %p431, %p432
      %p435 = scmp.ne.s32.totalorder %s420, %s434
      %p436 = scmp.eq.s32.totalorder %s40, 0
      %p437 = por %p435, %p436
      %s439 = sadd.s32 %s438, 1
      %p442 = scmp.eq.s32.totalorder %s34, 1
      %p443 = scmp.ne.s32.totalorder %s438, %s440
      %p444 = scmp.eq.s32.totalorder %s34, 0
      %p445 = por %p443, %p444
      %p446 = scmp.ne.s32.totalorder %s438, %s440
      %p447 = scmp.eq.s32.totalorder %s39, 1
      %p448 = por %p446, %p447
      %p449 = scmp.ne.s32.totalorder %s440, %s441
      %p450 = scmp.eq.s32.totalorder %s39, 0
      %p451 = por %p449, %p450
      %p452 = scmp.ne.s32.totalorder %s440, %s441
      %p453 = scmp.eq.s32.totalorder %s40, 1
      %p454 = por %p452, %p453
      %p456 = scmp.ne.s32.totalorder %s441, %s455
      %p457 = scmp.eq.s32.totalorder %s40, 0
      %p458 = por %p456, %p457
      %s460 = sadd.s32 %s459, 1
      %p463 = scmp.eq.s32.totalorder %s34, 1
      %p464 = scmp.ne.s32.totalorder %s459, %s461
      %p465 = scmp.eq.s32.totalorder %s34, 0
      %p466 = por %p464, %p465
      %p467 = scmp.ne.s32.totalorder %s459, %s461
      %p468 = scmp.eq.s32.totalorder %s39, 1
      %p469 = por %p467, %p468
      %p470 = scmp.ne.s32.totalorder %s461, %s462
      %p471 = scmp.eq.s32.totalorder %s39, 0
      %p472 = por %p470, %p471
      %p473 = scmp.ne.s32.totalorder %s461, %s462
      %p474 = scmp.eq.s32.totalorder %s40, 1
      %p475 = por %p473, %p474
      %p477 = scmp.ne.s32.totalorder %s462, %s476
      %p478 = scmp.eq.s32.totalorder %s40, 0
      %p479 = por %p477, %p478
      %s481 = sadd.s32 %s480, 1
      %p484 = scmp.eq.s32.totalorder %s34, 1
      %p485 = scmp.ne.s32.totalorder %s480, %s482
      %p486 = scmp.eq.s32.totalorder %s34, 0
      %p487 = por %p485, %p486
      %p488 = scmp.ne.s32.totalorder %s480, %s482
      %p489 = scmp.eq.s32.totalorder %s39, 1
      %p490 = por %p488, %p489
      %p491 = scmp.ne.s32.totalorder %s482, %s483
      %p492 = scmp.eq.s32.totalorder %s39, 0
      %p493 = por %p491, %p492
      %p494 = scmp.ne.s32.totalorder %s482, %s483
      %p495 = scmp.eq.s32.totalorder %s40, 1
      %p496 = por %p494, %p495
      %p498 = scmp.ne.s32.totalorder %s483, %s497
      %p499 = scmp.eq.s32.totalorder %s40, 0
      %p500 = por %p498, %p499
      %p501 = scmp.le.s32.totalorder 1, %s34
      %p502 = scmp.lt.s32.totalorder %s34, 3
      %p503 = pnand %p501, %p502
      %p504 = pneg %p503
      // Predicated region
      $region9: #{pallas_forward.1} parent=5 // pred_check
        _
      $region10: #{pallas_forward.1} parent=5 // pred_check_branch
        %506 = sbr.rel (%p503) target = $region12
      $region11: #{pallas_forward.1} parent=5 // pred_region
        %s507 = ssub.s32 %s34, 1
        // Predicated region
        $region13: #{pallas_forward.1} parent=11 // pred_check
          %p508 = pneg %p55
        $region14: #{pallas_forward.1} parent=11 // pred_check_branch
          %510 = sbr.rel (%p508) target = $region16
        $region15: #{pallas_forward.1} parent=11 // pred_region
          _
        $region16: #{pallas_forward.1} parent=11 // pred_fallthru
          _
        // Predicated region
        $region17: #{pallas_forward.1} parent=11 // pred_check
          %p511 = pneg %p76
        $region18: #{pallas_forward.1} parent=11 // pred_check_branch
          %513 = sbr.rel (%p511) target = $region20
        $region19: #{pallas_forward.1} parent=11 // pred_region
          _
        $region20: #{pallas_forward.1} parent=11 // pred_fallthru
          _
        // Predicated region
        $region21: #{pallas_forward.1} parent=11 // pred_check
          %p514 = pneg %p409
        $region22: #{pallas_forward.1} parent=11 // pred_check_branch
          %516 = sbr.rel (%p514) target = $region24
        $region23: #{pallas_forward.1} parent=11 // pred_region
          _
        $region24: #{pallas_forward.1} parent=11 // pred_fallthru
          _
        // Predicated region
        $region25: #{pallas_forward.1} parent=11 // pred_check
          %p517 = pneg %p430
        $region26: #{pallas_forward.1} parent=11 // pred_check_branch
          %519 = sbr.rel (%p517) target = $region28
        $region27: #{pallas_forward.1} parent=11 // pred_region
          _
        $region28: #{pallas_forward.1} parent=11 // pred_fallthru
          _
        // Predicated region
        $region29: #{pallas_forward.1} parent=11 // pred_check
          %p520 = pneg %p451
        $region30: #{pallas_forward.1} parent=11 // pred_check_branch
          %522 = sbr.rel (%p520) target = $region32
        $region31: #{pallas_forward.1} parent=11 // pred_region
          %524 = vsyncadd [#allocation11], 0
          %s525 = sshll.u32 %s16, 4
          %s526 = int_to_ptr.hbm [resolvable:$true] %s525
          %s527 = sshll.u32 [#allocation12], 4
          %s528 = int_to_ptr.vmem [resolvable:$true] %s527
          %533 = dma.hbm_to_vmem [thread:$0]  %s526, 8192, %s528, [#allocation11], 256, 256, 16
        $region32: #{pallas_forward.1} parent=11 // pred_fallthru
          _
        // Predicated region
        $region33: #{pallas_forward.1} parent=11 // pred_check
          %p534 = pneg %p472
        $region34: #{pallas_forward.1} parent=11 // pred_check_branch
          %536 = sbr.rel (%p534) target = $region36
        $region35: #{pallas_forward.1} parent=11 // pred_region
          _
        $region36: #{pallas_forward.1} parent=11 // pred_fallthru
          _
      $region12: #{pallas_forward.1} parent=5 // pred_fallthru
        _
      %p537 = scmp.lt.s32.totalorder %s34, 2
      // Predicated region
      $region37: #{pallas_forward.1} parent=5 // pred_check
        %p538 = pneg %p537
      $region38: #{pallas_forward.1} parent=5 // pred_check_branch
        %540 = sbr.rel (%p538) target = $region40
      $region39: #{pallas_forward.1} parent=5 // pred_region
        // Predicated region
        $region41: #{pallas_forward.1} parent=39 // pred_check
          %p541 = pneg %p96
        $region42: #{pallas_forward.1} parent=39 // pred_check_branch
          %543 = sbr.rel (%p541) target = $region44
        $region43: #{pallas_forward.1} parent=39 // pred_region
          %p544 = scmp.lt.s32.totalorder %s34, 1
          %s545 = scalar_select %p544, %s34, 1
          %s546 = smul.addr %s545, 2
          %s547 = scalar_lea.vmem %s2, %s546
        $region44: #{pallas_forward.1} parent=39 // pred_fallthru
          _
        // Predicated region
        $region45: #{pallas_forward.1} parent=39 // pred_check
          %p548 = pneg %p122
        $region46: #{pallas_forward.1} parent=39 // pred_check_branch
          %550 = sbr.rel (%p548) target = $region48
        $region47: #{pallas_forward.1} parent=39 // pred_region
          %p551 = scmp.lt.s32.totalorder %s34, 1
          %s552 = scalar_select %p551, %s34, 1
          %s553 = smul.addr %s552, 2
          %s554 = scalar_lea.vmem %s3, %s553
        $region48: #{pallas_forward.1} parent=39 // pred_fallthru
          _
        // Predicated region
        $region49: #{pallas_forward.1} parent=39 // pred_check
          %p555 = pneg %p148
        $region50: #{pallas_forward.1} parent=39 // pred_check_branch
          %557 = sbr.rel (%p555) target = $region52
        $region51: #{pallas_forward.1} parent=39 // pred_region
          %s558 = sand.u32 %s138, 1
          %s559 = scalar_lea.sflag [#allocation5], %s558
          %s560 = sand.u32 %s138, 1
          %s561 = smul.addr %s560, 768
          %s562 = scalar_lea.vmem [#allocation4], %s561
          %564 = vsyncadd %s559, 0
          %s565 = smul.addr %s34, 192
          %s566 = smul.addr %s565, 4
          %s567 = scalar_lea.hbm %s4, %s566
          %s568 = sshll.u32 %s567, 4
          %s569 = int_to_ptr.hbm [resolvable:$true] %s568
          %s570 = sshll.u32 %s562, 4
          %s571 = int_to_ptr.vmem [resolvable:$true] %s570
          %576 = dma.hbm_to_vmem [thread:$0]  %s569, 12288, %s571, %s559, 384, 384, 24
        $region52: #{pallas_forward.1} parent=39 // pred_fallthru
          _
        // Predicated region
        $region53: #{pallas_forward.1} parent=39 // pred_check
          %p577 = pneg %p174
        $region54: #{pallas_forward.1} parent=39 // pred_check_branch
          %579 = sbr.rel (%p577) target = $region56
        $region55: #{pallas_forward.1} parent=39 // pred_region
          %p580 = scmp.lt.s32.totalorder %s34, 1
          %s581 = scalar_select %p580, %s34, 1
          %s582 = smul.addr %s581, 6
          %s583 = scalar_lea.vmem %s5, %s582
        $region56: #{pallas_forward.1} parent=39 // pred_fallthru
          _
        // Predicated region
        $region57: #{pallas_forward.1} parent=39 // pred_check
          %p584 = pneg %p200
        $region58: #{pallas_forward.1} parent=39 // pred_check_branch
          %586 = sbr.rel (%p584) target = $region60
        $region59: #{pallas_forward.1} parent=39 // pred_region
          %s587 = sand.u32 %s34, 1
          %s588 = scalar_lea.sflag [#allocation8], %s587
          %s589 = sand.u32 %s190, 1
          %s590 = smul.addr %s589, 256
          %s591 = scalar_lea.vmem [#allocation7], %s590
          %593 = vsyncadd %s588, 0
          %s594 = smul.addr %s34, 64
          %s595 = smul.addr %s594, 4
          %s596 = scalar_lea.hbm %s6, %s595
          %s597 = sshll.u32 %s596, 4
          %s598 = int_to_ptr.hbm [resolvable:$true] %s597
          %s599 = sshll.u32 %s591, 4
          %s600 = int_to_ptr.vmem [resolvable:$true] %s599
          %605 = dma.hbm_to_vmem [thread:$0]  %s598, 4096, %s600, %s588, 128, 128, 8
        $region60: #{pallas_forward.1} parent=39 // pred_fallthru
          _
        // Predicated region
        $region61: #{pallas_forward.1} parent=39 // pred_check
          %p606 = pneg %p226
        $region62: #{pallas_forward.1} parent=39 // pred_check_branch
          %608 = sbr.rel (%p606) target = $region64
        $region63: #{pallas_forward.1} parent=39 // pred_region
          %p609 = scmp.lt.s32.totalorder %s34, 1
          %s610 = scalar_select %p609, %s34, 1
          %s611 = smul.addr %s610, 2
          %s612 = scalar_lea.vmem %s7, %s611
        $region64: #{pallas_forward.1} parent=39 // pred_fallthru
          _
        // Predicated region
        $region65: #{pallas_forward.1} parent=39 // pred_check
          %p613 = pneg %p252
        $region66: #{pallas_forward.1} parent=39 // pred_check_branch
          %615 = sbr.rel (%p613) target = $region68
        $region67: #{pallas_forward.1} parent=39 // pred_region
          %p616 = scmp.lt.s32.totalorder %s34, 1
          %s617 = scalar_select %p616, %s34, 1
          %s618 = smul.addr %s617, 2
          %s619 = scalar_lea.vmem %s8, %s618
        $region68: #{pallas_forward.1} parent=39 // pred_fallthru
          _
        // Predicated region
        $region69: #{pallas_forward.1} parent=39 // pred_check
          %p620 = pneg %p278
        $region70: #{pallas_forward.1} parent=39 // pred_check_branch
          %622 = sbr.rel (%p620) target = $region72
        $region71: #{pallas_forward.1} parent=39 // pred_region
          %p623 = scmp.lt.s32.totalorder %s34, 1
          %s624 = scalar_select %p623, %s34, 1
          %s625 = smul.addr %s624, 2
          %s626 = scalar_lea.vmem %s9, %s625
        $region72: #{pallas_forward.1} parent=39 // pred_fallthru
          _
        // Predicated region
        $region73: #{pallas_forward.1} parent=39 // pred_check
          %p627 = pneg %p304
        $region74: #{pallas_forward.1} parent=39 // pred_check_branch
          %629 = sbr.rel (%p627) target = $region76
        $region75: #{pallas_forward.1} parent=39 // pred_region
          %s630 = sand.u32 %s34, 1
          %s631 = scalar_lea.sflag [#allocation8], %s630
          %s632 = sand.u32 %s294, 1
          %s633 = smul.addr %s632, 1024
          %s634 = scalar_lea.vmem [#allocation9], %s633
          %636 = vsyncadd %s631, 0
          %s637 = smul.addr %s34, 256
          %s638 = smul.addr %s637, 4
          %s639 = scalar_lea.hbm %s10, %s638
          %s640 = sshll.u32 %s639, 4
          %s641 = int_to_ptr.hbm [resolvable:$true] %s640
          %s642 = sshll.u32 %s634, 4
          %s643 = int_to_ptr.vmem [resolvable:$true] %s642
          %648 = dma.hbm_to_vmem [thread:$0]  %s641, 16384, %s643, %s631, 512, 512, 32
        $region76: #{pallas_forward.1} parent=39 // pred_fallthru
          _
        // Predicated region
        $region77: #{pallas_forward.1} parent=39 // pred_check
          %p649 = pneg %p330
        $region78: #{pallas_forward.1} parent=39 // pred_check_branch
          %651 = sbr.rel (%p649) target = $region80
        $region79: #{pallas_forward.1} parent=39 // pred_region
          %p652 = scmp.lt.s32.totalorder %s34, 1
          %s653 = scalar_select %p652, %s34, 1
          %s654 = smul.addr %s653, 8
          %s655 = scalar_lea.vmem %s11, %s654
        $region80: #{pallas_forward.1} parent=39 // pred_fallthru
          _
        // Predicated region
        $region81: #{pallas_forward.1} parent=39 // pred_check
          %p656 = pneg %p356
        $region82: #{pallas_forward.1} parent=39 // pred_check_branch
          %658 = sbr.rel (%p656) target = $region84
        $region83: #{pallas_forward.1} parent=39 // pred_region
          %s659 = sand.u32 %s34, 1
          %s660 = scalar_lea.sflag [#allocation11], %s659
          %s661 = sand.u32 %s346, 1
          %s662 = smul.addr %s661, 1024
          %s663 = scalar_lea.vmem [#allocation10], %s662
          %665 = vsyncadd %s660, 0
          %s666 = smul.addr %s34, 256
          %s667 = smul.addr %s666, 4
          %s668 = scalar_lea.hbm %s12, %s667
          %s669 = sshll.u32 %s668, 4
          %s670 = int_to_ptr.hbm [resolvable:$true] %s669
          %s671 = sshll.u32 %s663, 4
          %s672 = int_to_ptr.vmem [resolvable:$true] %s671
          %677 = dma.hbm_to_vmem [thread:$0]  %s670, 16384, %s672, %s660, 128, 128, 8
        $region84: #{pallas_forward.1} parent=39 // pred_fallthru
          _
        // Predicated region
        $region85: #{pallas_forward.1} parent=39 // pred_check
          %p678 = pneg %p382
        $region86: #{pallas_forward.1} parent=39 // pred_check_branch
          %680 = sbr.rel (%p678) target = $region88
        $region87: #{pallas_forward.1} parent=39 // pred_region
          %p681 = scmp.lt.s32.totalorder %s34, 1
          %s682 = scalar_select %p681, %s34, 1
          %s683 = smul.addr %s682, 2
          %s684 = scalar_lea.vmem %s13, %s683
        $region88: #{pallas_forward.1} parent=39 // pred_fallthru
          _
      $region40: #{pallas_forward.1} parent=5 // pred_fallthru
        _
      %p685 = scmp.le.s32.totalorder 1, %s34
      %p686 = scmp.lt.s32.totalorder %s34, 3
      %p687 = pnand %p685, %p686
      %p688 = pneg %p687
      // Predicated region
      $region89: #{pallas_forward.1} parent=5 // pred_check
        _
      $region90: #{pallas_forward.1} parent=5 // pred_check_branch
        %690 = sbr.rel (%p687) target = $region92
      $region91: #{pallas_forward.1} parent=5 // pred_region
        %s691 = ssub.s32 %s34, 1
        %s692 = sand.u32 %s141, 1
        %s693 = scalar_lea.sflag [#allocation5], %s692
        %s694 = sand.u32 %s141, 1
        %s695 = smul.addr %s694, 768
        %s696 = scalar_lea.vmem [#allocation4], %s695
        // Predicated region
        $region93: #{pallas_forward.1} parent=91 // pred_check
          %p697 = pneg %p154
        $region94: #{pallas_forward.1} parent=91 // pred_check_branch
          %699 = sbr.rel (%p697) target = $region96
        $region95: #{pallas_forward.1} parent=91 // pred_region
          %701 = dma.done %s693, 12288
        $region96: #{pallas_forward.1} parent=91 // pred_fallthru
          _
        %s702 = sand.u32 %s39, 1
        %s703 = scalar_lea.sflag [#allocation8], %s702
        %s704 = sand.u32 %s193, 1
        %s705 = smul.addr %s704, 256
        %s706 = scalar_lea.vmem [#allocation7], %s705
        // Predicated region
        $region97: #{pallas_forward.1} parent=91 // pred_check
          %p707 = pneg %p206
        $region98: #{pallas_forward.1} parent=91 // pred_check_branch
          %709 = sbr.rel (%p707) target = $region100
        $region99: #{pallas_forward.1} parent=91 // pred_region
          %711 = dma.done %s703, 4096
        $region100: #{pallas_forward.1} parent=91 // pred_fallthru
          _
        %s712 = sand.u32 %s39, 1
        %s713 = scalar_lea.sflag [#allocation8], %s712
        %s714 = sand.u32 %s297, 1
        %s715 = smul.addr %s714, 1024
        %s716 = scalar_lea.vmem [#allocation9], %s715
        // Predicated region
        $region101: #{pallas_forward.1} parent=91 // pred_check
          %p717 = pneg %p310
        $region102: #{pallas_forward.1} parent=91 // pred_check_branch
          %719 = sbr.rel (%p717) target = $region104
        $region103: #{pallas_forward.1} parent=91 // pred_region
          %721 = dma.done %s713, 16384
        $region104: #{pallas_forward.1} parent=91 // pred_fallthru
          _
        %s722 = sand.u32 %s39, 1
        %s723 = scalar_lea.sflag [#allocation11], %s722
        %s724 = sand.u32 %s349, 1
        %s725 = smul.addr %s724, 1024
        %s726 = scalar_lea.vmem [#allocation10], %s725
        // Predicated region
        $region105: #{pallas_forward.1} parent=91 // pred_check
          %p727 = pneg %p362
        $region106: #{pallas_forward.1} parent=91 // pred_check_branch
          %729 = sbr.rel (%p727) target = $region108
        $region107: #{pallas_forward.1} parent=91 // pred_region
          %731 = dma.done %s723, 16384
        $region108: #{pallas_forward.1} parent=91 // pred_fallthru
          _
        // Predicated region
        $region109: #{pallas_forward.1} parent=91 // pred_check
          %p732 = pneg %p451
        $region110: #{pallas_forward.1} parent=91 // pred_check_branch
          %734 = sbr.rel (%p732) target = $region112
        $region111: #{pallas_forward.1} parent=91 // pred_region
          %736 = dma.done [#allocation11], 8192
        $region112: #{pallas_forward.1} parent=91 // pred_fallthru
          _
        %p737 = pneg %p55
        %p738 = pneg %p52
        %p739 = pneg %p76
        %p740 = pneg %p73
        %p741 = scmp.lt.s32.totalorder %s39, 1
        %s742 = scalar_select %p741, %s39, 1
        %s743 = smul.addr %s742, 2
        %s744 = scalar_lea.vmem %s2, %s743
        %p745 = pneg %p102
        %p746 = pneg %p99
        %p747 = scmp.lt.s32.totalorder %s39, 1
        %s748 = scalar_select %p747, %s39, 1
        %s749 = smul.addr %s748, 2
        %s750 = scalar_lea.vmem %s3, %s749
        %p751 = pneg %p128
        %p752 = pneg %p125
        %s753 = sand.u32 %s141, 1
        %s754 = scalar_lea.sflag [#allocation5], %s753
        %s755 = sand.u32 %s141, 1
        %s756 = smul.addr %s755, 768
        %s757 = scalar_lea.vmem [#allocation4], %s756
        %p758 = pneg %p154
        %p759 = pneg %p151
        %p760 = scmp.lt.s32.totalorder %s39, 1
        %s761 = scalar_select %p760, %s39, 1
        %s762 = smul.addr %s761, 6
        %s763 = scalar_lea.vmem %s5, %s762
        %p764 = pneg %p180
        %p765 = pneg %p177
        %s766 = sand.u32 %s39, 1
        %s767 = scalar_lea.sflag [#allocation8], %s766
        %s768 = sand.u32 %s193, 1
        %s769 = smul.addr %s768, 256
        %s770 = scalar_lea.vmem [#allocation7], %s769
        %p771 = pneg %p206
        %p772 = pneg %p203
        %p773 = scmp.lt.s32.totalorder %s39, 1
        %s774 = scalar_select %p773, %s39, 1
        %s775 = smul.addr %s774, 2
        %s776 = scalar_lea.vmem %s7, %s775
        %p777 = pneg %p232
        %p778 = pneg %p229
        %p779 = scmp.lt.s32.totalorder %s39, 1
        %s780 = scalar_select %p779, %s39, 1
        %s781 = smul.addr %s780, 2
        %s782 = scalar_lea.vmem %s8, %s781
        %p783 = pneg %p258
        %p784 = pneg %p255
        %p785 = scmp.lt.s32.totalorder %s39, 1
        %s786 = scalar_select %p785, %s39, 1
        %s787 = smul.addr %s786, 2
        %s788 = scalar_lea.vmem %s9, %s787
        %p789 = pneg %p284
        %p790 = pneg %p281
        %s791 = sand.u32 %s39, 1
        %s792 = scalar_lea.sflag [#allocation8], %s791
        %s793 = sand.u32 %s297, 1
        %s794 = smul.addr %s793, 1024
        %s795 = scalar_lea.vmem [#allocation9], %s794
        %p796 = pneg %p310
        %p797 = pneg %p307
        %p798 = scmp.lt.s32.totalorder %s39, 1
        %s799 = scalar_select %p798, %s39, 1
        %s800 = smul.addr %s799, 8
        %s801 = scalar_lea.vmem %s11, %s800
        %p802 = pneg %p336
        %p803 = pneg %p333
        %s804 = sand.u32 %s39, 1
        %s805 = scalar_lea.sflag [#allocation11], %s804
        %s806 = sand.u32 %s349, 1
        %s807 = smul.addr %s806, 1024
        %s808 = scalar_lea.vmem [#allocation10], %s807
        %p809 = pneg %p362
        %p810 = pneg %p359
        %p811 = scmp.lt.s32.totalorder %s39, 1
        %s812 = scalar_select %p811, %s39, 1
        %s813 = smul.addr %s812, 2
        %s814 = scalar_lea.vmem %s13, %s813
        %p815 = pneg %p388
        %p816 = pneg %p385
        %p817 = pneg %p409
        %p818 = pneg %p406
        %p819 = pneg %p430
        %p820 = pneg %p427
        %p821 = pneg %p451
        %p822 = pneg %p448
        %p823 = pneg %p472
        %p824 = pneg %p469
        %p825 = pneg %p493
        %p826 = pneg %p490
        %p827 = scmp.lt.s32.totalorder %s39, 1
        %s828 = scalar_select %p827, %s39, 1
        %s829 = smul.addr %s828, 2
        %s830 = scalar_lea.vmem %s2, %s829
        %p831 = scmp.lt.s32.totalorder %s39, 1
        %s832 = scalar_select %p831, %s39, 1
        %s833 = smul.addr %s832, 2
        %s834 = scalar_lea.vmem %s3, %s833
        %p835 = scmp.lt.s32.totalorder %s39, 1
        %s836 = scalar_select %p835, %s39, 1
        %s837 = smul.addr %s836, 6
        %s838 = scalar_lea.vmem %s5, %s837
        %p839 = scmp.lt.s32.totalorder %s39, 1
        %s840 = scalar_select %p839, %s39, 1
        %s841 = smul.addr %s840, 2
        %s842 = scalar_lea.vmem %s7, %s841
        %p843 = scmp.lt.s32.totalorder %s39, 1
        %s844 = scalar_select %p843, %s39, 1
        %s845 = smul.addr %s844, 2
        %s846 = scalar_lea.vmem %s8, %s845
        %p847 = scmp.lt.s32.totalorder %s39, 1
        %s848 = scalar_select %p847, %s39, 1
        %s849 = smul.addr %s848, 2
        %s850 = scalar_lea.vmem %s9, %s849
        %p851 = scmp.lt.s32.totalorder %s39, 1
        %s852 = scalar_select %p851, %s39, 1
        %s853 = smul.addr %s852, 8
        %s854 = scalar_lea.vmem %s11, %s853
        %p855 = scmp.lt.s32.totalorder %s39, 1
        %s856 = scalar_select %p855, %s39, 1
        %s857 = smul.addr %s856, 2
        %s858 = scalar_lea.vmem %s13, %s857
        %p859 = scmp.eq.s32.totalorder %s39, 0
        // Predicated region
        $region113: #{pallas_forward.1} parent=91 // pred_check
          %p860 = pneg %p859
        $region114: #{pallas_forward.1} parent=91 // pred_check_branch
          %862 = sbr.rel (%p860) target = $region116
        $region115: #{pallas_forward.1} parent=91 // pred_region
          %v863 = vld [vmem:[%s0] sm:$0xff]
          %v864 = vld [vmem:[%s0 + $0x8] sm:$0xff]
          %v865 = vld [vmem:[%s0 + $0x10] sm:$0xff]
          %v866 = vld [vmem:[%s0 + $0x18] sm:$0xff]
          %867 = vst [vmem:[#allocation2] sm:$0xff] %v863
          %868 = vst [vmem:[#allocation2 + $0x8] sm:$0xff] %v864
          %869 = vst [vmem:[#allocation2 + $0x10] sm:$0xff] %v865
          %870 = vst [vmem:[#allocation2 + $0x18] sm:$0xff] %v866
        $region116: #{pallas_forward.1} parent=91 // pred_fallthru
          _
        %v871 = vld [vmem:[#allocation2] sm:$0xff]
        %v872 = vld [vmem:[#allocation2 + $0x8] sm:$0xff]
        %v873 = vld [vmem:[#allocation2 + $0x10] sm:$0xff]
        %v874 = vld [vmem:[#allocation2 + $0x18] sm:$0xff]
        %v875 = vld [vmem:[%s830] sm:$0x3]
        %v876 = vld [vmem:[%s834] sm:$0x3]
        %v877 = vadd.f32 %v871, %v872
        %878 = vadd.xlane.f32.xlu0 %v877
        %v879 = vpop.xlane.xlu0 %878
        %v880 = vadd.f32 %v873, %v874
        %881 = vadd.xlane.f32.xlu0 %v880
        %v882 = vpop.xlane.xlu0 %881
        %v883 = vrcp.pop 256.0
        %v884 = vmul.f32 256.0, %v883
        %v885 = vsub.f32 1.0, %v884
        %v886 = vmul.f32 %v883, %v885
        %v887 = vadd.f32 %v883, %v886
        %vm888 = vweird.f32 %v883
        %v889 = vsel %vm888, %v883, %v887
        %v890 = vmul.f32 %v879, %v889
        %v891 = vmul.f32 %v882, %v889
        %v892 = vsub.f32 %v871, %v890
        %v893 = vsub.f32 %v872, %v890
        %v894 = vsub.f32 %v873, %v891
        %v895 = vsub.f32 %v874, %v891
        %v896 = vmul.f32 %v892, %v892
        %v897 = vmul.f32 %v893, %v893
        %v898 = vmul.f32 %v894, %v894
        %v899 = vmul.f32 %v895, %v895
        %v900 = vadd.f32 %v896, %v897
        %901 = vadd.xlane.f32.xlu0 %v900
        %v902 = vpop.xlane.xlu0 %901
        %v903 = vadd.f32 %v898, %v899
        %904 = vadd.xlane.f32.xlu0 %v903
        %v905 = vpop.xlane.xlu0 %904
        %v906 = vmul.f32 %v902, %v889
        %v907 = vmul.f32 %v905, %v889
        %v908 = vadd.f32 %v906, 1e-05
        %v909 = vadd.f32 %v907, 1e-05
        %v910 = vrsqrt.pop %v908
        %v911 = vmul.f32 %v910, %v908
        %v912 = vmul.f32 %v911, %v910
        %v913 = vmul.f32 0.5, %v912
        %v914 = vsub.f32 1.5, %v913
        %v915 = vmul.f32 %v910, %v914
        %vm916 = vweird.f32 %v908
        %vm917 = vweird.f32 %v910
        %vm918 = vmor %vm916, %vm917
        %v919 = vsel %vm918, %v910, %v915
        %v920 = vrsqrt.pop %v909
        %v921 = vmul.f32 %v920, %v909
        %v922 = vmul.f32 %v921, %v920
        %v923 = vmul.f32 0.5, %v922
        %v924 = vsub.f32 1.5, %v923
        %v925 = vmul.f32 %v920, %v924
        %vm926 = vweird.f32 %v909
        %vm927 = vweird.f32 %v920
        %vm928 = vmor %vm926, %vm927
        %v929 = vsel %vm928, %v920, %v925
        %v930 = vmul.f32 %v892, %v919
        %v931 = vmul.f32 %v893, %v919
        %v932 = vmul.f32 %v894, %v929
        %v933 = vmul.f32 %v895, %v929
        %v935 = vperm.slane %v875, 0
        %v936 = vperm.slane %v875, 1
        %v939 = vmul.f32 %v930, %v935
        %v940 = vmul.f32 %v931, %v936
        %v941 = vmul.f32 %v932, %v935
        %v942 = vmul.f32 %v933, %v936
        %v944 = vperm.slane %v876, 0
        %v945 = vperm.slane %v876, 1
        %v948 = vadd.f32 %v939, %v944
        %v949 = vadd.f32 %v940, %v945
        %v950 = vadd.f32 %v941, %v944
        %v951 = vadd.f32 %v942, %v945
        %v952 = vpack.c.bf16 %v950, %v948
        %v953 = vpack.c.bf16 %v951, %v949
        %v954 = vld [vmem:[%s696] sm:$0xff]
        %v955 = vld [vmem:[%s696 + $0x8] sm:$0xff]
        %v956 = vld [vmem:[%s696 + $0x10] sm:$0xff]
        %v957 = vld [vmem:[%s696 + $0x18] sm:$0xff]
        %v958 = vld [vmem:[%s696 + $0x20] sm:$0xff]
        %v959 = vld [vmem:[%s696 + $0x28] sm:$0xff]
        %v960 = vld [vmem:[%s696 + $0x30] sm:$0xff]
        %v961 = vld [vmem:[%s696 + $0x38] sm:$0xff]
        %v962 = vld [vmem:[%s696 + $0x40] sm:$0xff]
        %v963 = vld [vmem:[%s696 + $0x48] sm:$0xff]
        %v964 = vld [vmem:[%s696 + $0x50] sm:$0xff]
        %v965 = vld [vmem:[%s696 + $0x58] sm:$0xff]
        %v966 = vld [vmem:[%s696 + $0x60] sm:$0xff]
        %v967 = vld [vmem:[%s696 + $0x68] sm:$0xff]
        %v968 = vld [vmem:[%s696 + $0x70] sm:$0xff]
        %v969 = vld [vmem:[%s696 + $0x78] sm:$0xff]
        %v970 = vld [vmem:[%s696 + $0x80] sm:$0xff]
        %v971 = vld [vmem:[%s696 + $0x88] sm:$0xff]
        %v972 = vld [vmem:[%s696 + $0x90] sm:$0xff]
        %v973 = vld [vmem:[%s696 + $0x98] sm:$0xff]
        %v974 = vld [vmem:[%s696 + $0xa0] sm:$0xff]
        %v975 = vld [vmem:[%s696 + $0xa8] sm:$0xff]
        %v976 = vld [vmem:[%s696 + $0xb0] sm:$0xff]
        %v977 = vld [vmem:[%s696 + $0xb8] sm:$0xff]
        %v978 = vld [vmem:[%s696 + $0xc0] sm:$0xff]
        %v979 = vld [vmem:[%s696 + $0xc8] sm:$0xff]
        %v980 = vld [vmem:[%s696 + $0xd0] sm:$0xff]
        %v981 = vld [vmem:[%s696 + $0xd8] sm:$0xff]
        %v982 = vld [vmem:[%s696 + $0xe0] sm:$0xff]
        %v983 = vld [vmem:[%s696 + $0xe8] sm:$0xff]
        %v984 = vld [vmem:[%s696 + $0xf0] sm:$0xff]
        %v985 = vld [vmem:[%s696 + $0xf8] sm:$0xff]
        %v986 = vld [vmem:[%s696 + $0x100] sm:$0xff]
        %v987 = vld [vmem:[%s696 + $0x108] sm:$0xff]
        %v988 = vld [vmem:[%s696 + $0x110] sm:$0xff]
        %v989 = vld [vmem:[%s696 + $0x118] sm:$0xff]
        %v990 = vld [vmem:[%s696 + $0x120] sm:$0xff]
        %v991 = vld [vmem:[%s696 + $0x128] sm:$0xff]
        %v992 = vld [vmem:[%s696 + $0x130] sm:$0xff]
        %v993 = vld [vmem:[%s696 + $0x138] sm:$0xff]
        %v994 = vld [vmem:[%s696 + $0x140] sm:$0xff]
        %v995 = vld [vmem:[%s696 + $0x148] sm:$0xff]
        %v996 = vld [vmem:[%s696 + $0x150] sm:$0xff]
        %v997 = vld [vmem:[%s696 + $0x158] sm:$0xff]
        %v998 = vld [vmem:[%s696 + $0x160] sm:$0xff]
        %v999 = vld [vmem:[%s696 + $0x168] sm:$0xff]
        %v1000 = vld [vmem:[%s696 + $0x170] sm:$0xff]
        %v1001 = vld [vmem:[%s696 + $0x178] sm:$0xff]
        %v1002 = vld [vmem:[%s696 + $0x180] sm:$0xff]
        %v1003 = vld [vmem:[%s696 + $0x188] sm:$0xff]
        %v1004 = vld [vmem:[%s696 + $0x190] sm:$0xff]
        %v1005 = vld [vmem:[%s696 + $0x198] sm:$0xff]
        %v1006 = vld [vmem:[%s696 + $0x1a0] sm:$0xff]
        %v1007 = vld [vmem:[%s696 + $0x1a8] sm:$0xff]
        %v1008 = vld [vmem:[%s696 + $0x1b0] sm:$0xff]
        %v1009 = vld [vmem:[%s696 + $0x1b8] sm:$0xff]
        %v1010 = vld [vmem:[%s696 + $0x1c0] sm:$0xff]
        %v1011 = vld [vmem:[%s696 + $0x1c8] sm:$0xff]
        %v1012 = vld [vmem:[%s696 + $0x1d0] sm:$0xff]
        %v1013 = vld [vmem:[%s696 + $0x1d8] sm:$0xff]
        %v1014 = vld [vmem:[%s696 + $0x1e0] sm:$0xff]
        %v1015 = vld [vmem:[%s696 + $0x1e8] sm:$0xff]
        %v1016 = vld [vmem:[%s696 + $0x1f0] sm:$0xff]
        %v1017 = vld [vmem:[%s696 + $0x1f8] sm:$0xff]
        %v1018 = vld [vmem:[%s696 + $0x200] sm:$0xff]
        %v1019 = vld [vmem:[%s696 + $0x208] sm:$0xff]
        %v1020 = vld [vmem:[%s696 + $0x210] sm:$0xff]
        %v1021 = vld [vmem:[%s696 + $0x218] sm:$0xff]
        %v1022 = vld [vmem:[%s696 + $0x220] sm:$0xff]
        %v1023 = vld [vmem:[%s696 + $0x228] sm:$0xff]
        %v1024 = vld [vmem:[%s696 + $0x230] sm:$0xff]
        %v1025 = vld [vmem:[%s696 + $0x238] sm:$0xff]
        %v1026 = vld [vmem:[%s696 + $0x240] sm:$0xff]
        %v1027 = vld [vmem:[%s696 + $0x248] sm:$0xff]
        %v1028 = vld [vmem:[%s696 + $0x250] sm:$0xff]
        %v1029 = vld [vmem:[%s696 + $0x258] sm:$0xff]
        %v1030 = vld [vmem:[%s696 + $0x260] sm:$0xff]
        %v1031 = vld [vmem:[%s696 + $0x268] sm:$0xff]
        %v1032 = vld [vmem:[%s696 + $0x270] sm:$0xff]
        %v1033 = vld [vmem:[%s696 + $0x278] sm:$0xff]
        %v1034 = vld [vmem:[%s696 + $0x280] sm:$0xff]
        %v1035 = vld [vmem:[%s696 + $0x288] sm:$0xff]
        %v1036 = vld [vmem:[%s696 + $0x290] sm:$0xff]
        %v1037 = vld [vmem:[%s696 + $0x298] sm:$0xff]
        %v1038 = vld [vmem:[%s696 + $0x2a0] sm:$0xff]
        %v1039 = vld [vmem:[%s696 + $0x2a8] sm:$0xff]
        %v1040 = vld [vmem:[%s696 + $0x2b0] sm:$0xff]
        %v1041 = vld [vmem:[%s696 + $0x2b8] sm:$0xff]
        %v1042 = vld [vmem:[%s696 + $0x2c0] sm:$0xff]
        %v1043 = vld [vmem:[%s696 + $0x2c8] sm:$0xff]
        %v1044 = vld [vmem:[%s696 + $0x2d0] sm:$0xff]
        %v1045 = vld [vmem:[%s696 + $0x2d8] sm:$0xff]
        %v1046 = vld [vmem:[%s696 + $0x2e0] sm:$0xff]
        %v1047 = vld [vmem:[%s696 + $0x2e8] sm:$0xff]
        %v1048 = vld [vmem:[%s696 + $0x2f0] sm:$0xff]
        %v1049 = vld [vmem:[%s696 + $0x2f8] sm:$0xff]
        %v1050 = vld [vmem:[%s838] sm:$0x3f]
        %v1052 = vperm.slane %v1050, 0
        %v1053 = vperm.slane %v1050, 1
        %v1054 = vperm.slane %v1050, 2
        %v1055 = vperm.slane %v1050, 3
        %v1056 = vperm.slane %v1050, 4
        %v1057 = vperm.slane %v1050, 5
        %v1160 = vunpack.c.l.b16 %v954
        %v1161 = vunpack.c.h.b16 %v954
        %v1162 = vunpack.c.l.b16 %v955
        %v1163 = vunpack.c.h.b16 %v955
        %v1164 = vunpack.c.l.b16 %v956
        %v1165 = vunpack.c.h.b16 %v956
        %v1166 = vunpack.c.l.b16 %v957
        %v1167 = vunpack.c.h.b16 %v957
        %v1168 = vunpack.c.l.b16 %v958
        %v1169 = vunpack.c.h.b16 %v958
        %v1170 = vunpack.c.l.b16 %v959
        %v1171 = vunpack.c.h.b16 %v959
        %v1172 = vunpack.c.l.b16 %v960
        %v1173 = vunpack.c.h.b16 %v960
        %v1174 = vunpack.c.l.b16 %v961
        %v1175 = vunpack.c.h.b16 %v961
        %v1176 = vunpack.c.l.b16 %v962
        %v1177 = vunpack.c.h.b16 %v962
        %v1178 = vunpack.c.l.b16 %v963
        %v1179 = vunpack.c.h.b16 %v963
        %v1180 = vunpack.c.l.b16 %v964
        %v1181 = vunpack.c.h.b16 %v964
        %v1182 = vunpack.c.l.b16 %v965
        %v1183 = vunpack.c.h.b16 %v965
        %v1184 = vunpack.c.l.b16 %v966
        %v1185 = vunpack.c.h.b16 %v966
        %v1186 = vunpack.c.l.b16 %v967
        %v1187 = vunpack.c.h.b16 %v967
        %v1188 = vunpack.c.l.b16 %v968
        %v1189 = vunpack.c.h.b16 %v968
        %v1190 = vunpack.c.l.b16 %v969
        %v1191 = vunpack.c.h.b16 %v969
        %v1192 = vunpack.c.l.b16 %v970
        %v1193 = vunpack.c.h.b16 %v970
        %v1194 = vunpack.c.l.b16 %v971
        %v1195 = vunpack.c.h.b16 %v971
        %v1196 = vunpack.c.l.b16 %v972
        %v1197 = vunpack.c.h.b16 %v972
        %v1198 = vunpack.c.l.b16 %v973
        %v1199 = vunpack.c.h.b16 %v973
        %v1200 = vunpack.c.l.b16 %v974
        %v1201 = vunpack.c.h.b16 %v974
        %v1202 = vunpack.c.l.b16 %v975
        %v1203 = vunpack.c.h.b16 %v975
        %v1204 = vunpack.c.l.b16 %v976
        %v1205 = vunpack.c.h.b16 %v976
        %v1206 = vunpack.c.l.b16 %v977
        %v1207 = vunpack.c.h.b16 %v977
        %v1208 = vunpack.c.l.b16 %v978
        %v1209 = vunpack.c.h.b16 %v978
        %v1210 = vunpack.c.l.b16 %v979
        %v1211 = vunpack.c.h.b16 %v979
        %v1212 = vunpack.c.l.b16 %v980
        %v1213 = vunpack.c.h.b16 %v980
        %v1214 = vunpack.c.l.b16 %v981
        %v1215 = vunpack.c.h.b16 %v981
        %v1216 = vunpack.c.l.b16 %v982
        %v1217 = vunpack.c.h.b16 %v982
        %v1218 = vunpack.c.l.b16 %v983
        %v1219 = vunpack.c.h.b16 %v983
        %v1220 = vunpack.c.l.b16 %v984
        %v1221 = vunpack.c.h.b16 %v984
        %v1222 = vunpack.c.l.b16 %v985
        %v1223 = vunpack.c.h.b16 %v985
        %v1224 = vunpack.c.l.b16 %v986
        %v1225 = vunpack.c.h.b16 %v986
        %v1226 = vunpack.c.l.b16 %v987
        %v1227 = vunpack.c.h.b16 %v987
        %v1228 = vunpack.c.l.b16 %v988
        %v1229 = vunpack.c.h.b16 %v988
        %v1230 = vunpack.c.l.b16 %v989
        %v1231 = vunpack.c.h.b16 %v989
        %v1232 = vunpack.c.l.b16 %v990
        %v1233 = vunpack.c.h.b16 %v990
        %v1234 = vunpack.c.l.b16 %v991
        %v1235 = vunpack.c.h.b16 %v991
        %v1236 = vunpack.c.l.b16 %v992
        %v1237 = vunpack.c.h.b16 %v992
        %v1238 = vunpack.c.l.b16 %v993
        %v1239 = vunpack.c.h.b16 %v993
        %v1240 = vunpack.c.l.b16 %v994
        %v1241 = vunpack.c.h.b16 %v994
        %v1242 = vunpack.c.l.b16 %v995
        %v1243 = vunpack.c.h.b16 %v995
        %v1244 = vunpack.c.l.b16 %v996
        %v1245 = vunpack.c.h.b16 %v996
        %v1246 = vunpack.c.l.b16 %v997
        %v1247 = vunpack.c.h.b16 %v997
        %v1248 = vunpack.c.l.b16 %v998
        %v1249 = vunpack.c.h.b16 %v998
        %v1250 = vunpack.c.l.b16 %v999
        %v1251 = vunpack.c.h.b16 %v999
        %v1252 = vunpack.c.l.b16 %v1000
        %v1253 = vunpack.c.h.b16 %v1000
        %v1254 = vunpack.c.l.b16 %v1001
        %v1255 = vunpack.c.h.b16 %v1001
        %v1256 = vunpack.c.l.b16 %v1002
        %v1257 = vunpack.c.h.b16 %v1002
        %v1258 = vunpack.c.l.b16 %v1003
        %v1259 = vunpack.c.h.b16 %v1003
        %v1260 = vunpack.c.l.b16 %v1004
        %v1261 = vunpack.c.h.b16 %v1004
        %v1262 = vunpack.c.l.b16 %v1005
        %v1263 = vunpack.c.h.b16 %v1005
        %v1264 = vunpack.c.l.b16 %v1006
        %v1265 = vunpack.c.h.b16 %v1006
        %v1266 = vunpack.c.l.b16 %v1007
        %v1267 = vunpack.c.h.b16 %v1007
        %v1268 = vunpack.c.l.b16 %v1008
        %v1269 = vunpack.c.h.b16 %v1008
        %v1270 = vunpack.c.l.b16 %v1009
        %v1271 = vunpack.c.h.b16 %v1009
        %v1272 = vunpack.c.l.b16 %v1010
        %v1273 = vunpack.c.h.b16 %v1010
        %v1274 = vunpack.c.l.b16 %v1011
        %v1275 = vunpack.c.h.b16 %v1011
        %v1276 = vunpack.c.l.b16 %v1012
        %v1277 = vunpack.c.h.b16 %v1012
        %v1278 = vunpack.c.l.b16 %v1013
        %v1279 = vunpack.c.h.b16 %v1013
        %v1280 = vunpack.c.l.b16 %v1014
        %v1281 = vunpack.c.h.b16 %v1014
        %v1282 = vunpack.c.l.b16 %v1015
        %v1283 = vunpack.c.h.b16 %v1015
        %v1284 = vunpack.c.l.b16 %v1016
        %v1285 = vunpack.c.h.b16 %v1016
        %v1286 = vunpack.c.l.b16 %v1017
        %v1287 = vunpack.c.h.b16 %v1017
        %v1288 = vunpack.c.l.b16 %v1018
        %v1289 = vunpack.c.h.b16 %v1018
        %v1290 = vunpack.c.l.b16 %v1019
        %v1291 = vunpack.c.h.b16 %v1019
        %v1292 = vunpack.c.l.b16 %v1020
        %v1293 = vunpack.c.h.b16 %v1020
        %v1294 = vunpack.c.l.b16 %v1021
        %v1295 = vunpack.c.h.b16 %v1021
        %v1296 = vunpack.c.l.b16 %v1022
        %v1297 = vunpack.c.h.b16 %v1022
        %v1298 = vunpack.c.l.b16 %v1023
        %v1299 = vunpack.c.h.b16 %v1023
        %v1300 = vunpack.c.l.b16 %v1024
        %v1301 = vunpack.c.h.b16 %v1024
        %v1302 = vunpack.c.l.b16 %v1025
        %v1303 = vunpack.c.h.b16 %v1025
        %v1304 = vunpack.c.l.b16 %v1026
        %v1305 = vunpack.c.h.b16 %v1026
        %v1306 = vunpack.c.l.b16 %v1027
        %v1307 = vunpack.c.h.b16 %v1027
        %v1308 = vunpack.c.l.b16 %v1028
        %v1309 = vunpack.c.h.b16 %v1028
        %v1310 = vunpack.c.l.b16 %v1029
        %v1311 = vunpack.c.h.b16 %v1029
        %v1312 = vunpack.c.l.b16 %v1030
        %v1313 = vunpack.c.h.b16 %v1030
        %v1314 = vunpack.c.l.b16 %v1031
        %v1315 = vunpack.c.h.b16 %v1031
        %v1316 = vunpack.c.l.b16 %v1032
        %v1317 = vunpack.c.h.b16 %v1032
        %v1318 = vunpack.c.l.b16 %v1033
        %v1319 = vunpack.c.h.b16 %v1033
        %v1320 = vunpack.c.l.b16 %v1034
        %v1321 = vunpack.c.h.b16 %v1034
        %v1322 = vunpack.c.l.b16 %v1035
        %v1323 = vunpack.c.h.b16 %v1035
        %v1324 = vunpack.c.l.b16 %v1036
        %v1325 = vunpack.c.h.b16 %v1036
        %v1326 = vunpack.c.l.b16 %v1037
        %v1327 = vunpack.c.h.b16 %v1037
        %v1328 = vunpack.c.l.b16 %v1038
        %v1329 = vunpack.c.h.b16 %v1038
        %v1330 = vunpack.c.l.b16 %v1039
        %v1331 = vunpack.c.h.b16 %v1039
        %v1332 = vunpack.c.l.b16 %v1040
        %v1333 = vunpack.c.h.b16 %v1040
        %v1334 = vunpack.c.l.b16 %v1041
        %v1335 = vunpack.c.h.b16 %v1041
        %v1336 = vunpack.c.l.b16 %v1042
        %v1337 = vunpack.c.h.b16 %v1042
        %v1338 = vunpack.c.l.b16 %v1043
        %v1339 = vunpack.c.h.b16 %v1043
        %v1340 = vunpack.c.l.b16 %v1044
        %v1341 = vunpack.c.h.b16 %v1044
        %v1342 = vunpack.c.l.b16 %v1045
        %v1343 = vunpack.c.h.b16 %v1045
        %v1344 = vunpack.c.l.b16 %v1046
        %v1345 = vunpack.c.h.b16 %v1046
        %v1346 = vunpack.c.l.b16 %v1047
        %v1347 = vunpack.c.h.b16 %v1047
        %v1348 = vunpack.c.l.b16 %v1048
        %v1349 = vunpack.c.h.b16 %v1048
        %v1350 = vunpack.c.l.b16 %v1049
        %v1351 = vunpack.c.h.b16 %v1049
        %v1352 = vpack.c.b16 %v1166, %v1160
        %v1353 = vpack.c.b16 %v1167, %v1161
        %v1354 = vpack.c.b16 %v1168, %v1162
        %v1355 = vpack.c.b16 %v1169, %v1163
        %v1356 = vpack.c.b16 %v1170, %v1164
        %v1357 = vpack.c.b16 %v1171, %v1165
        %v1358 = vpack.c.b16 %v1178, %v1172
        %v1359 = vpack.c.b16 %v1179, %v1173
        %v1360 = vpack.c.b16 %v1180, %v1174
        %v1361 = vpack.c.b16 %v1181, %v1175
        %v1362 = vpack.c.b16 %v1182, %v1176
        %v1363 = vpack.c.b16 %v1183, %v1177
        %v1364 = vpack.c.b16 %v1190, %v1184
        %v1365 = vpack.c.b16 %v1191, %v1185
        %v1366 = vpack.c.b16 %v1192, %v1186
        %v1367 = vpack.c.b16 %v1193, %v1187
        %v1368 = vpack.c.b16 %v1194, %v1188
        %v1369 = vpack.c.b16 %v1195, %v1189
        %v1370 = vpack.c.b16 %v1202, %v1196
        %v1371 = vpack.c.b16 %v1203, %v1197
        %v1372 = vpack.c.b16 %v1204, %v1198
        %v1373 = vpack.c.b16 %v1205, %v1199
        %v1374 = vpack.c.b16 %v1206, %v1200
        %v1375 = vpack.c.b16 %v1207, %v1201
        %v1376 = vpack.c.b16 %v1214, %v1208
        %v1377 = vpack.c.b16 %v1215, %v1209
        %v1378 = vpack.c.b16 %v1216, %v1210
        %v1379 = vpack.c.b16 %v1217, %v1211
        %v1380 = vpack.c.b16 %v1218, %v1212
        %v1381 = vpack.c.b16 %v1219, %v1213
        %v1382 = vpack.c.b16 %v1226, %v1220
        %v1383 = vpack.c.b16 %v1227, %v1221
        %v1384 = vpack.c.b16 %v1228, %v1222
        %v1385 = vpack.c.b16 %v1229, %v1223
        %v1386 = vpack.c.b16 %v1230, %v1224
        %v1387 = vpack.c.b16 %v1231, %v1225
        %v1388 = vpack.c.b16 %v1238, %v1232
        %v1389 = vpack.c.b16 %v1239, %v1233
        %v1390 = vpack.c.b16 %v1240, %v1234
        %v1391 = vpack.c.b16 %v1241, %v1235
        %v1392 = vpack.c.b16 %v1242, %v1236
        %v1393 = vpack.c.b16 %v1243, %v1237
        %v1394 = vpack.c.b16 %v1250, %v1244
        %v1395 = vpack.c.b16 %v1251, %v1245
        %v1396 = vpack.c.b16 %v1252, %v1246
        %v1397 = vpack.c.b16 %v1253, %v1247
        %v1398 = vpack.c.b16 %v1254, %v1248
        %v1399 = vpack.c.b16 %v1255, %v1249
        %v1400 = vpack.c.b16 %v1262, %v1256
        %v1401 = vpack.c.b16 %v1263, %v1257
        %v1402 = vpack.c.b16 %v1264, %v1258
        %v1403 = vpack.c.b16 %v1265, %v1259
        %v1404 = vpack.c.b16 %v1266, %v1260
        %v1405 = vpack.c.b16 %v1267, %v1261
        %v1406 = vpack.c.b16 %v1274, %v1268
        %v1407 = vpack.c.b16 %v1275, %v1269
        %v1408 = vpack.c.b16 %v1276, %v1270
        %v1409 = vpack.c.b16 %v1277, %v1271
        %v1410 = vpack.c.b16 %v1278, %v1272
        %v1411 = vpack.c.b16 %v1279, %v1273
        %v1412 = vpack.c.b16 %v1286, %v1280
        %v1413 = vpack.c.b16 %v1287, %v1281
        %v1414 = vpack.c.b16 %v1288, %v1282
        %v1415 = vpack.c.b16 %v1289, %v1283
        %v1416 = vpack.c.b16 %v1290, %v1284
        %v1417 = vpack.c.b16 %v1291, %v1285
        %v1418 = vpack.c.b16 %v1298, %v1292
        %v1419 = vpack.c.b16 %v1299, %v1293
        %v1420 = vpack.c.b16 %v1300, %v1294
        %v1421 = vpack.c.b16 %v1301, %v1295
        %v1422 = vpack.c.b16 %v1302, %v1296
        %v1423 = vpack.c.b16 %v1303, %v1297
        %v1424 = vpack.c.b16 %v1310, %v1304
        %v1425 = vpack.c.b16 %v1311, %v1305
        %v1426 = vpack.c.b16 %v1312, %v1306
        %v1427 = vpack.c.b16 %v1313, %v1307
        %v1428 = vpack.c.b16 %v1314, %v1308
        %v1429 = vpack.c.b16 %v1315, %v1309
        %v1430 = vpack.c.b16 %v1322, %v1316
        %v1431 = vpack.c.b16 %v1323, %v1317
        %v1432 = vpack.c.b16 %v1324, %v1318
        %v1433 = vpack.c.b16 %v1325, %v1319
        %v1434 = vpack.c.b16 %v1326, %v1320
        %v1435 = vpack.c.b16 %v1327, %v1321
        %v1436 = vpack.c.b16 %v1334, %v1328
        %v1437 = vpack.c.b16 %v1335, %v1329
        %v1438 = vpack.c.b16 %v1336, %v1330
        %v1439 = vpack.c.b16 %v1337, %v1331
        %v1440 = vpack.c.b16 %v1338, %v1332
        %v1441 = vpack.c.b16 %v1339, %v1333
        %v1442 = vpack.c.b16 %v1346, %v1340
        %v1443 = vpack.c.b16 %v1347, %v1341
        %v1444 = vpack.c.b16 %v1348, %v1342
        %v1445 = vpack.c.b16 %v1349, %v1343
        %v1446 = vpack.c.b16 %v1350, %v1344
        %v1447 = vpack.c.b16 %v1351, %v1345
        %1544 = vmatpush.bf16.msra.mxu0 %v1394
        %1545 = vmatpush.bf16.msra.mxu0 %v1388
        %1546 = vmatpush.bf16.msra.mxu0 %v1382
        %1547 = vmatpush.bf16.msra.mxu0 %v1376
        %1548 = vmatpush.bf16.msra.mxu0 %v1370
        %1549 = vmatpush.bf16.msra.mxu0 %v1364
        %1550 = vmatpush.bf16.msra.mxu0 %v1358
        %1551 = vmatpush.bf16.msra.mxu0 %v1352
        %1552 = vmatmul.bf16.gmra.mxu0 %v952
        %v1553 = vpop.f32.mrf.mxu0
        %v1554 = vadd.f32 %v1052, %v1553
        %v1555 = vpop.f32.mrf.mxu0
        %v1556 = vadd.f32 %v1052, %v1555
        %1557 = vdwg.mxu0
        %1558 = vmatpush.bf16.msra.mxu0 %v1442
        %1559 = vmatpush.bf16.msra.mxu0 %v1436
        %1560 = vmatpush.bf16.msra.mxu0 %v1430
        %1561 = vmatpush.bf16.msra.mxu0 %v1424
        %1562 = vmatpush.bf16.msra.mxu0 %v1418
        %1563 = vmatpush.bf16.msra.mxu0 %v1412
        %1564 = vmatpush.bf16.msra.mxu0 %v1406
        %1565 = vmatpush.bf16.msra.mxu0 %v1400
        %1566 = vmatmul.bf16.gmra.mxu0 %v953
        %v1567 = vpop.f32.mrf.mxu0
        %v1568 = vadd.f32 %v1554, %v1567
        %v1569 = vpop.f32.mrf.mxu0
        %v1570 = vadd.f32 %v1556, %v1569
        %1571 = vdwg.mxu0
        %1572 = vmatpush.bf16.msra.mxu0 %v1395
        %1573 = vmatpush.bf16.msra.mxu0 %v1389
        %1574 = vmatpush.bf16.msra.mxu0 %v1383
        %1575 = vmatpush.bf16.msra.mxu0 %v1377
        %1576 = vmatpush.bf16.msra.mxu0 %v1371
        %1577 = vmatpush.bf16.msra.mxu0 %v1365
        %1578 = vmatpush.bf16.msra.mxu0 %v1359
        %1579 = vmatpush.bf16.msra.mxu0 %v1353
        %1580 = vmatmul.bf16.gmra.mxu0 %v952
        %v1581 = vpop.f32.mrf.mxu0
        %v1582 = vadd.f32 %v1053, %v1581
        %v1583 = vpop.f32.mrf.mxu0
        %v1584 = vadd.f32 %v1053, %v1583
        %1585 = vdwg.mxu0
        %1586 = vmatpush.bf16.msra.mxu0 %v1443
        %1587 = vmatpush.bf16.msra.mxu0 %v1437
        %1588 = vmatpush.bf16.msra.mxu0 %v1431
        %1589 = vmatpush.bf16.msra.mxu0 %v1425
        %1590 = vmatpush.bf16.msra.mxu0 %v1419
        %1591 = vmatpush.bf16.msra.mxu0 %v1413
        %1592 = vmatpush.bf16.msra.mxu0 %v1407
        %1593 = vmatpush.bf16.msra.mxu0 %v1401
        %1594 = vmatmul.bf16.gmra.mxu0 %v953
        %v1595 = vpop.f32.mrf.mxu0
        %v1596 = vadd.f32 %v1582, %v1595
        %v1597 = vpop.f32.mrf.mxu0
        %v1598 = vadd.f32 %v1584, %v1597
        %1599 = vdwg.mxu0
        %1600 = vmatpush.bf16.msra.mxu0 %v1396
        %1601 = vmatpush.bf16.msra.mxu0 %v1390
        %1602 = vmatpush.bf16.msra.mxu0 %v1384
        %1603 = vmatpush.bf16.msra.mxu0 %v1378
        %1604 = vmatpush.bf16.msra.mxu0 %v1372
        %1605 = vmatpush.bf16.msra.mxu0 %v1366
        %1606 = vmatpush.bf16.msra.mxu0 %v1360
        %1607 = vmatpush.bf16.msra.mxu0 %v1354
        %1608 = vmatmul.bf16.gmra.mxu0 %v952
        %v1609 = vpop.f32.mrf.mxu0
        %v1610 = vadd.f32 %v1054, %v1609
        %v1611 = vpop.f32.mrf.mxu0
        %v1612 = vadd.f32 %v1054, %v1611
        %1613 = vdwg.mxu0
        %1614 = vmatpush.bf16.msra.mxu0 %v1444
        %1615 = vmatpush.bf16.msra.mxu0 %v1438
        %1616 = vmatpush.bf16.msra.mxu0 %v1432
        %1617 = vmatpush.bf16.msra.mxu0 %v1426
        %1618 = vmatpush.bf16.msra.mxu0 %v1420
        %1619 = vmatpush.bf16.msra.mxu0 %v1414
        %1620 = vmatpush.bf16.msra.mxu0 %v1408
        %1621 = vmatpush.bf16.msra.mxu0 %v1402
        %1622 = vmatmul.bf16.gmra.mxu0 %v953
        %v1623 = vpop.f32.mrf.mxu0
        %v1624 = vadd.f32 %v1610, %v1623
        %v1625 = vpop.f32.mrf.mxu0
        %v1626 = vadd.f32 %v1612, %v1625
        %1627 = vdwg.mxu0
        %1628 = vmatpush.bf16.msra.mxu0 %v1397
        %1629 = vmatpush.bf16.msra.mxu0 %v1391
        %1630 = vmatpush.bf16.msra.mxu0 %v1385
        %1631 = vmatpush.bf16.msra.mxu0 %v1379
        %1632 = vmatpush.bf16.msra.mxu0 %v1373
        %1633 = vmatpush.bf16.msra.mxu0 %v1367
        %1634 = vmatpush.bf16.msra.mxu0 %v1361
        %1635 = vmatpush.bf16.msra.mxu0 %v1355
        %1636 = vmatmul.bf16.gmra.mxu0 %v952
        %v1637 = vpop.f32.mrf.mxu0
        %v1638 = vadd.f32 %v1055, %v1637
        %v1639 = vpop.f32.mrf.mxu0
        %v1640 = vadd.f32 %v1055, %v1639
        %1641 = vdwg.mxu0
        %1642 = vmatpush.bf16.msra.mxu0 %v1445
        %1643 = vmatpush.bf16.msra.mxu0 %v1439
        %1644 = vmatpush.bf16.msra.mxu0 %v1433
        %1645 = vmatpush.bf16.msra.mxu0 %v1427
        %1646 = vmatpush.bf16.msra.mxu0 %v1421
        %1647 = vmatpush.bf16.msra.mxu0 %v1415
        %1648 = vmatpush.bf16.msra.mxu0 %v1409
        %1649 = vmatpush.bf16.msra.mxu0 %v1403
        %1650 = vmatmul.bf16.gmra.mxu0 %v953
        %v1651 = vpop.f32.mrf.mxu0
        %v1652 = vadd.f32 %v1638, %v1651
        %v1653 = vpop.f32.mrf.mxu0
        %v1654 = vadd.f32 %v1640, %v1653
        %1655 = vdwg.mxu0
        %1656 = vmatpush.bf16.msra.mxu0 %v1398
        %1657 = vmatpush.bf16.msra.mxu0 %v1392
        %1658 = vmatpush.bf16.msra.mxu0 %v1386
        %1659 = vmatpush.bf16.msra.mxu0 %v1380
        %1660 = vmatpush.bf16.msra.mxu0 %v1374
        %1661 = vmatpush.bf16.msra.mxu0 %v1368
        %1662 = vmatpush.bf16.msra.mxu0 %v1362
        %1663 = vmatpush.bf16.msra.mxu0 %v1356
        %1664 = vmatmul.bf16.gmra.mxu0 %v952
        %v1665 = vpop.f32.mrf.mxu0
        %v1666 = vadd.f32 %v1056, %v1665
        %v1667 = vpop.f32.mrf.mxu0
        %v1668 = vadd.f32 %v1056, %v1667
        %1669 = vdwg.mxu0
        %1670 = vmatpush.bf16.msra.mxu0 %v1446
        %1671 = vmatpush.bf16.msra.mxu0 %v1440
        %1672 = vmatpush.bf16.msra.mxu0 %v1434
        %1673 = vmatpush.bf16.msra.mxu0 %v1428
        %1674 = vmatpush.bf16.msra.mxu0 %v1422
        %1675 = vmatpush.bf16.msra.mxu0 %v1416
        %1676 = vmatpush.bf16.msra.mxu0 %v1410
        %1677 = vmatpush.bf16.msra.mxu0 %v1404
        %1678 = vmatmul.bf16.gmra.mxu0 %v953
        %v1679 = vpop.f32.mrf.mxu0
        %v1680 = vadd.f32 %v1666, %v1679
        %v1681 = vpop.f32.mrf.mxu0
        %v1682 = vadd.f32 %v1668, %v1681
        %1683 = vdwg.mxu0
        %1684 = vmatpush.bf16.msra.mxu0 %v1399
        %1685 = vmatpush.bf16.msra.mxu0 %v1393
        %1686 = vmatpush.bf16.msra.mxu0 %v1387
        %1687 = vmatpush.bf16.msra.mxu0 %v1381
        %1688 = vmatpush.bf16.msra.mxu0 %v1375
        %1689 = vmatpush.bf16.msra.mxu0 %v1369
        %1690 = vmatpush.bf16.msra.mxu0 %v1363
        %1691 = vmatpush.bf16.msra.mxu0 %v1357
        %1692 = vmatmul.bf16.gmra.mxu0 %v952
        %v1693 = vpop.f32.mrf.mxu0
        %v1694 = vadd.f32 %v1057, %v1693
        %v1695 = vpop.f32.mrf.mxu0
        %v1696 = vadd.f32 %v1057, %v1695
        %1697 = vdwg.mxu0
        %1698 = vmatpush.bf16.msra.mxu0 %v1447
        %1699 = vmatpush.bf16.msra.mxu0 %v1441
        %1700 = vmatpush.bf16.msra.mxu0 %v1435
        %1701 = vmatpush.bf16.msra.mxu0 %v1429
        %1702 = vmatpush.bf16.msra.mxu0 %v1423
        %1703 = vmatpush.bf16.msra.mxu0 %v1417
        %1704 = vmatpush.bf16.msra.mxu0 %v1411
        %1705 = vmatpush.bf16.msra.mxu0 %v1405
        %1706 = vmatmul.bf16.gmra.mxu0 %v953
        %v1707 = vpop.f32.mrf.mxu0
        %v1708 = vadd.f32 %v1694, %v1707
        %v1709 = vpop.f32.mrf.mxu0
        %v1710 = vadd.f32 %v1696, %v1709
        %1711 = vdwg.mxu0
        %v1712 = vld [vmem:[%s1] sm:$0xff]
        %v1713 = vmul.f32 %v1568, 0.088388346
        %1714 = vmatpush.xpose.msra.mxu0 0.0
        %1715 = vmatpush.xpose.msra.mxu0 0.0
        %1716 = vmatpush.xpose.msra.mxu0 0.0
        %1717 = vmatpush.xpose.msra.mxu0 0.0
        %1718 = vmatpush.xpose.msra.mxu0 0.0
        %1719 = vmatpush.xpose.msra.mxu0 0.0
        %1720 = vmatpush.xpose.msra.mxu0 0.0
        %1721 = vmatpush.xpose.msra.mxu0 0.0
        %1722 = vmatpush.xpose.msra.mxu0 0.0
        %1723 = vmatpush.xpose.msra.mxu0 0.0
        %1724 = vmatpush.xpose.msra.mxu0 0.0
        %1725 = vmatpush.xpose.msra.mxu0 0.0
        %1726 = vmatpush.xpose.msra.mxu0 0.0
        %1727 = vmatpush.xpose.msra.mxu0 0.0
        %1728 = vmatpush.xpose.msra.mxu0 0.0
        %1729 = vmatpush.xpose.msra.mxu0 %v1624
        %1730 = vmatmul.f32.gmra.mxu0 %v1713
        %v1731 = vpop.f32.mrf.mxu0
        %v1732 = vadd.f32 %v1712, %v1731
        %1733 = vdwg.mxu0
        %vm1734 = vcmask 64512
        %v1735 = vsel %vm1734, %v1732, -inf
        %1736 = vmax.xlane.f32.xlu0 %v1735
        %v1737 = vpop.xlane.xlu0 %1736
        %v1738 = vsub.f32 %v1732, %v1737
        %v1739 = vmul.f32 %v1738, 1.442695
        %v1740 = vpow.pop %v1739
        %v1741 = vsel %vm1734, %v1740, 0.0
        %1742 = vadd.xlane.f32.xlu0 %v1741
        %v1743 = vpop.xlane.xlu0 %1742
        %v1744 = vrcp.pop %v1743
        %v1745 = vmul.f32 %v1740, %v1744
        %v1747 = vsel %vm1734, %v1745, 0
        %1749 = vmatpush.msra.mxu0 0.0
        %1750 = vmatpush.msra.mxu0 0.0
        %1751 = vmatpush.msra.mxu0 0.0
        %1752 = vmatpush.msra.mxu0 0.0
        %1753 = vmatpush.msra.mxu0 0.0
        %1754 = vmatpush.msra.mxu0 0.0
        %1755 = vmatpush.msra.mxu0 0.0
        %1756 = vmatpush.msra.mxu0 0.0
        %1757 = vmatpush.msra.mxu0 0.0
        %1758 = vmatpush.msra.mxu0 0.0
        %1759 = vmatpush.msra.mxu0 0.0
        %1760 = vmatpush.msra.mxu0 0.0
        %1761 = vmatpush.msra.mxu0 0.0
        %1762 = vmatpush.msra.mxu0 0.0
        %1763 = vmatpush.msra.mxu0 0.0
        %1764 = vmatpush.msra.mxu0 %v1680
        %1765 = vmatmul.f32.gmra.mxu0 %v1747
        %v1766 = vpop.f32.mrf.mxu0
        %v1767 = vadd.f32 0.0, %v1766
        %1768 = vdwg.mxu0
        %1769 = vst [vmem:[#allocation3] sm:$0xff] %v1767
        %v1770 = vmul.f32 %v1596, 0.088388346
        %1771 = vmatpush.xpose.msra.mxu0 0.0
        %1772 = vmatpush.xpose.msra.mxu0 0.0
        %1773 = vmatpush.xpose.msra.mxu0 0.0
        %1774 = vmatpush.xpose.msra.mxu0 0.0
        %1775 = vmatpush.xpose.msra.mxu0 0.0
        %1776 = vmatpush.xpose.msra.mxu0 0.0
        %1777 = vmatpush.xpose.msra.mxu0 0.0
        %1778 = vmatpush.xpose.msra.mxu0 0.0
        %1779 = vmatpush.xpose.msra.mxu0 0.0
        %1780 = vmatpush.xpose.msra.mxu0 0.0
        %1781 = vmatpush.xpose.msra.mxu0 0.0
        %1782 = vmatpush.xpose.msra.mxu0 0.0
        %1783 = vmatpush.xpose.msra.mxu0 0.0
        %1784 = vmatpush.xpose.msra.mxu0 0.0
        %1785 = vmatpush.xpose.msra.mxu0 0.0
        %1786 = vmatpush.xpose.msra.mxu0 %v1652
        %1787 = vmatmul.f32.gmra.mxu0 %v1770
        %v1788 = vpop.f32.mrf.mxu0
        %v1789 = vadd.f32 %v1712, %v1788
        %1790 = vdwg.mxu0
        %v1791 = vsel %vm1734, %v1789, -inf
        %1792 = vmax.xlane.f32.xlu0 %v1791
        %v1793 = vpop.xlane.xlu0 %1792
        %v1794 = vsub.f32 %v1789, %v1793
        %v1795 = vmul.f32 %v1794, 1.442695
        %v1796 = vpow.pop %v1795
        %v1797 = vsel %vm1734, %v1796, 0.0
        %1798 = vadd.xlane.f32.xlu0 %v1797
        %v1799 = vpop.xlane.xlu0 %1798
        %v1800 = vrcp.pop %v1799
        %v1801 = vmul.f32 %v1796, %v1800
        %v1803 = vsel %vm1734, %v1801, 0
        %1805 = vmatpush.msra.mxu0 0.0
        %1806 = vmatpush.msra.mxu0 0.0
        %1807 = vmatpush.msra.mxu0 0.0
        %1808 = vmatpush.msra.mxu0 0.0
        %1809 = vmatpush.msra.mxu0 0.0
        %1810 = vmatpush.msra.mxu0 0.0
        %1811 = vmatpush.msra.mxu0 0.0
        %1812 = vmatpush.msra.mxu0 0.0
        %1813 = vmatpush.msra.mxu0 0.0
        %1814 = vmatpush.msra.mxu0 0.0
        %1815 = vmatpush.msra.mxu0 0.0
        %1816 = vmatpush.msra.mxu0 0.0
        %1817 = vmatpush.msra.mxu0 0.0
        %1818 = vmatpush.msra.mxu0 0.0
        %1819 = vmatpush.msra.mxu0 0.0
        %1820 = vmatpush.msra.mxu0 %v1708
        %1821 = vmatmul.f32.gmra.mxu0 %v1803
        %v1822 = vpop.f32.mrf.mxu0
        %v1823 = vadd.f32 0.0, %v1822
        %1824 = vdwg.mxu0
        %1825 = vst [vmem:[#allocation3 + $0x8] sm:$0xff] %v1823
        %v1826 = vmul.f32 %v1570, 0.088388346
        %1827 = vmatpush.xpose.msra.mxu0 0.0
        %1828 = vmatpush.xpose.msra.mxu0 0.0
        %1829 = vmatpush.xpose.msra.mxu0 0.0
        %1830 = vmatpush.xpose.msra.mxu0 0.0
        %1831 = vmatpush.xpose.msra.mxu0 0.0
        %1832 = vmatpush.xpose.msra.mxu0 0.0
        %1833 = vmatpush.xpose.msra.mxu0 0.0
        %1834 = vmatpush.xpose.msra.mxu0 0.0
        %1835 = vmatpush.xpose.msra.mxu0 0.0
        %1836 = vmatpush.xpose.msra.mxu0 0.0
        %1837 = vmatpush.xpose.msra.mxu0 0.0
        %1838 = vmatpush.xpose.msra.mxu0 0.0
        %1839 = vmatpush.xpose.msra.mxu0 0.0
        %1840 = vmatpush.xpose.msra.mxu0 0.0
        %1841 = vmatpush.xpose.msra.mxu0 0.0
        %1842 = vmatpush.xpose.msra.mxu0 %v1626
        %1843 = vmatmul.f32.gmra.mxu0 %v1826
        %v1844 = vpop.f32.mrf.mxu0
        %v1845 = vadd.f32 %v1712, %v1844
        %1846 = vdwg.mxu0
        %v1847 = vsel %vm1734, %v1845, -inf
        %1848 = vmax.xlane.f32.xlu0 %v1847
        %v1849 = vpop.xlane.xlu0 %1848
        %v1850 = vsub.f32 %v1845, %v1849
        %v1851 = vmul.f32 %v1850, 1.442695
        %v1852 = vpow.pop %v1851
        %v1853 = vsel %vm1734, %v1852, 0.0
        %1854 = vadd.xlane.f32.xlu0 %v1853
        %v1855 = vpop.xlane.xlu0 %1854
        %v1856 = vrcp.pop %v1855
        %v1857 = vmul.f32 %v1852, %v1856
        %v1859 = vsel %vm1734, %v1857, 0
        %1861 = vmatpush.msra.mxu0 0.0
        %1862 = vmatpush.msra.mxu0 0.0
        %1863 = vmatpush.msra.mxu0 0.0
        %1864 = vmatpush.msra.mxu0 0.0
        %1865 = vmatpush.msra.mxu0 0.0
        %1866 = vmatpush.msra.mxu0 0.0
        %1867 = vmatpush.msra.mxu0 0.0
        %1868 = vmatpush.msra.mxu0 0.0
        %1869 = vmatpush.msra.mxu0 0.0
        %1870 = vmatpush.msra.mxu0 0.0
        %1871 = vmatpush.msra.mxu0 0.0
        %1872 = vmatpush.msra.mxu0 0.0
        %1873 = vmatpush.msra.mxu0 0.0
        %1874 = vmatpush.msra.mxu0 0.0
        %1875 = vmatpush.msra.mxu0 0.0
        %1876 = vmatpush.msra.mxu0 %v1682
        %1877 = vmatmul.f32.gmra.mxu0 %v1859
        %v1878 = vpop.f32.mrf.mxu0
        %v1879 = vadd.f32 0.0, %v1878
        %1880 = vdwg.mxu0
        %1881 = vst [vmem:[#allocation3 + $0x10] sm:$0xff] %v1879
        %v1882 = vmul.f32 %v1598, 0.088388346
        %1883 = vmatpush.xpose.msra.mxu0 0.0
        %1884 = vmatpush.xpose.msra.mxu0 0.0
        %1885 = vmatpush.xpose.msra.mxu0 0.0
        %1886 = vmatpush.xpose.msra.mxu0 0.0
        %1887 = vmatpush.xpose.msra.mxu0 0.0
        %1888 = vmatpush.xpose.msra.mxu0 0.0
        %1889 = vmatpush.xpose.msra.mxu0 0.0
        %1890 = vmatpush.xpose.msra.mxu0 0.0
        %1891 = vmatpush.xpose.msra.mxu0 0.0
        %1892 = vmatpush.xpose.msra.mxu0 0.0
        %1893 = vmatpush.xpose.msra.mxu0 0.0
        %1894 = vmatpush.xpose.msra.mxu0 0.0
        %1895 = vmatpush.xpose.msra.mxu0 0.0
        %1896 = vmatpush.xpose.msra.mxu0 0.0
        %1897 = vmatpush.xpose.msra.mxu0 0.0
        %1898 = vmatpush.xpose.msra.mxu0 %v1654
        %1899 = vmatmul.f32.gmra.mxu0 %v1882
        %v1900 = vpop.f32.mrf.mxu0
        %v1901 = vadd.f32 %v1712, %v1900
        %1902 = vdwg.mxu0
        %v1903 = vsel %vm1734, %v1901, -inf
        %1904 = vmax.xlane.f32.xlu0 %v1903
        %v1905 = vpop.xlane.xlu0 %1904
        %v1906 = vsub.f32 %v1901, %v1905
        %v1907 = vmul.f32 %v1906, 1.442695
        %v1908 = vpow.pop %v1907
        %v1909 = vsel %vm1734, %v1908, 0.0
        %1910 = vadd.xlane.f32.xlu0 %v1909
        %v1911 = vpop.xlane.xlu0 %1910
        %v1912 = vrcp.pop %v1911
        %v1913 = vmul.f32 %v1908, %v1912
        %v1915 = vsel %vm1734, %v1913, 0
        %1917 = vmatpush.msra.mxu0 0.0
        %1918 = vmatpush.msra.mxu0 0.0
        %1919 = vmatpush.msra.mxu0 0.0
        %1920 = vmatpush.msra.mxu0 0.0
        %1921 = vmatpush.msra.mxu0 0.0
        %1922 = vmatpush.msra.mxu0 0.0
        %1923 = vmatpush.msra.mxu0 0.0
        %1924 = vmatpush.msra.mxu0 0.0
        %1925 = vmatpush.msra.mxu0 0.0
        %1926 = vmatpush.msra.mxu0 0.0
        %1927 = vmatpush.msra.mxu0 0.0
        %1928 = vmatpush.msra.mxu0 0.0
        %1929 = vmatpush.msra.mxu0 0.0
        %1930 = vmatpush.msra.mxu0 0.0
        %1931 = vmatpush.msra.mxu0 0.0
        %1932 = vmatpush.msra.mxu0 %v1710
        %1933 = vmatmul.f32.gmra.mxu0 %v1915
        %v1934 = vpop.f32.mrf.mxu0
        %v1935 = vadd.f32 0.0, %v1934
        %1936 = vdwg.mxu0
        %1937 = vst [vmem:[#allocation3 + $0x18] sm:$0xff] %v1935
        %v1938 = vld [vmem:[#allocation3] sm:$0xff]
        %v1939 = vld [vmem:[#allocation3 + $0x8] sm:$0xff]
        %v1940 = vld [vmem:[#allocation3 + $0x10] sm:$0xff]
        %v1941 = vld [vmem:[#allocation3 + $0x18] sm:$0xff]
        %v1942 = vpack.c.bf16 %v1940, %v1938
        %v1943 = vpack.c.bf16 %v1941, %v1939
        %v1944 = vld [vmem:[%s706] sm:$0xff]
        %v1945 = vld [vmem:[%s706 + $0x8] sm:$0xff]
        %v1946 = vld [vmem:[%s706 + $0x10] sm:$0xff]
        %v1947 = vld [vmem:[%s706 + $0x18] sm:$0xff]
        %v1948 = vld [vmem:[%s706 + $0x20] sm:$0xff]
        %v1949 = vld [vmem:[%s706 + $0x28] sm:$0xff]
        %v1950 = vld [vmem:[%s706 + $0x30] sm:$0xff]
        %v1951 = vld [vmem:[%s706 + $0x38] sm:$0xff]
        %v1952 = vld [vmem:[%s706 + $0x40] sm:$0xff]
        %v1953 = vld [vmem:[%s706 + $0x48] sm:$0xff]
        %v1954 = vld [vmem:[%s706 + $0x50] sm:$0xff]
        %v1955 = vld [vmem:[%s706 + $0x58] sm:$0xff]
        %v1956 = vld [vmem:[%s706 + $0x60] sm:$0xff]
        %v1957 = vld [vmem:[%s706 + $0x68] sm:$0xff]
        %v1958 = vld [vmem:[%s706 + $0x70] sm:$0xff]
        %v1959 = vld [vmem:[%s706 + $0x78] sm:$0xff]
        %v1960 = vld [vmem:[%s706 + $0x80] sm:$0xff]
        %v1961 = vld [vmem:[%s706 + $0x88] sm:$0xff]
        %v1962 = vld [vmem:[%s706 + $0x90] sm:$0xff]
        %v1963 = vld [vmem:[%s706 + $0x98] sm:$0xff]
        %v1964 = vld [vmem:[%s706 + $0xa0] sm:$0xff]
        %v1965 = vld [vmem:[%s706 + $0xa8] sm:$0xff]
        %v1966 = vld [vmem:[%s706 + $0xb0] sm:$0xff]
        %v1967 = vld [vmem:[%s706 + $0xb8] sm:$0xff]
        %v1968 = vld [vmem:[%s706 + $0xc0] sm:$0xff]
        %v1969 = vld [vmem:[%s706 + $0xc8] sm:$0xff]
        %v1970 = vld [vmem:[%s706 + $0xd0] sm:$0xff]
        %v1971 = vld [vmem:[%s706 + $0xd8] sm:$0xff]
        %v1972 = vld [vmem:[%s706 + $0xe0] sm:$0xff]
        %v1973 = vld [vmem:[%s706 + $0xe8] sm:$0xff]
        %v1974 = vld [vmem:[%s706 + $0xf0] sm:$0xff]
        %v1975 = vld [vmem:[%s706 + $0xf8] sm:$0xff]
        %v1976 = vld [vmem:[%s842] sm:$0x3]
        %v1978 = vperm.slane %v1976, 0
        %v1979 = vperm.slane %v1976, 1
        %v2014 = vunpack.c.l.b16 %v1944
        %v2015 = vunpack.c.h.b16 %v1944
        %v2016 = vunpack.c.l.b16 %v1945
        %v2017 = vunpack.c.h.b16 %v1945
        %v2018 = vunpack.c.l.b16 %v1946
        %v2019 = vunpack.c.h.b16 %v1946
        %v2020 = vunpack.c.l.b16 %v1947
        %v2021 = vunpack.c.h.b16 %v1947
        %v2022 = vunpack.c.l.b16 %v1948
        %v2023 = vunpack.c.h.b16 %v1948
        %v2024 = vunpack.c.l.b16 %v1949
        %v2025 = vunpack.c.h.b16 %v1949
        %v2026 = vunpack.c.l.b16 %v1950
        %v2027 = vunpack.c.h.b16 %v1950
        %v2028 = vunpack.c.l.b16 %v1951
        %v2029 = vunpack.c.h.b16 %v1951
        %v2030 = vunpack.c.l.b16 %v1952
        %v2031 = vunpack.c.h.b16 %v1952
        %v2032 = vunpack.c.l.b16 %v1953
        %v2033 = vunpack.c.h.b16 %v1953
        %v2034 = vunpack.c.l.b16 %v1954
        %v2035 = vunpack.c.h.b16 %v1954
        %v2036 = vunpack.c.l.b16 %v1955
        %v2037 = vunpack.c.h.b16 %v1955
        %v2038 = vunpack.c.l.b16 %v1956
        %v2039 = vunpack.c.h.b16 %v1956
        %v2040 = vunpack.c.l.b16 %v1957
        %v2041 = vunpack.c.h.b16 %v1957
        %v2042 = vunpack.c.l.b16 %v1958
        %v2043 = vunpack.c.h.b16 %v1958
        %v2044 = vunpack.c.l.b16 %v1959
        %v2045 = vunpack.c.h.b16 %v1959
        %v2046 = vunpack.c.l.b16 %v1960
        %v2047 = vunpack.c.h.b16 %v1960
        %v2048 = vunpack.c.l.b16 %v1961
        %v2049 = vunpack.c.h.b16 %v1961
        %v2050 = vunpack.c.l.b16 %v1962
        %v2051 = vunpack.c.h.b16 %v1962
        %v2052 = vunpack.c.l.b16 %v1963
        %v2053 = vunpack.c.h.b16 %v1963
        %v2054 = vunpack.c.l.b16 %v1964
        %v2055 = vunpack.c.h.b16 %v1964
        %v2056 = vunpack.c.l.b16 %v1965
        %v2057 = vunpack.c.h.b16 %v1965
        %v2058 = vunpack.c.l.b16 %v1966
        %v2059 = vunpack.c.h.b16 %v1966
        %v2060 = vunpack.c.l.b16 %v1967
        %v2061 = vunpack.c.h.b16 %v1967
        %v2062 = vunpack.c.l.b16 %v1968
        %v2063 = vunpack.c.h.b16 %v1968
        %v2064 = vunpack.c.l.b16 %v1969
        %v2065 = vunpack.c.h.b16 %v1969
        %v2066 = vunpack.c.l.b16 %v1970
        %v2067 = vunpack.c.h.b16 %v1970
        %v2068 = vunpack.c.l.b16 %v1971
        %v2069 = vunpack.c.h.b16 %v1971
        %v2070 = vunpack.c.l.b16 %v1972
        %v2071 = vunpack.c.h.b16 %v1972
        %v2072 = vunpack.c.l.b16 %v1973
        %v2073 = vunpack.c.h.b16 %v1973
        %v2074 = vunpack.c.l.b16 %v1974
        %v2075 = vunpack.c.h.b16 %v1974
        %v2076 = vunpack.c.l.b16 %v1975
        %v2077 = vunpack.c.h.b16 %v1975
        %v2078 = vpack.c.b16 %v2016, %v2014
        %v2079 = vpack.c.b16 %v2017, %v2015
        %v2080 = vpack.c.b16 %v2020, %v2018
        %v2081 = vpack.c.b16 %v2021, %v2019
        %v2082 = vpack.c.b16 %v2024, %v2022
        %v2083 = vpack.c.b16 %v2025, %v2023
        %v2084 = vpack.c.b16 %v2028, %v2026
        %v2085 = vpack.c.b16 %v2029, %v2027
        %v2086 = vpack.c.b16 %v2032, %v2030
        %v2087 = vpack.c.b16 %v2033, %v2031
        %v2088 = vpack.c.b16 %v2036, %v2034
        %v2089 = vpack.c.b16 %v2037, %v2035
        %v2090 = vpack.c.b16 %v2040, %v2038
        %v2091 = vpack.c.b16 %v2041, %v2039
        %v2092 = vpack.c.b16 %v2044, %v2042
        %v2093 = vpack.c.b16 %v2045, %v2043
        %v2094 = vpack.c.b16 %v2048, %v2046
        %v2095 = vpack.c.b16 %v2049, %v2047
        %v2096 = vpack.c.b16 %v2052, %v2050
        %v2097 = vpack.c.b16 %v2053, %v2051
        %v2098 = vpack.c.b16 %v2056, %v2054
        %v2099 = vpack.c.b16 %v2057, %v2055
        %v2100 = vpack.c.b16 %v2060, %v2058
        %v2101 = vpack.c.b16 %v2061, %v2059
        %v2102 = vpack.c.b16 %v2064, %v2062
        %v2103 = vpack.c.b16 %v2065, %v2063
        %v2104 = vpack.c.b16 %v2068, %v2066
        %v2105 = vpack.c.b16 %v2069, %v2067
        %v2106 = vpack.c.b16 %v2072, %v2070
        %v2107 = vpack.c.b16 %v2073, %v2071
        %v2108 = vpack.c.b16 %v2076, %v2074
        %v2109 = vpack.c.b16 %v2077, %v2075
        %2142 = vmatpush.bf16.msra.mxu0 %v2092
        %2143 = vmatpush.bf16.msra.mxu0 %v2090
        %2144 = vmatpush.bf16.msra.mxu0 %v2088
        %2145 = vmatpush.bf16.msra.mxu0 %v2086
        %2146 = vmatpush.bf16.msra.mxu0 %v2084
        %2147 = vmatpush.bf16.msra.mxu0 %v2082
        %2148 = vmatpush.bf16.msra.mxu0 %v2080
        %2149 = vmatpush.bf16.msra.mxu0 %v2078
        %2150 = vmatmul.bf16.gmra.mxu0 %v1942
        %v2151 = vpop.f32.mrf.mxu0
        %v2152 = vadd.f32 %v1978, %v2151
        %v2153 = vpop.f32.mrf.mxu0
        %v2154 = vadd.f32 %v1978, %v2153
        %2155 = vdwg.mxu0
        %2156 = vmatpush.bf16.msra.mxu0 %v2108
        %2157 = vmatpush.bf16.msra.mxu0 %v2106
        %2158 = vmatpush.bf16.msra.mxu0 %v2104
        %2159 = vmatpush.bf16.msra.mxu0 %v2102
        %2160 = vmatpush.bf16.msra.mxu0 %v2100
        %2161 = vmatpush.bf16.msra.mxu0 %v2098
        %2162 = vmatpush.bf16.msra.mxu0 %v2096
        %2163 = vmatpush.bf16.msra.mxu0 %v2094
        %2164 = vmatmul.bf16.gmra.mxu0 %v1943
        %v2165 = vpop.f32.mrf.mxu0
        %v2166 = vadd.f32 %v2152, %v2165
        %v2167 = vpop.f32.mrf.mxu0
        %v2168 = vadd.f32 %v2154, %v2167
        %2169 = vdwg.mxu0
        %2170 = vmatpush.bf16.msra.mxu0 %v2093
        %2171 = vmatpush.bf16.msra.mxu0 %v2091
        %2172 = vmatpush.bf16.msra.mxu0 %v2089
        %2173 = vmatpush.bf16.msra.mxu0 %v2087
        %2174 = vmatpush.bf16.msra.mxu0 %v2085
        %2175 = vmatpush.bf16.msra.mxu0 %v2083
        %2176 = vmatpush.bf16.msra.mxu0 %v2081
        %2177 = vmatpush.bf16.msra.mxu0 %v2079
        %2178 = vmatmul.bf16.gmra.mxu0 %v1942
        %v2179 = vpop.f32.mrf.mxu0
        %v2180 = vadd.f32 %v1979, %v2179
        %v2181 = vpop.f32.mrf.mxu0
        %v2182 = vadd.f32 %v1979, %v2181
        %2183 = vdwg.mxu0
        %2184 = vmatpush.bf16.msra.mxu0 %v2109
        %2185 = vmatpush.bf16.msra.mxu0 %v2107
        %2186 = vmatpush.bf16.msra.mxu0 %v2105
        %2187 = vmatpush.bf16.msra.mxu0 %v2103
        %2188 = vmatpush.bf16.msra.mxu0 %v2101
        %2189 = vmatpush.bf16.msra.mxu0 %v2099
        %2190 = vmatpush.bf16.msra.mxu0 %v2097
        %2191 = vmatpush.bf16.msra.mxu0 %v2095
        %2192 = vmatmul.bf16.gmra.mxu0 %v1943
        %v2193 = vpop.f32.mrf.mxu0
        %v2194 = vadd.f32 %v2180, %v2193
        %v2195 = vpop.f32.mrf.mxu0
        %v2196 = vadd.f32 %v2182, %v2195
        %2197 = vdwg.mxu0
        %v2198 = vadd.f32 %v871, %v2166
        %v2199 = vadd.f32 %v872, %v2194
        %v2200 = vadd.f32 %v873, %v2168
        %v2201 = vadd.f32 %v874, %v2196
        %v2202 = vld [vmem:[%s846] sm:$0x3]
        %v2203 = vld [vmem:[%s850] sm:$0x3]
        %v2204 = vadd.f32 %v2198, %v2199
        %2205 = vadd.xlane.f32.xlu0 %v2204
        %v2206 = vpop.xlane.xlu0 %2205
        %v2207 = vadd.f32 %v2200, %v2201
        %2208 = vadd.xlane.f32.xlu0 %v2207
        %v2209 = vpop.xlane.xlu0 %2208
        %v2210 = vmul.f32 %v2206, %v889
        %v2211 = vmul.f32 %v2209, %v889
        %v2212 = vsub.f32 %v2198, %v2210
        %v2213 = vsub.f32 %v2199, %v2210
        %v2214 = vsub.f32 %v2200, %v2211
        %v2215 = vsub.f32 %v2201, %v2211
        %v2216 = vmul.f32 %v2212, %v2212
        %v2217 = vmul.f32 %v2213, %v2213
        %v2218 = vmul.f32 %v2214, %v2214
        %v2219 = vmul.f32 %v2215, %v2215
        %v2220 = vadd.f32 %v2216, %v2217
        %2221 = vadd.xlane.f32.xlu0 %v2220
        %v2222 = vpop.xlane.xlu0 %2221
        %v2223 = vadd.f32 %v2218, %v2219
        %2224 = vadd.xlane.f32.xlu0 %v2223
        %v2225 = vpop.xlane.xlu0 %2224
        %v2226 = vmul.f32 %v2222, %v889
        %v2227 = vmul.f32 %v2225, %v889
        %v2228 = vadd.f32 %v2226, 1e-05
        %v2229 = vadd.f32 %v2227, 1e-05
        %v2230 = vrsqrt.pop %v2228
        %v2231 = vmul.f32 %v2230, %v2228
        %v2232 = vmul.f32 %v2231, %v2230
        %v2233 = vmul.f32 0.5, %v2232
        %v2234 = vsub.f32 1.5, %v2233
        %v2235 = vmul.f32 %v2230, %v2234
        %vm2236 = vweird.f32 %v2228
        %vm2237 = vweird.f32 %v2230
        %vm2238 = vmor %vm2236, %vm2237
        %v2239 = vsel %vm2238, %v2230, %v2235
        %v2240 = vrsqrt.pop %v2229
        %v2241 = vmul.f32 %v2240, %v2229
        %v2242 = vmul.f32 %v2241, %v2240
        %v2243 = vmul.f32 0.5, %v2242
        %v2244 = vsub.f32 1.5, %v2243
        %v2245 = vmul.f32 %v2240, %v2244
        %vm2246 = vweird.f32 %v2229
        %vm2247 = vweird.f32 %v2240
        %vm2248 = vmor %vm2246, %vm2247
        %v2249 = vsel %vm2248, %v2240, %v2245
        %v2250 = vmul.f32 %v2212, %v2239
        %v2251 = vmul.f32 %v2213, %v2239
        %v2252 = vmul.f32 %v2214, %v2249
        %v2253 = vmul.f32 %v2215, %v2249
        %v2255 = vperm.slane %v2202, 0
        %v2256 = vperm.slane %v2202, 1
        %v2259 = vmul.f32 %v2250, %v2255
        %v2260 = vmul.f32 %v2251, %v2256
        %v2261 = vmul.f32 %v2252, %v2255
        %v2262 = vmul.f32 %v2253, %v2256
        %v2264 = vperm.slane %v2203, 0
        %v2265 = vperm.slane %v2203, 1
        %v2268 = vadd.f32 %v2259, %v2264
        %v2269 = vadd.f32 %v2260, %v2265
        %v2270 = vadd.f32 %v2261, %v2264
        %v2271 = vadd.f32 %v2262, %v2265
        %v2272 = vpack.c.bf16 %v2270, %v2268
        %v2273 = vpack.c.bf16 %v2271, %v2269
        %v2274 = vld [vmem:[%s716] sm:$0xff]
        %v2275 = vld [vmem:[%s716 + $0x8] sm:$0xff]
        %v2276 = vld [vmem:[%s716 + $0x10] sm:$0xff]
        %v2277 = vld [vmem:[%s716 + $0x18] sm:$0xff]
        %v2278 = vld [vmem:[%s716 + $0x20] sm:$0xff]
        %v2279 = vld [vmem:[%s716 + $0x28] sm:$0xff]
        %v2280 = vld [vmem:[%s716 + $0x30] sm:$0xff]
        %v2281 = vld [vmem:[%s716 + $0x38] sm:$0xff]
        %v2282 = vld [vmem:[%s716 + $0x40] sm:$0xff]
        %v2283 = vld [vmem:[%s716 + $0x48] sm:$0xff]
        %v2284 = vld [vmem:[%s716 + $0x50] sm:$0xff]
        %v2285 = vld [vmem:[%s716 + $0x58] sm:$0xff]
        %v2286 = vld [vmem:[%s716 + $0x60] sm:$0xff]
        %v2287 = vld [vmem:[%s716 + $0x68] sm:$0xff]
        %v2288 = vld [vmem:[%s716 + $0x70] sm:$0xff]
        %v2289 = vld [vmem:[%s716 + $0x78] sm:$0xff]
        %v2290 = vld [vmem:[%s716 + $0x80] sm:$0xff]
        %v2291 = vld [vmem:[%s716 + $0x88] sm:$0xff]
        %v2292 = vld [vmem:[%s716 + $0x90] sm:$0xff]
        %v2293 = vld [vmem:[%s716 + $0x98] sm:$0xff]
        %v2294 = vld [vmem:[%s716 + $0xa0] sm:$0xff]
        %v2295 = vld [vmem:[%s716 + $0xa8] sm:$0xff]
        %v2296 = vld [vmem:[%s716 + $0xb0] sm:$0xff]
        %v2297 = vld [vmem:[%s716 + $0xb8] sm:$0xff]
        %v2298 = vld [vmem:[%s716 + $0xc0] sm:$0xff]
        %v2299 = vld [vmem:[%s716 + $0xc8] sm:$0xff]
        %v2300 = vld [vmem:[%s716 + $0xd0] sm:$0xff]
        %v2301 = vld [vmem:[%s716 + $0xd8] sm:$0xff]
        %v2302 = vld [vmem:[%s716 + $0xe0] sm:$0xff]
        %v2303 = vld [vmem:[%s716 + $0xe8] sm:$0xff]
        %v2304 = vld [vmem:[%s716 + $0xf0] sm:$0xff]
        %v2305 = vld [vmem:[%s716 + $0xf8] sm:$0xff]
        %v2306 = vld [vmem:[%s716 + $0x100] sm:$0xff]
        %v2307 = vld [vmem:[%s716 + $0x108] sm:$0xff]
        %v2308 = vld [vmem:[%s716 + $0x110] sm:$0xff]
        %v2309 = vld [vmem:[%s716 + $0x118] sm:$0xff]
        %v2310 = vld [vmem:[%s716 + $0x120] sm:$0xff]
        %v2311 = vld [vmem:[%s716 + $0x128] sm:$0xff]
        %v2312 = vld [vmem:[%s716 + $0x130] sm:$0xff]
        %v2313 = vld [vmem:[%s716 + $0x138] sm:$0xff]
        %v2314 = vld [vmem:[%s716 + $0x140] sm:$0xff]
        %v2315 = vld [vmem:[%s716 + $0x148] sm:$0xff]
        %v2316 = vld [vmem:[%s716 + $0x150] sm:$0xff]
        %v2317 = vld [vmem:[%s716 + $0x158] sm:$0xff]
        %v2318 = vld [vmem:[%s716 + $0x160] sm:$0xff]
        %v2319 = vld [vmem:[%s716 + $0x168] sm:$0xff]
        %v2320 = vld [vmem:[%s716 + $0x170] sm:$0xff]
        %v2321 = vld [vmem:[%s716 + $0x178] sm:$0xff]
        %v2322 = vld [vmem:[%s716 + $0x180] sm:$0xff]
        %v2323 = vld [vmem:[%s716 + $0x188] sm:$0xff]
        %v2324 = vld [vmem:[%s716 + $0x190] sm:$0xff]
        %v2325 = vld [vmem:[%s716 + $0x198] sm:$0xff]
        %v2326 = vld [vmem:[%s716 + $0x1a0] sm:$0xff]
        %v2327 = vld [vmem:[%s716 + $0x1a8] sm:$0xff]
        %v2328 = vld [vmem:[%s716 + $0x1b0] sm:$0xff]
        %v2329 = vld [vmem:[%s716 + $0x1b8] sm:$0xff]
        %v2330 = vld [vmem:[%s716 + $0x1c0] sm:$0xff]
        %v2331 = vld [vmem:[%s716 + $0x1c8] sm:$0xff]
        %v2332 = vld [vmem:[%s716 + $0x1d0] sm:$0xff]
        %v2333 = vld [vmem:[%s716 + $0x1d8] sm:$0xff]
        %v2334 = vld [vmem:[%s716 + $0x1e0] sm:$0xff]
        %v2335 = vld [vmem:[%s716 + $0x1e8] sm:$0xff]
        %v2336 = vld [vmem:[%s716 + $0x1f0] sm:$0xff]
        %v2337 = vld [vmem:[%s716 + $0x1f8] sm:$0xff]
        %v2338 = vld [vmem:[%s716 + $0x200] sm:$0xff]
        %v2339 = vld [vmem:[%s716 + $0x208] sm:$0xff]
        %v2340 = vld [vmem:[%s716 + $0x210] sm:$0xff]
        %v2341 = vld [vmem:[%s716 + $0x218] sm:$0xff]
        %v2342 = vld [vmem:[%s716 + $0x220] sm:$0xff]
        %v2343 = vld [vmem:[%s716 + $0x228] sm:$0xff]
        %v2344 = vld [vmem:[%s716 + $0x230] sm:$0xff]
        %v2345 = vld [vmem:[%s716 + $0x238] sm:$0xff]
        %v2346 = vld [vmem:[%s716 + $0x240] sm:$0xff]
        %v2347 = vld [vmem:[%s716 + $0x248] sm:$0xff]
        %v2348 = vld [vmem:[%s716 + $0x250] sm:$0xff]
        %v2349 = vld [vmem:[%s716 + $0x258] sm:$0xff]
        %v2350 = vld [vmem:[%s716 + $0x260] sm:$0xff]
        %v2351 = vld [vmem:[%s716 + $0x268] sm:$0xff]
        %v2352 = vld [vmem:[%s716 + $0x270] sm:$0xff]
        %v2353 = vld [vmem:[%s716 + $0x278] sm:$0xff]
        %v2354 = vld [vmem:[%s716 + $0x280] sm:$0xff]
        %v2355 = vld [vmem:[%s716 + $0x288] sm:$0xff]
        %v2356 = vld [vmem:[%s716 + $0x290] sm:$0xff]
        %v2357 = vld [vmem:[%s716 + $0x298] sm:$0xff]
        %v2358 = vld [vmem:[%s716 + $0x2a0] sm:$0xff]
        %v2359 = vld [vmem:[%s716 + $0x2a8] sm:$0xff]
        %v2360 = vld [vmem:[%s716 + $0x2b0] sm:$0xff]
        %v2361 = vld [vmem:[%s716 + $0x2b8] sm:$0xff]
        %v2362 = vld [vmem:[%s716 + $0x2c0] sm:$0xff]
        %v2363 = vld [vmem:[%s716 + $0x2c8] sm:$0xff]
        %v2364 = vld [vmem:[%s716 + $0x2d0] sm:$0xff]
        %v2365 = vld [vmem:[%s716 + $0x2d8] sm:$0xff]
        %v2366 = vld [vmem:[%s716 + $0x2e0] sm:$0xff]
        %v2367 = vld [vmem:[%s716 + $0x2e8] sm:$0xff]
        %v2368 = vld [vmem:[%s716 + $0x2f0] sm:$0xff]
        %v2369 = vld [vmem:[%s716 + $0x2f8] sm:$0xff]
        %v2370 = vld [vmem:[%s716 + $0x300] sm:$0xff]
        %v2371 = vld [vmem:[%s716 + $0x308] sm:$0xff]
        %v2372 = vld [vmem:[%s716 + $0x310] sm:$0xff]
        %v2373 = vld [vmem:[%s716 + $0x318] sm:$0xff]
        %v2374 = vld [vmem:[%s716 + $0x320] sm:$0xff]
        %v2375 = vld [vmem:[%s716 + $0x328] sm:$0xff]
        %v2376 = vld [vmem:[%s716 + $0x330] sm:$0xff]
        %v2377 = vld [vmem:[%s716 + $0x338] sm:$0xff]
        %v2378 = vld [vmem:[%s716 + $0x340] sm:$0xff]
        %v2379 = vld [vmem:[%s716 + $0x348] sm:$0xff]
        %v2380 = vld [vmem:[%s716 + $0x350] sm:$0xff]
        %v2381 = vld [vmem:[%s716 + $0x358] sm:$0xff]
        %v2382 = vld [vmem:[%s716 + $0x360] sm:$0xff]
        %v2383 = vld [vmem:[%s716 + $0x368] sm:$0xff]
        %v2384 = vld [vmem:[%s716 + $0x370] sm:$0xff]
        %v2385 = vld [vmem:[%s716 + $0x378] sm:$0xff]
        %v2386 = vld [vmem:[%s716 + $0x380] sm:$0xff]
        %v2387 = vld [vmem:[%s716 + $0x388] sm:$0xff]
        %v2388 = vld [vmem:[%s716 + $0x390] sm:$0xff]
        %v2389 = vld [vmem:[%s716 + $0x398] sm:$0xff]
        %v2390 = vld [vmem:[%s716 + $0x3a0] sm:$0xff]
        %v2391 = vld [vmem:[%s716 + $0x3a8] sm:$0xff]
        %v2392 = vld [vmem:[%s716 + $0x3b0] sm:$0xff]
        %v2393 = vld [vmem:[%s716 + $0x3b8] sm:$0xff]
        %v2394 = vld [vmem:[%s716 + $0x3c0] sm:$0xff]
        %v2395 = vld [vmem:[%s716 + $0x3c8] sm:$0xff]
        %v2396 = vld [vmem:[%s716 + $0x3d0] sm:$0xff]
        %v2397 = vld [vmem:[%s716 + $0x3d8] sm:$0xff]
        %v2398 = vld [vmem:[%s716 + $0x3e0] sm:$0xff]
        %v2399 = vld [vmem:[%s716 + $0x3e8] sm:$0xff]
        %v2400 = vld [vmem:[%s716 + $0x3f0] sm:$0xff]
        %v2401 = vld [vmem:[%s716 + $0x3f8] sm:$0xff]
        %v2402 = vld [vmem:[%s854] sm:$0xff]
        %v2404 = vperm.slane %v2402, 0
        %v2405 = vperm.slane %v2402, 1
        %v2406 = vperm.slane %v2402, 2
        %v2407 = vperm.slane %v2402, 3
        %v2408 = vperm.slane %v2402, 4
        %v2409 = vperm.slane %v2402, 5
        %v2410 = vperm.slane %v2402, 6
        %v2411 = vperm.slane %v2402, 7
        %v2548 = vunpack.c.l.b16 %v2274
        %v2549 = vunpack.c.h.b16 %v2274
        %v2550 = vunpack.c.l.b16 %v2275
        %v2551 = vunpack.c.h.b16 %v2275
        %v2552 = vunpack.c.l.b16 %v2276
        %v2553 = vunpack.c.h.b16 %v2276
        %v2554 = vunpack.c.l.b16 %v2277
        %v2555 = vunpack.c.h.b16 %v2277
        %v2556 = vunpack.c.l.b16 %v2278
        %v2557 = vunpack.c.h.b16 %v2278
        %v2558 = vunpack.c.l.b16 %v2279
        %v2559 = vunpack.c.h.b16 %v2279
        %v2560 = vunpack.c.l.b16 %v2280
        %v2561 = vunpack.c.h.b16 %v2280
        %v2562 = vunpack.c.l.b16 %v2281
        %v2563 = vunpack.c.h.b16 %v2281
        %v2564 = vunpack.c.l.b16 %v2282
        %v2565 = vunpack.c.h.b16 %v2282
        %v2566 = vunpack.c.l.b16 %v2283
        %v2567 = vunpack.c.h.b16 %v2283
        %v2568 = vunpack.c.l.b16 %v2284
        %v2569 = vunpack.c.h.b16 %v2284
        %v2570 = vunpack.c.l.b16 %v2285
        %v2571 = vunpack.c.h.b16 %v2285
        %v2572 = vunpack.c.l.b16 %v2286
        %v2573 = vunpack.c.h.b16 %v2286
        %v2574 = vunpack.c.l.b16 %v2287
        %v2575 = vunpack.c.h.b16 %v2287
        %v2576 = vunpack.c.l.b16 %v2288
        %v2577 = vunpack.c.h.b16 %v2288
        %v2578 = vunpack.c.l.b16 %v2289
        %v2579 = vunpack.c.h.b16 %v2289
        %v2580 = vunpack.c.l.b16 %v2290
        %v2581 = vunpack.c.h.b16 %v2290
        %v2582 = vunpack.c.l.b16 %v2291
        %v2583 = vunpack.c.h.b16 %v2291
        %v2584 = vunpack.c.l.b16 %v2292
        %v2585 = vunpack.c.h.b16 %v2292
        %v2586 = vunpack.c.l.b16 %v2293
        %v2587 = vunpack.c.h.b16 %v2293
        %v2588 = vunpack.c.l.b16 %v2294
        %v2589 = vunpack.c.h.b16 %v2294
        %v2590 = vunpack.c.l.b16 %v2295
        %v2591 = vunpack.c.h.b16 %v2295
        %v2592 = vunpack.c.l.b16 %v2296
        %v2593 = vunpack.c.h.b16 %v2296
        %v2594 = vunpack.c.l.b16 %v2297
        %v2595 = vunpack.c.h.b16 %v2297
        %v2596 = vunpack.c.l.b16 %v2298
        %v2597 = vunpack.c.h.b16 %v2298
        %v2598 = vunpack.c.l.b16 %v2299
        %v2599 = vunpack.c.h.b16 %v2299
        %v2600 = vunpack.c.l.b16 %v2300
        %v2601 = vunpack.c.h.b16 %v2300
        %v2602 = vunpack.c.l.b16 %v2301
        %v2603 = vunpack.c.h.b16 %v2301
        %v2604 = vunpack.c.l.b16 %v2302
        %v2605 = vunpack.c.h.b16 %v2302
        %v2606 = vunpack.c.l.b16 %v2303
        %v2607 = vunpack.c.h.b16 %v2303
        %v2608 = vunpack.c.l.b16 %v2304
        %v2609 = vunpack.c.h.b16 %v2304
        %v2610 = vunpack.c.l.b16 %v2305
        %v2611 = vunpack.c.h.b16 %v2305
        %v2612 = vunpack.c.l.b16 %v2306
        %v2613 = vunpack.c.h.b16 %v2306
        %v2614 = vunpack.c.l.b16 %v2307
        %v2615 = vunpack.c.h.b16 %v2307
        %v2616 = vunpack.c.l.b16 %v2308
        %v2617 = vunpack.c.h.b16 %v2308
        %v2618 = vunpack.c.l.b16 %v2309
        %v2619 = vunpack.c.h.b16 %v2309
        %v2620 = vunpack.c.l.b16 %v2310
        %v2621 = vunpack.c.h.b16 %v2310
        %v2622 = vunpack.c.l.b16 %v2311
        %v2623 = vunpack.c.h.b16 %v2311
        %v2624 = vunpack.c.l.b16 %v2312
        %v2625 = vunpack.c.h.b16 %v2312
        %v2626 = vunpack.c.l.b16 %v2313
        %v2627 = vunpack.c.h.b16 %v2313
        %v2628 = vunpack.c.l.b16 %v2314
        %v2629 = vunpack.c.h.b16 %v2314
        %v2630 = vunpack.c.l.b16 %v2315
        %v2631 = vunpack.c.h.b16 %v2315
        %v2632 = vunpack.c.l.b16 %v2316
        %v2633 = vunpack.c.h.b16 %v2316
        %v2634 = vunpack.c.l.b16 %v2317
        %v2635 = vunpack.c.h.b16 %v2317
        %v2636 = vunpack.c.l.b16 %v2318
        %v2637 = vunpack.c.h.b16 %v2318
        %v2638 = vunpack.c.l.b16 %v2319
        %v2639 = vunpack.c.h.b16 %v2319
        %v2640 = vunpack.c.l.b16 %v2320
        %v2641 = vunpack.c.h.b16 %v2320
        %v2642 = vunpack.c.l.b16 %v2321
        %v2643 = vunpack.c.h.b16 %v2321
        %v2644 = vunpack.c.l.b16 %v2322
        %v2645 = vunpack.c.h.b16 %v2322
        %v2646 = vunpack.c.l.b16 %v2323
        %v2647 = vunpack.c.h.b16 %v2323
        %v2648 = vunpack.c.l.b16 %v2324
        %v2649 = vunpack.c.h.b16 %v2324
        %v2650 = vunpack.c.l.b16 %v2325
        %v2651 = vunpack.c.h.b16 %v2325
        %v2652 = vunpack.c.l.b16 %v2326
        %v2653 = vunpack.c.h.b16 %v2326
        %v2654 = vunpack.c.l.b16 %v2327
        %v2655 = vunpack.c.h.b16 %v2327
        %v2656 = vunpack.c.l.b16 %v2328
        %v2657 = vunpack.c.h.b16 %v2328
        %v2658 = vunpack.c.l.b16 %v2329
        %v2659 = vunpack.c.h.b16 %v2329
        %v2660 = vunpack.c.l.b16 %v2330
        %v2661 = vunpack.c.h.b16 %v2330
        %v2662 = vunpack.c.l.b16 %v2331
        %v2663 = vunpack.c.h.b16 %v2331
        %v2664 = vunpack.c.l.b16 %v2332
        %v2665 = vunpack.c.h.b16 %v2332
        %v2666 = vunpack.c.l.b16 %v2333
        %v2667 = vunpack.c.h.b16 %v2333
        %v2668 = vunpack.c.l.b16 %v2334
        %v2669 = vunpack.c.h.b16 %v2334
        %v2670 = vunpack.c.l.b16 %v2335
        %v2671 = vunpack.c.h.b16 %v2335
        %v2672 = vunpack.c.l.b16 %v2336
        %v2673 = vunpack.c.h.b16 %v2336
        %v2674 = vunpack.c.l.b16 %v2337
        %v2675 = vunpack.c.h.b16 %v2337
        %v2676 = vunpack.c.l.b16 %v2338
        %v2677 = vunpack.c.h.b16 %v2338
        %v2678 = vunpack.c.l.b16 %v2339
        %v2679 = vunpack.c.h.b16 %v2339
        %v2680 = vunpack.c.l.b16 %v2340
        %v2681 = vunpack.c.h.b16 %v2340
        %v2682 = vunpack.c.l.b16 %v2341
        %v2683 = vunpack.c.h.b16 %v2341
        %v2684 = vunpack.c.l.b16 %v2342
        %v2685 = vunpack.c.h.b16 %v2342
        %v2686 = vunpack.c.l.b16 %v2343
        %v2687 = vunpack.c.h.b16 %v2343
        %v2688 = vunpack.c.l.b16 %v2344
        %v2689 = vunpack.c.h.b16 %v2344
        %v2690 = vunpack.c.l.b16 %v2345
        %v2691 = vunpack.c.h.b16 %v2345
        %v2692 = vunpack.c.l.b16 %v2346
        %v2693 = vunpack.c.h.b16 %v2346
        %v2694 = vunpack.c.l.b16 %v2347
        %v2695 = vunpack.c.h.b16 %v2347
        %v2696 = vunpack.c.l.b16 %v2348
        %v2697 = vunpack.c.h.b16 %v2348
        %v2698 = vunpack.c.l.b16 %v2349
        %v2699 = vunpack.c.h.b16 %v2349
        %v2700 = vunpack.c.l.b16 %v2350
        %v2701 = vunpack.c.h.b16 %v2350
        %v2702 = vunpack.c.l.b16 %v2351
        %v2703 = vunpack.c.h.b16 %v2351
        %v2704 = vunpack.c.l.b16 %v2352
        %v2705 = vunpack.c.h.b16 %v2352
        %v2706 = vunpack.c.l.b16 %v2353
        %v2707 = vunpack.c.h.b16 %v2353
        %v2708 = vunpack.c.l.b16 %v2354
        %v2709 = vunpack.c.h.b16 %v2354
        %v2710 = vunpack.c.l.b16 %v2355
        %v2711 = vunpack.c.h.b16 %v2355
        %v2712 = vunpack.c.l.b16 %v2356
        %v2713 = vunpack.c.h.b16 %v2356
        %v2714 = vunpack.c.l.b16 %v2357
        %v2715 = vunpack.c.h.b16 %v2357
        %v2716 = vunpack.c.l.b16 %v2358
        %v2717 = vunpack.c.h.b16 %v2358
        %v2718 = vunpack.c.l.b16 %v2359
        %v2719 = vunpack.c.h.b16 %v2359
        %v2720 = vunpack.c.l.b16 %v2360
        %v2721 = vunpack.c.h.b16 %v2360
        %v2722 = vunpack.c.l.b16 %v2361
        %v2723 = vunpack.c.h.b16 %v2361
        %v2724 = vunpack.c.l.b16 %v2362
        %v2725 = vunpack.c.h.b16 %v2362
        %v2726 = vunpack.c.l.b16 %v2363
        %v2727 = vunpack.c.h.b16 %v2363
        %v2728 = vunpack.c.l.b16 %v2364
        %v2729 = vunpack.c.h.b16 %v2364
        %v2730 = vunpack.c.l.b16 %v2365
        %v2731 = vunpack.c.h.b16 %v2365
        %v2732 = vunpack.c.l.b16 %v2366
        %v2733 = vunpack.c.h.b16 %v2366
        %v2734 = vunpack.c.l.b16 %v2367
        %v2735 = vunpack.c.h.b16 %v2367
        %v2736 = vunpack.c.l.b16 %v2368
        %v2737 = vunpack.c.h.b16 %v2368
        %v2738 = vunpack.c.l.b16 %v2369
        %v2739 = vunpack.c.h.b16 %v2369
        %v2740 = vunpack.c.l.b16 %v2370
        %v2741 = vunpack.c.h.b16 %v2370
        %v2742 = vunpack.c.l.b16 %v2371
        %v2743 = vunpack.c.h.b16 %v2371
        %v2744 = vunpack.c.l.b16 %v2372
        %v2745 = vunpack.c.h.b16 %v2372
        %v2746 = vunpack.c.l.b16 %v2373
        %v2747 = vunpack.c.h.b16 %v2373
        %v2748 = vunpack.c.l.b16 %v2374
        %v2749 = vunpack.c.h.b16 %v2374
        %v2750 = vunpack.c.l.b16 %v2375
        %v2751 = vunpack.c.h.b16 %v2375
        %v2752 = vunpack.c.l.b16 %v2376
        %v2753 = vunpack.c.h.b16 %v2376
        %v2754 = vunpack.c.l.b16 %v2377
        %v2755 = vunpack.c.h.b16 %v2377
        %v2756 = vunpack.c.l.b16 %v2378
        %v2757 = vunpack.c.h.b16 %v2378
        %v2758 = vunpack.c.l.b16 %v2379
        %v2759 = vunpack.c.h.b16 %v2379
        %v2760 = vunpack.c.l.b16 %v2380
        %v2761 = vunpack.c.h.b16 %v2380
        %v2762 = vunpack.c.l.b16 %v2381
        %v2763 = vunpack.c.h.b16 %v2381
        %v2764 = vunpack.c.l.b16 %v2382
        %v2765 = vunpack.c.h.b16 %v2382
        %v2766 = vunpack.c.l.b16 %v2383
        %v2767 = vunpack.c.h.b16 %v2383
        %v2768 = vunpack.c.l.b16 %v2384
        %v2769 = vunpack.c.h.b16 %v2384
        %v2770 = vunpack.c.l.b16 %v2385
        %v2771 = vunpack.c.h.b16 %v2385
        %v2772 = vunpack.c.l.b16 %v2386
        %v2773 = vunpack.c.h.b16 %v2386
        %v2774 = vunpack.c.l.b16 %v2387
        %v2775 = vunpack.c.h.b16 %v2387
        %v2776 = vunpack.c.l.b16 %v2388
        %v2777 = vunpack.c.h.b16 %v2388
        %v2778 = vunpack.c.l.b16 %v2389
        %v2779 = vunpack.c.h.b16 %v2389
        %v2780 = vunpack.c.l.b16 %v2390
        %v2781 = vunpack.c.h.b16 %v2390
        %v2782 = vunpack.c.l.b16 %v2391
        %v2783 = vunpack.c.h.b16 %v2391
        %v2784 = vunpack.c.l.b16 %v2392
        %v2785 = vunpack.c.h.b16 %v2392
        %v2786 = vunpack.c.l.b16 %v2393
        %v2787 = vunpack.c.h.b16 %v2393
        %v2788 = vunpack.c.l.b16 %v2394
        %v2789 = vunpack.c.h.b16 %v2394
        %v2790 = vunpack.c.l.b16 %v2395
        %v2791 = vunpack.c.h.b16 %v2395
        %v2792 = vunpack.c.l.b16 %v2396
        %v2793 = vunpack.c.h.b16 %v2396
        %v2794 = vunpack.c.l.b16 %v2397
        %v2795 = vunpack.c.h.b16 %v2397
        %v2796 = vunpack.c.l.b16 %v2398
        %v2797 = vunpack.c.h.b16 %v2398
        %v2798 = vunpack.c.l.b16 %v2399
        %v2799 = vunpack.c.h.b16 %v2399
        %v2800 = vunpack.c.l.b16 %v2400
        %v2801 = vunpack.c.h.b16 %v2400
        %v2802 = vunpack.c.l.b16 %v2401
        %v2803 = vunpack.c.h.b16 %v2401
        %v2804 = vpack.c.b16 %v2556, %v2548
        %v2805 = vpack.c.b16 %v2557, %v2549
        %v2806 = vpack.c.b16 %v2558, %v2550
        %v2807 = vpack.c.b16 %v2559, %v2551
        %v2808 = vpack.c.b16 %v2560, %v2552
        %v2809 = vpack.c.b16 %v2561, %v2553
        %v2810 = vpack.c.b16 %v2562, %v2554
        %v2811 = vpack.c.b16 %v2563, %v2555
        %v2812 = vpack.c.b16 %v2572, %v2564
        %v2813 = vpack.c.b16 %v2573, %v2565
        %v2814 = vpack.c.b16 %v2574, %v2566
        %v2815 = vpack.c.b16 %v2575, %v2567
        %v2816 = vpack.c.b16 %v2576, %v2568
        %v2817 = vpack.c.b16 %v2577, %v2569
        %v2818 = vpack.c.b16 %v2578, %v2570
        %v2819 = vpack.c.b16 %v2579, %v2571
        %v2820 = vpack.c.b16 %v2588, %v2580
        %v2821 = vpack.c.b16 %v2589, %v2581
        %v2822 = vpack.c.b16 %v2590, %v2582
        %v2823 = vpack.c.b16 %v2591, %v2583
        %v2824 = vpack.c.b16 %v2592, %v2584
        %v2825 = vpack.c.b16 %v2593, %v2585
        %v2826 = vpack.c.b16 %v2594, %v2586
        %v2827 = vpack.c.b16 %v2595, %v2587
        %v2828 = vpack.c.b16 %v2604, %v2596
        %v2829 = vpack.c.b16 %v2605, %v2597
        %v2830 = vpack.c.b16 %v2606, %v2598
        %v2831 = vpack.c.b16 %v2607, %v2599
        %v2832 = vpack.c.b16 %v2608, %v2600
        %v2833 = vpack.c.b16 %v2609, %v2601
        %v2834 = vpack.c.b16 %v2610, %v2602
        %v2835 = vpack.c.b16 %v2611, %v2603
        %v2836 = vpack.c.b16 %v2620, %v2612
        %v2837 = vpack.c.b16 %v2621, %v2613
        %v2838 = vpack.c.b16 %v2622, %v2614
        %v2839 = vpack.c.b16 %v2623, %v2615
        %v2840 = vpack.c.b16 %v2624, %v2616
        %v2841 = vpack.c.b16 %v2625, %v2617
        %v2842 = vpack.c.b16 %v2626, %v2618
        %v2843 = vpack.c.b16 %v2627, %v2619
        %v2844 = vpack.c.b16 %v2636, %v2628
        %v2845 = vpack.c.b16 %v2637, %v2629
        %v2846 = vpack.c.b16 %v2638, %v2630
        %v2847 = vpack.c.b16 %v2639, %v2631
        %v2848 = vpack.c.b16 %v2640, %v2632
        %v2849 = vpack.c.b16 %v2641, %v2633
        %v2850 = vpack.c.b16 %v2642, %v2634
        %v2851 = vpack.c.b16 %v2643, %v2635
        %v2852 = vpack.c.b16 %v2652, %v2644
        %v2853 = vpack.c.b16 %v2653, %v2645
        %v2854 = vpack.c.b16 %v2654, %v2646
        %v2855 = vpack.c.b16 %v2655, %v2647
        %v2856 = vpack.c.b16 %v2656, %v2648
        %v2857 = vpack.c.b16 %v2657, %v2649
        %v2858 = vpack.c.b16 %v2658, %v2650
        %v2859 = vpack.c.b16 %v2659, %v2651
        %v2860 = vpack.c.b16 %v2668, %v2660
        %v2861 = vpack.c.b16 %v2669, %v2661
        %v2862 = vpack.c.b16 %v2670, %v2662
        %v2863 = vpack.c.b16 %v2671, %v2663
        %v2864 = vpack.c.b16 %v2672, %v2664
        %v2865 = vpack.c.b16 %v2673, %v2665
        %v2866 = vpack.c.b16 %v2674, %v2666
        %v2867 = vpack.c.b16 %v2675, %v2667
        %v2868 = vpack.c.b16 %v2684, %v2676
        %v2869 = vpack.c.b16 %v2685, %v2677
        %v2870 = vpack.c.b16 %v2686, %v2678
        %v2871 = vpack.c.b16 %v2687, %v2679
        %v2872 = vpack.c.b16 %v2688, %v2680
        %v2873 = vpack.c.b16 %v2689, %v2681
        %v2874 = vpack.c.b16 %v2690, %v2682
        %v2875 = vpack.c.b16 %v2691, %v2683
        %v2876 = vpack.c.b16 %v2700, %v2692
        %v2877 = vpack.c.b16 %v2701, %v2693
        %v2878 = vpack.c.b16 %v2702, %v2694
        %v2879 = vpack.c.b16 %v2703, %v2695
        %v2880 = vpack.c.b16 %v2704, %v2696
        %v2881 = vpack.c.b16 %v2705, %v2697
        %v2882 = vpack.c.b16 %v2706, %v2698
        %v2883 = vpack.c.b16 %v2707, %v2699
        %v2884 = vpack.c.b16 %v2716, %v2708
        %v2885 = vpack.c.b16 %v2717, %v2709
        %v2886 = vpack.c.b16 %v2718, %v2710
        %v2887 = vpack.c.b16 %v2719, %v2711
        %v2888 = vpack.c.b16 %v2720, %v2712
        %v2889 = vpack.c.b16 %v2721, %v2713
        %v2890 = vpack.c.b16 %v2722, %v2714
        %v2891 = vpack.c.b16 %v2723, %v2715
        %v2892 = vpack.c.b16 %v2732, %v2724
        %v2893 = vpack.c.b16 %v2733, %v2725
        %v2894 = vpack.c.b16 %v2734, %v2726
        %v2895 = vpack.c.b16 %v2735, %v2727
        %v2896 = vpack.c.b16 %v2736, %v2728
        %v2897 = vpack.c.b16 %v2737, %v2729
        %v2898 = vpack.c.b16 %v2738, %v2730
        %v2899 = vpack.c.b16 %v2739, %v2731
        %v2900 = vpack.c.b16 %v2748, %v2740
        %v2901 = vpack.c.b16 %v2749, %v2741
        %v2902 = vpack.c.b16 %v2750, %v2742
        %v2903 = vpack.c.b16 %v2751, %v2743
        %v2904 = vpack.c.b16 %v2752, %v2744
        %v2905 = vpack.c.b16 %v2753, %v2745
        %v2906 = vpack.c.b16 %v2754, %v2746
        %v2907 = vpack.c.b16 %v2755, %v2747
        %v2908 = vpack.c.b16 %v2764, %v2756
        %v2909 = vpack.c.b16 %v2765, %v2757
        %v2910 = vpack.c.b16 %v2766, %v2758
        %v2911 = vpack.c.b16 %v2767, %v2759
        %v2912 = vpack.c.b16 %v2768, %v2760
        %v2913 = vpack.c.b16 %v2769, %v2761
        %v2914 = vpack.c.b16 %v2770, %v2762
        %v2915 = vpack.c.b16 %v2771, %v2763
        %v2916 = vpack.c.b16 %v2780, %v2772
        %v2917 = vpack.c.b16 %v2781, %v2773
        %v2918 = vpack.c.b16 %v2782, %v2774
        %v2919 = vpack.c.b16 %v2783, %v2775
        %v2920 = vpack.c.b16 %v2784, %v2776
        %v2921 = vpack.c.b16 %v2785, %v2777
        %v2922 = vpack.c.b16 %v2786, %v2778
        %v2923 = vpack.c.b16 %v2787, %v2779
        %v2924 = vpack.c.b16 %v2796, %v2788
        %v2925 = vpack.c.b16 %v2797, %v2789
        %v2926 = vpack.c.b16 %v2798, %v2790
        %v2927 = vpack.c.b16 %v2799, %v2791
        %v2928 = vpack.c.b16 %v2800, %v2792
        %v2929 = vpack.c.b16 %v2801, %v2793
        %v2930 = vpack.c.b16 %v2802, %v2794
        %v2931 = vpack.c.b16 %v2803, %v2795
        %3060 = vmatpush.bf16.msra.mxu0 %v2860
        %3061 = vmatpush.bf16.msra.mxu0 %v2852
        %3062 = vmatpush.bf16.msra.mxu0 %v2844
        %3063 = vmatpush.bf16.msra.mxu0 %v2836
        %3064 = vmatpush.bf16.msra.mxu0 %v2828
        %3065 = vmatpush.bf16.msra.mxu0 %v2820
        %3066 = vmatpush.bf16.msra.mxu0 %v2812
        %3067 = vmatpush.bf16.msra.mxu0 %v2804
        %3068 = vmatmul.bf16.gmra.mxu0 %v2272
        %v3069 = vpop.f32.mrf.mxu0
        %v3070 = vadd.f32 %v2404, %v3069
        %v3071 = vpop.f32.mrf.mxu0
        %v3072 = vadd.f32 %v2404, %v3071
        %3073 = vdwg.mxu0
        %3074 = vmatpush.bf16.msra.mxu0 %v2924
        %3075 = vmatpush.bf16.msra.mxu0 %v2916
        %3076 = vmatpush.bf16.msra.mxu0 %v2908
        %3077 = vmatpush.bf16.msra.mxu0 %v2900
        %3078 = vmatpush.bf16.msra.mxu0 %v2892
        %3079 = vmatpush.bf16.msra.mxu0 %v2884
        %3080 = vmatpush.bf16.msra.mxu0 %v2876
        %3081 = vmatpush.bf16.msra.mxu0 %v2868
        %3082 = vmatmul.bf16.gmra.mxu0 %v2273
        %v3083 = vpop.f32.mrf.mxu0
        %v3084 = vadd.f32 %v3070, %v3083
        %v3085 = vpop.f32.mrf.mxu0
        %v3086 = vadd.f32 %v3072, %v3085
        %3087 = vdwg.mxu0
        %3088 = vmatpush.bf16.msra.mxu0 %v2861
        %3089 = vmatpush.bf16.msra.mxu0 %v2853
        %3090 = vmatpush.bf16.msra.mxu0 %v2845
        %3091 = vmatpush.bf16.msra.mxu0 %v2837
        %3092 = vmatpush.bf16.msra.mxu0 %v2829
        %3093 = vmatpush.bf16.msra.mxu0 %v2821
        %3094 = vmatpush.bf16.msra.mxu0 %v2813
        %3095 = vmatpush.bf16.msra.mxu0 %v2805
        %3096 = vmatmul.bf16.gmra.mxu0 %v2272
        %v3097 = vpop.f32.mrf.mxu0
        %v3098 = vadd.f32 %v2405, %v3097
        %v3099 = vpop.f32.mrf.mxu0
        %v3100 = vadd.f32 %v2405, %v3099
        %3101 = vdwg.mxu0
        %3102 = vmatpush.bf16.msra.mxu0 %v2925
        %3103 = vmatpush.bf16.msra.mxu0 %v2917
        %3104 = vmatpush.bf16.msra.mxu0 %v2909
        %3105 = vmatpush.bf16.msra.mxu0 %v2901
        %3106 = vmatpush.bf16.msra.mxu0 %v2893
        %3107 = vmatpush.bf16.msra.mxu0 %v2885
        %3108 = vmatpush.bf16.msra.mxu0 %v2877
        %3109 = vmatpush.bf16.msra.mxu0 %v2869
        %3110 = vmatmul.bf16.gmra.mxu0 %v2273
        %v3111 = vpop.f32.mrf.mxu0
        %v3112 = vadd.f32 %v3098, %v3111
        %v3113 = vpop.f32.mrf.mxu0
        %v3114 = vadd.f32 %v3100, %v3113
        %3115 = vdwg.mxu0
        %3116 = vmatpush.bf16.msra.mxu0 %v2862
        %3117 = vmatpush.bf16.msra.mxu0 %v2854
        %3118 = vmatpush.bf16.msra.mxu0 %v2846
        %3119 = vmatpush.bf16.msra.mxu0 %v2838
        %3120 = vmatpush.bf16.msra.mxu0 %v2830
        %3121 = vmatpush.bf16.msra.mxu0 %v2822
        %3122 = vmatpush.bf16.msra.mxu0 %v2814
        %3123 = vmatpush.bf16.msra.mxu0 %v2806
        %3124 = vmatmul.bf16.gmra.mxu0 %v2272
        %v3125 = vpop.f32.mrf.mxu0
        %v3126 = vadd.f32 %v2406, %v3125
        %v3127 = vpop.f32.mrf.mxu0
        %v3128 = vadd.f32 %v2406, %v3127
        %3129 = vdwg.mxu0
        %3130 = vmatpush.bf16.msra.mxu0 %v2926
        %3131 = vmatpush.bf16.msra.mxu0 %v2918
        %3132 = vmatpush.bf16.msra.mxu0 %v2910
        %3133 = vmatpush.bf16.msra.mxu0 %v2902
        %3134 = vmatpush.bf16.msra.mxu0 %v2894
        %3135 = vmatpush.bf16.msra.mxu0 %v2886
        %3136 = vmatpush.bf16.msra.mxu0 %v2878
        %3137 = vmatpush.bf16.msra.mxu0 %v2870
        %3138 = vmatmul.bf16.gmra.mxu0 %v2273
        %v3139 = vpop.f32.mrf.mxu0
        %v3140 = vadd.f32 %v3126, %v3139
        %v3141 = vpop.f32.mrf.mxu0
        %v3142 = vadd.f32 %v3128, %v3141
        %3143 = vdwg.mxu0
        %3144 = vmatpush.bf16.msra.mxu0 %v2863
        %3145 = vmatpush.bf16.msra.mxu0 %v2855
        %3146 = vmatpush.bf16.msra.mxu0 %v2847
        %3147 = vmatpush.bf16.msra.mxu0 %v2839
        %3148 = vmatpush.bf16.msra.mxu0 %v2831
        %3149 = vmatpush.bf16.msra.mxu0 %v2823
        %3150 = vmatpush.bf16.msra.mxu0 %v2815
        %3151 = vmatpush.bf16.msra.mxu0 %v2807
        %3152 = vmatmul.bf16.gmra.mxu0 %v2272
        %v3153 = vpop.f32.mrf.mxu0
        %v3154 = vadd.f32 %v2407, %v3153
        %v3155 = vpop.f32.mrf.mxu0
        %v3156 = vadd.f32 %v2407, %v3155
        %3157 = vdwg.mxu0
        %3158 = vmatpush.bf16.msra.mxu0 %v2927
        %3159 = vmatpush.bf16.msra.mxu0 %v2919
        %3160 = vmatpush.bf16.msra.mxu0 %v2911
        %3161 = vmatpush.bf16.msra.mxu0 %v2903
        %3162 = vmatpush.bf16.msra.mxu0 %v2895
        %3163 = vmatpush.bf16.msra.mxu0 %v2887
        %3164 = vmatpush.bf16.msra.mxu0 %v2879
        %3165 = vmatpush.bf16.msra.mxu0 %v2871
        %3166 = vmatmul.bf16.gmra.mxu0 %v2273
        %v3167 = vpop.f32.mrf.mxu0
        %v3168 = vadd.f32 %v3154, %v3167
        %v3169 = vpop.f32.mrf.mxu0
        %v3170 = vadd.f32 %v3156, %v3169
        %3171 = vdwg.mxu0
        %3172 = vmatpush.bf16.msra.mxu0 %v2864
        %3173 = vmatpush.bf16.msra.mxu0 %v2856
        %3174 = vmatpush.bf16.msra.mxu0 %v2848
        %3175 = vmatpush.bf16.msra.mxu0 %v2840
        %3176 = vmatpush.bf16.msra.mxu0 %v2832
        %3177 = vmatpush.bf16.msra.mxu0 %v2824
        %3178 = vmatpush.bf16.msra.mxu0 %v2816
        %3179 = vmatpush.bf16.msra.mxu0 %v2808
        %3180 = vmatmul.bf16.gmra.mxu0 %v2272
        %v3181 = vpop.f32.mrf.mxu0
        %v3182 = vadd.f32 %v2408, %v3181
        %v3183 = vpop.f32.mrf.mxu0
        %v3184 = vadd.f32 %v2408, %v3183
        %3185 = vdwg.mxu0
        %3186 = vmatpush.bf16.msra.mxu0 %v2928
        %3187 = vmatpush.bf16.msra.mxu0 %v2920
        %3188 = vmatpush.bf16.msra.mxu0 %v2912
        %3189 = vmatpush.bf16.msra.mxu0 %v2904
        %3190 = vmatpush.bf16.msra.mxu0 %v2896
        %3191 = vmatpush.bf16.msra.mxu0 %v2888
        %3192 = vmatpush.bf16.msra.mxu0 %v2880
        %3193 = vmatpush.bf16.msra.mxu0 %v2872
        %3194 = vmatmul.bf16.gmra.mxu0 %v2273
        %v3195 = vpop.f32.mrf.mxu0
        %v3196 = vadd.f32 %v3182, %v3195
        %v3197 = vpop.f32.mrf.mxu0
        %v3198 = vadd.f32 %v3184, %v3197
        %3199 = vdwg.mxu0
        %3200 = vmatpush.bf16.msra.mxu0 %v2865
        %3201 = vmatpush.bf16.msra.mxu0 %v2857
        %3202 = vmatpush.bf16.msra.mxu0 %v2849
        %3203 = vmatpush.bf16.msra.mxu0 %v2841
        %3204 = vmatpush.bf16.msra.mxu0 %v2833
        %3205 = vmatpush.bf16.msra.mxu0 %v2825
        %3206 = vmatpush.bf16.msra.mxu0 %v2817
        %3207 = vmatpush.bf16.msra.mxu0 %v2809
        %3208 = vmatmul.bf16.gmra.mxu0 %v2272
        %v3209 = vpop.f32.mrf.mxu0
        %v3210 = vadd.f32 %v2409, %v3209
        %v3211 = vpop.f32.mrf.mxu0
        %v3212 = vadd.f32 %v2409, %v3211
        %3213 = vdwg.mxu0
        %3214 = vmatpush.bf16.msra.mxu0 %v2929
        %3215 = vmatpush.bf16.msra.mxu0 %v2921
        %3216 = vmatpush.bf16.msra.mxu0 %v2913
        %3217 = vmatpush.bf16.msra.mxu0 %v2905
        %3218 = vmatpush.bf16.msra.mxu0 %v2897
        %3219 = vmatpush.bf16.msra.mxu0 %v2889
        %3220 = vmatpush.bf16.msra.mxu0 %v2881
        %3221 = vmatpush.bf16.msra.mxu0 %v2873
        %3222 = vmatmul.bf16.gmra.mxu0 %v2273
        %v3223 = vpop.f32.mrf.mxu0
        %v3224 = vadd.f32 %v3210, %v3223
        %v3225 = vpop.f32.mrf.mxu0
        %v3226 = vadd.f32 %v3212, %v3225
        %3227 = vdwg.mxu0
        %3228 = vmatpush.bf16.msra.mxu0 %v2866
        %3229 = vmatpush.bf16.msra.mxu0 %v2858
        %3230 = vmatpush.bf16.msra.mxu0 %v2850
        %3231 = vmatpush.bf16.msra.mxu0 %v2842
        %3232 = vmatpush.bf16.msra.mxu0 %v2834
        %3233 = vmatpush.bf16.msra.mxu0 %v2826
        %3234 = vmatpush.bf16.msra.mxu0 %v2818
        %3235 = vmatpush.bf16.msra.mxu0 %v2810
        %3236 = vmatmul.bf16.gmra.mxu0 %v2272
        %v3237 = vpop.f32.mrf.mxu0
        %v3238 = vadd.f32 %v2410, %v3237
        %v3239 = vpop.f32.mrf.mxu0
        %v3240 = vadd.f32 %v2410, %v3239
        %3241 = vdwg.mxu0
        %3242 = vmatpush.bf16.msra.mxu0 %v2930
        %3243 = vmatpush.bf16.msra.mxu0 %v2922
        %3244 = vmatpush.bf16.msra.mxu0 %v2914
        %3245 = vmatpush.bf16.msra.mxu0 %v2906
        %3246 = vmatpush.bf16.msra.mxu0 %v2898
        %3247 = vmatpush.bf16.msra.mxu0 %v2890
        %3248 = vmatpush.bf16.msra.mxu0 %v2882
        %3249 = vmatpush.bf16.msra.mxu0 %v2874
        %3250 = vmatmul.bf16.gmra.mxu0 %v2273
        %v3251 = vpop.f32.mrf.mxu0
        %v3252 = vadd.f32 %v3238, %v3251
        %v3253 = vpop.f32.mrf.mxu0
        %v3254 = vadd.f32 %v3240, %v3253
        %3255 = vdwg.mxu0
        %3256 = vmatpush.bf16.msra.mxu0 %v2867
        %3257 = vmatpush.bf16.msra.mxu0 %v2859
        %3258 = vmatpush.bf16.msra.mxu0 %v2851
        %3259 = vmatpush.bf16.msra.mxu0 %v2843
        %3260 = vmatpush.bf16.msra.mxu0 %v2835
        %3261 = vmatpush.bf16.msra.mxu0 %v2827
        %3262 = vmatpush.bf16.msra.mxu0 %v2819
        %3263 = vmatpush.bf16.msra.mxu0 %v2811
        %3264 = vmatmul.bf16.gmra.mxu0 %v2272
        %v3265 = vpop.f32.mrf.mxu0
        %v3266 = vadd.f32 %v2411, %v3265
        %v3267 = vpop.f32.mrf.mxu0
        %v3268 = vadd.f32 %v2411, %v3267
        %3269 = vdwg.mxu0
        %3270 = vmatpush.bf16.msra.mxu0 %v2931
        %3271 = vmatpush.bf16.msra.mxu0 %v2923
        %3272 = vmatpush.bf16.msra.mxu0 %v2915
        %3273 = vmatpush.bf16.msra.mxu0 %v2907
        %3274 = vmatpush.bf16.msra.mxu0 %v2899
        %3275 = vmatpush.bf16.msra.mxu0 %v2891
        %3276 = vmatpush.bf16.msra.mxu0 %v2883
        %3277 = vmatpush.bf16.msra.mxu0 %v2875
        %3278 = vmatmul.bf16.gmra.mxu0 %v2273
        %v3279 = vpop.f32.mrf.mxu0
        %v3280 = vadd.f32 %v3266, %v3279
        %v3281 = vpop.f32.mrf.mxu0
        %v3282 = vadd.f32 %v3268, %v3281
        %3283 = vdwg.mxu0
        %v3284 = vmul.f32 %v3084, 0.5
        %v3285 = vmul.f32 %v3112, 0.5
        %v3286 = vmul.f32 %v3140, 0.5
        %v3287 = vmul.f32 %v3168, 0.5
        %v3288 = vmul.f32 %v3196, 0.5
        %v3289 = vmul.f32 %v3224, 0.5
        %v3290 = vmul.f32 %v3252, 0.5
        %v3291 = vmul.f32 %v3280, 0.5
        %v3292 = vmul.f32 %v3086, 0.5
        %v3293 = vmul.f32 %v3114, 0.5
        %v3294 = vmul.f32 %v3142, 0.5
        %v3295 = vmul.f32 %v3170, 0.5
        %v3296 = vmul.f32 %v3198, 0.5
        %v3297 = vmul.f32 %v3226, 0.5
        %v3298 = vmul.f32 %v3254, 0.5
        %v3299 = vmul.f32 %v3282, 0.5
        %v3300 = vmul.f32 %v3084, 0.044715
        %v3301 = vmul.f32 %v3112, 0.044715
        %v3302 = vmul.f32 %v3140, 0.044715
        %v3303 = vmul.f32 %v3168, 0.044715
        %v3304 = vmul.f32 %v3196, 0.044715
        %v3305 = vmul.f32 %v3224, 0.044715
        %v3306 = vmul.f32 %v3252, 0.044715
        %v3307 = vmul.f32 %v3280, 0.044715
        %v3308 = vmul.f32 %v3086, 0.044715
        %v3309 = vmul.f32 %v3114, 0.044715
        %v3310 = vmul.f32 %v3142, 0.044715
        %v3311 = vmul.f32 %v3170, 0.044715
        %v3312 = vmul.f32 %v3198, 0.044715
        %v3313 = vmul.f32 %v3226, 0.044715
        %v3314 = vmul.f32 %v3254, 0.044715
        %v3315 = vmul.f32 %v3282, 0.044715
        %v3316 = vmul.f32 %v3300, %v3084
        %v3317 = vmul.f32 %v3301, %v3112
        %v3318 = vmul.f32 %v3302, %v3140
        %v3319 = vmul.f32 %v3303, %v3168
        %v3320 = vmul.f32 %v3304, %v3196
        %v3321 = vmul.f32 %v3305, %v3224
        %v3322 = vmul.f32 %v3306, %v3252
        %v3323 = vmul.f32 %v3307, %v3280
        %v3324 = vmul.f32 %v3308, %v3086
        %v3325 = vmul.f32 %v3309, %v3114
        %v3326 = vmul.f32 %v3310, %v3142
        %v3327 = vmul.f32 %v3311, %v3170
        %v3328 = vmul.f32 %v3312, %v3198
        %v3329 = vmul.f32 %v3313, %v3226
        %v3330 = vmul.f32 %v3314, %v3254
        %v3331 = vmul.f32 %v3315, %v3282
        %v3332 = vmul.f32 %v3316, %v3084
        %v3333 = vmul.f32 %v3317, %v3112
        %v3334 = vmul.f32 %v3318, %v3140
        %v3335 = vmul.f32 %v3319, %v3168
        %v3336 = vmul.f32 %v3320, %v3196
        %v3337 = vmul.f32 %v3321, %v3224
        %v3338 = vmul.f32 %v3322, %v3252
        %v3339 = vmul.f32 %v3323, %v3280
        %v3340 = vmul.f32 %v3324, %v3086
        %v3341 = vmul.f32 %v3325, %v3114
        %v3342 = vmul.f32 %v3326, %v3142
        %v3343 = vmul.f32 %v3327, %v3170
        %v3344 = vmul.f32 %v3328, %v3198
        %v3345 = vmul.f32 %v3329, %v3226
        %v3346 = vmul.f32 %v3330, %v3254
        %v3347 = vmul.f32 %v3331, %v3282
        %v3348 = vadd.f32 %v3084, %v3332
        %v3349 = vadd.f32 %v3112, %v3333
        %v3350 = vadd.f32 %v3140, %v3334
        %v3351 = vadd.f32 %v3168, %v3335
        %v3352 = vadd.f32 %v3196, %v3336
        %v3353 = vadd.f32 %v3224, %v3337
        %v3354 = vadd.f32 %v3252, %v3338
        %v3355 = vadd.f32 %v3280, %v3339
        %v3356 = vadd.f32 %v3086, %v3340
        %v3357 = vadd.f32 %v3114, %v3341
        %v3358 = vadd.f32 %v3142, %v3342
        %v3359 = vadd.f32 %v3170, %v3343
        %v3360 = vadd.f32 %v3198, %v3344
        %v3361 = vadd.f32 %v3226, %v3345
        %v3362 = vadd.f32 %v3254, %v3346
        %v3363 = vadd.f32 %v3282, %v3347
        %v3364 = vmul.f32 %v3348, 0.7978846
        %v3365 = vmul.f32 %v3349, 0.7978846
        %v3366 = vmul.f32 %v3350, 0.7978846
        %v3367 = vmul.f32 %v3351, 0.7978846
        %v3368 = vmul.f32 %v3352, 0.7978846
        %v3369 = vmul.f32 %v3353, 0.7978846
        %v3370 = vmul.f32 %v3354, 0.7978846
        %v3371 = vmul.f32 %v3355, 0.7978846
        %v3372 = vmul.f32 %v3356, 0.7978846
        %v3373 = vmul.f32 %v3357, 0.7978846
        %v3374 = vmul.f32 %v3358, 0.7978846
        %v3375 = vmul.f32 %v3359, 0.7978846
        %v3376 = vmul.f32 %v3360, 0.7978846
        %v3377 = vmul.f32 %v3361, 0.7978846
        %v3378 = vmul.f32 %v3362, 0.7978846
        %v3379 = vmul.f32 %v3363, 0.7978846
        %v3380 = vtanh.pop %v3364
        %v3381 = vtanh.pop %v3365
        %v3382 = vtanh.pop %v3366
        %v3383 = vtanh.pop %v3367
        %v3384 = vtanh.pop %v3368
        %v3385 = vtanh.pop %v3369
        %v3386 = vtanh.pop %v3370
        %v3387 = vtanh.pop %v3371
        %v3388 = vtanh.pop %v3372
        %v3389 = vtanh.pop %v3373
        %v3390 = vtanh.pop %v3374
        %v3391 = vtanh.pop %v3375
        %v3392 = vtanh.pop %v3376
        %v3393 = vtanh.pop %v3377
        %v3394 = vtanh.pop %v3378
        %v3395 = vtanh.pop %v3379
        %v3396 = vadd.f32 %v3380, 1.0
        %v3397 = vadd.f32 %v3381, 1.0
        %v3398 = vadd.f32 %v3382, 1.0
        %v3399 = vadd.f32 %v3383, 1.0
        %v3400 = vadd.f32 %v3384, 1.0
        %v3401 = vadd.f32 %v3385, 1.0
        %v3402 = vadd.f32 %v3386, 1.0
        %v3403 = vadd.f32 %v3387, 1.0
        %v3404 = vadd.f32 %v3388, 1.0
        %v3405 = vadd.f32 %v3389, 1.0
        %v3406 = vadd.f32 %v3390, 1.0
        %v3407 = vadd.f32 %v3391, 1.0
        %v3408 = vadd.f32 %v3392, 1.0
        %v3409 = vadd.f32 %v3393, 1.0
        %v3410 = vadd.f32 %v3394, 1.0
        %v3411 = vadd.f32 %v3395, 1.0
        %v3412 = vmul.f32 %v3284, %v3396
        %v3413 = vmul.f32 %v3285, %v3397
        %v3414 = vmul.f32 %v3286, %v3398
        %v3415 = vmul.f32 %v3287, %v3399
        %v3416 = vmul.f32 %v3288, %v3400
        %v3417 = vmul.f32 %v3289, %v3401
        %v3418 = vmul.f32 %v3290, %v3402
        %v3419 = vmul.f32 %v3291, %v3403
        %v3420 = vmul.f32 %v3292, %v3404
        %v3421 = vmul.f32 %v3293, %v3405
        %v3422 = vmul.f32 %v3294, %v3406
        %v3423 = vmul.f32 %v3295, %v3407
        %v3424 = vmul.f32 %v3296, %v3408
        %v3425 = vmul.f32 %v3297, %v3409
        %v3426 = vmul.f32 %v3298, %v3410
        %v3427 = vmul.f32 %v3299, %v3411
        %v3428 = vpack.c.bf16 %v3420, %v3412
        %v3429 = vpack.c.bf16 %v3421, %v3413
        %v3430 = vpack.c.bf16 %v3422, %v3414
        %v3431 = vpack.c.bf16 %v3423, %v3415
        %v3432 = vpack.c.bf16 %v3424, %v3416
        %v3433 = vpack.c.bf16 %v3425, %v3417
        %v3434 = vpack.c.bf16 %v3426, %v3418
        %v3435 = vpack.c.bf16 %v3427, %v3419
        %v3436 = vld [vmem:[%s726] sm:$0xff]
        %v3437 = vld [vmem:[%s726 + $0x8] sm:$0xff]
        %v3438 = vld [vmem:[%s726 + $0x10] sm:$0xff]
        %v3439 = vld [vmem:[%s726 + $0x18] sm:$0xff]
        %v3440 = vld [vmem:[%s726 + $0x20] sm:$0xff]
        %v3441 = vld [vmem:[%s726 + $0x28] sm:$0xff]
        %v3442 = vld [vmem:[%s726 + $0x30] sm:$0xff]
        %v3443 = vld [vmem:[%s726 + $0x38] sm:$0xff]
        %v3444 = vld [vmem:[%s726 + $0x40] sm:$0xff]
        %v3445 = vld [vmem:[%s726 + $0x48] sm:$0xff]
        %v3446 = vld [vmem:[%s726 + $0x50] sm:$0xff]
        %v3447 = vld [vmem:[%s726 + $0x58] sm:$0xff]
        %v3448 = vld [vmem:[%s726 + $0x60] sm:$0xff]
        %v3449 = vld [vmem:[%s726 + $0x68] sm:$0xff]
        %v3450 = vld [vmem:[%s726 + $0x70] sm:$0xff]
        %v3451 = vld [vmem:[%s726 + $0x78] sm:$0xff]
        %v3452 = vld [vmem:[%s726 + $0x80] sm:$0xff]
        %v3453 = vld [vmem:[%s726 + $0x88] sm:$0xff]
        %v3454 = vld [vmem:[%s726 + $0x90] sm:$0xff]
        %v3455 = vld [vmem:[%s726 + $0x98] sm:$0xff]
        %v3456 = vld [vmem:[%s726 + $0xa0] sm:$0xff]
        %v3457 = vld [vmem:[%s726 + $0xa8] sm:$0xff]
        %v3458 = vld [vmem:[%s726 + $0xb0] sm:$0xff]
        %v3459 = vld [vmem:[%s726 + $0xb8] sm:$0xff]
        %v3460 = vld [vmem:[%s726 + $0xc0] sm:$0xff]
        %v3461 = vld [vmem:[%s726 + $0xc8] sm:$0xff]
        %v3462 = vld [vmem:[%s726 + $0xd0] sm:$0xff]
        %v3463 = vld [vmem:[%s726 + $0xd8] sm:$0xff]
        %v3464 = vld [vmem:[%s726 + $0xe0] sm:$0xff]
        %v3465 = vld [vmem:[%s726 + $0xe8] sm:$0xff]
        %v3466 = vld [vmem:[%s726 + $0xf0] sm:$0xff]
        %v3467 = vld [vmem:[%s726 + $0xf8] sm:$0xff]
        %v3468 = vld [vmem:[%s726 + $0x100] sm:$0xff]
        %v3469 = vld [vmem:[%s726 + $0x108] sm:$0xff]
        %v3470 = vld [vmem:[%s726 + $0x110] sm:$0xff]
        %v3471 = vld [vmem:[%s726 + $0x118] sm:$0xff]
        %v3472 = vld [vmem:[%s726 + $0x120] sm:$0xff]
        %v3473 = vld [vmem:[%s726 + $0x128] sm:$0xff]
        %v3474 = vld [vmem:[%s726 + $0x130] sm:$0xff]
        %v3475 = vld [vmem:[%s726 + $0x138] sm:$0xff]
        %v3476 = vld [vmem:[%s726 + $0x140] sm:$0xff]
        %v3477 = vld [vmem:[%s726 + $0x148] sm:$0xff]
        %v3478 = vld [vmem:[%s726 + $0x150] sm:$0xff]
        %v3479 = vld [vmem:[%s726 + $0x158] sm:$0xff]
        %v3480 = vld [vmem:[%s726 + $0x160] sm:$0xff]
        %v3481 = vld [vmem:[%s726 + $0x168] sm:$0xff]
        %v3482 = vld [vmem:[%s726 + $0x170] sm:$0xff]
        %v3483 = vld [vmem:[%s726 + $0x178] sm:$0xff]
        %v3484 = vld [vmem:[%s726 + $0x180] sm:$0xff]
        %v3485 = vld [vmem:[%s726 + $0x188] sm:$0xff]
        %v3486 = vld [vmem:[%s726 + $0x190] sm:$0xff]
        %v3487 = vld [vmem:[%s726 + $0x198] sm:$0xff]
        %v3488 = vld [vmem:[%s726 + $0x1a0] sm:$0xff]
        %v3489 = vld [vmem:[%s726 + $0x1a8] sm:$0xff]
        %v3490 = vld [vmem:[%s726 + $0x1b0] sm:$0xff]
        %v3491 = vld [vmem:[%s726 + $0x1b8] sm:$0xff]
        %v3492 = vld [vmem:[%s726 + $0x1c0] sm:$0xff]
        %v3493 = vld [vmem:[%s726 + $0x1c8] sm:$0xff]
        %v3494 = vld [vmem:[%s726 + $0x1d0] sm:$0xff]
        %v3495 = vld [vmem:[%s726 + $0x1d8] sm:$0xff]
        %v3496 = vld [vmem:[%s726 + $0x1e0] sm:$0xff]
        %v3497 = vld [vmem:[%s726 + $0x1e8] sm:$0xff]
        %v3498 = vld [vmem:[%s726 + $0x1f0] sm:$0xff]
        %v3499 = vld [vmem:[%s726 + $0x1f8] sm:$0xff]
        %v3500 = vld [vmem:[%s726 + $0x200] sm:$0xff]
        %v3501 = vld [vmem:[%s726 + $0x208] sm:$0xff]
        %v3502 = vld [vmem:[%s726 + $0x210] sm:$0xff]
        %v3503 = vld [vmem:[%s726 + $0x218] sm:$0xff]
        %v3504 = vld [vmem:[%s726 + $0x220] sm:$0xff]
        %v3505 = vld [vmem:[%s726 + $0x228] sm:$0xff]
        %v3506 = vld [vmem:[%s726 + $0x230] sm:$0xff]
        %v3507 = vld [vmem:[%s726 + $0x238] sm:$0xff]
        %v3508 = vld [vmem:[%s726 + $0x240] sm:$0xff]
        %v3509 = vld [vmem:[%s726 + $0x248] sm:$0xff]
        %v3510 = vld [vmem:[%s726 + $0x250] sm:$0xff]
        %v3511 = vld [vmem:[%s726 + $0x258] sm:$0xff]
        %v3512 = vld [vmem:[%s726 + $0x260] sm:$0xff]
        %v3513 = vld [vmem:[%s726 + $0x268] sm:$0xff]
        %v3514 = vld [vmem:[%s726 + $0x270] sm:$0xff]
        %v3515 = vld [vmem:[%s726 + $0x278] sm:$0xff]
        %v3516 = vld [vmem:[%s726 + $0x280] sm:$0xff]
        %v3517 = vld [vmem:[%s726 + $0x288] sm:$0xff]
        %v3518 = vld [vmem:[%s726 + $0x290] sm:$0xff]
        %v3519 = vld [vmem:[%s726 + $0x298] sm:$0xff]
        %v3520 = vld [vmem:[%s726 + $0x2a0] sm:$0xff]
        %v3521 = vld [vmem:[%s726 + $0x2a8] sm:$0xff]
        %v3522 = vld [vmem:[%s726 + $0x2b0] sm:$0xff]
        %v3523 = vld [vmem:[%s726 + $0x2b8] sm:$0xff]
        %v3524 = vld [vmem:[%s726 + $0x2c0] sm:$0xff]
        %v3525 = vld [vmem:[%s726 + $0x2c8] sm:$0xff]
        %v3526 = vld [vmem:[%s726 + $0x2d0] sm:$0xff]
        %v3527 = vld [vmem:[%s726 + $0x2d8] sm:$0xff]
        %v3528 = vld [vmem:[%s726 + $0x2e0] sm:$0xff]
        %v3529 = vld [vmem:[%s726 + $0x2e8] sm:$0xff]
        %v3530 = vld [vmem:[%s726 + $0x2f0] sm:$0xff]
        %v3531 = vld [vmem:[%s726 + $0x2f8] sm:$0xff]
        %v3532 = vld [vmem:[%s726 + $0x300] sm:$0xff]
        %v3533 = vld [vmem:[%s726 + $0x308] sm:$0xff]
        %v3534 = vld [vmem:[%s726 + $0x310] sm:$0xff]
        %v3535 = vld [vmem:[%s726 + $0x318] sm:$0xff]
        %v3536 = vld [vmem:[%s726 + $0x320] sm:$0xff]
        %v3537 = vld [vmem:[%s726 + $0x328] sm:$0xff]
        %v3538 = vld [vmem:[%s726 + $0x330] sm:$0xff]
        %v3539 = vld [vmem:[%s726 + $0x338] sm:$0xff]
        %v3540 = vld [vmem:[%s726 + $0x340] sm:$0xff]
        %v3541 = vld [vmem:[%s726 + $0x348] sm:$0xff]
        %v3542 = vld [vmem:[%s726 + $0x350] sm:$0xff]
        %v3543 = vld [vmem:[%s726 + $0x358] sm:$0xff]
        %v3544 = vld [vmem:[%s726 + $0x360] sm:$0xff]
        %v3545 = vld [vmem:[%s726 + $0x368] sm:$0xff]
        %v3546 = vld [vmem:[%s726 + $0x370] sm:$0xff]
        %v3547 = vld [vmem:[%s726 + $0x378] sm:$0xff]
        %v3548 = vld [vmem:[%s726 + $0x380] sm:$0xff]
        %v3549 = vld [vmem:[%s726 + $0x388] sm:$0xff]
        %v3550 = vld [vmem:[%s726 + $0x390] sm:$0xff]
        %v3551 = vld [vmem:[%s726 + $0x398] sm:$0xff]
        %v3552 = vld [vmem:[%s726 + $0x3a0] sm:$0xff]
        %v3553 = vld [vmem:[%s726 + $0x3a8] sm:$0xff]
        %v3554 = vld [vmem:[%s726 + $0x3b0] sm:$0xff]
        %v3555 = vld [vmem:[%s726 + $0x3b8] sm:$0xff]
        %v3556 = vld [vmem:[%s726 + $0x3c0] sm:$0xff]
        %v3557 = vld [vmem:[%s726 + $0x3c8] sm:$0xff]
        %v3558 = vld [vmem:[%s726 + $0x3d0] sm:$0xff]
        %v3559 = vld [vmem:[%s726 + $0x3d8] sm:$0xff]
        %v3560 = vld [vmem:[%s726 + $0x3e0] sm:$0xff]
        %v3561 = vld [vmem:[%s726 + $0x3e8] sm:$0xff]
        %v3562 = vld [vmem:[%s726 + $0x3f0] sm:$0xff]
        %v3563 = vld [vmem:[%s726 + $0x3f8] sm:$0xff]
        %v3564 = vld [vmem:[%s858] sm:$0x3]
        %v3566 = vperm.slane %v3564, 0
        %v3567 = vperm.slane %v3564, 1
        %v3698 = vunpack.c.l.b16 %v3436
        %v3699 = vunpack.c.h.b16 %v3436
        %v3700 = vunpack.c.l.b16 %v3437
        %v3701 = vunpack.c.h.b16 %v3437
        %v3702 = vunpack.c.l.b16 %v3438
        %v3703 = vunpack.c.h.b16 %v3438
        %v3704 = vunpack.c.l.b16 %v3439
        %v3705 = vunpack.c.h.b16 %v3439
        %v3706 = vunpack.c.l.b16 %v3440
        %v3707 = vunpack.c.h.b16 %v3440
        %v3708 = vunpack.c.l.b16 %v3441
        %v3709 = vunpack.c.h.b16 %v3441
        %v3710 = vunpack.c.l.b16 %v3442
        %v3711 = vunpack.c.h.b16 %v3442
        %v3712 = vunpack.c.l.b16 %v3443
        %v3713 = vunpack.c.h.b16 %v3443
        %v3714 = vunpack.c.l.b16 %v3444
        %v3715 = vunpack.c.h.b16 %v3444
        %v3716 = vunpack.c.l.b16 %v3445
        %v3717 = vunpack.c.h.b16 %v3445
        %v3718 = vunpack.c.l.b16 %v3446
        %v3719 = vunpack.c.h.b16 %v3446
        %v3720 = vunpack.c.l.b16 %v3447
        %v3721 = vunpack.c.h.b16 %v3447
        %v3722 = vunpack.c.l.b16 %v3448
        %v3723 = vunpack.c.h.b16 %v3448
        %v3724 = vunpack.c.l.b16 %v3449
        %v3725 = vunpack.c.h.b16 %v3449
        %v3726 = vunpack.c.l.b16 %v3450
        %v3727 = vunpack.c.h.b16 %v3450
        %v3728 = vunpack.c.l.b16 %v3451
        %v3729 = vunpack.c.h.b16 %v3451
        %v3730 = vunpack.c.l.b16 %v3452
        %v3731 = vunpack.c.h.b16 %v3452
        %v3732 = vunpack.c.l.b16 %v3453
        %v3733 = vunpack.c.h.b16 %v3453
        %v3734 = vunpack.c.l.b16 %v3454
        %v3735 = vunpack.c.h.b16 %v3454
        %v3736 = vunpack.c.l.b16 %v3455
        %v3737 = vunpack.c.h.b16 %v3455
        %v3738 = vunpack.c.l.b16 %v3456
        %v3739 = vunpack.c.h.b16 %v3456
        %v3740 = vunpack.c.l.b16 %v3457
        %v3741 = vunpack.c.h.b16 %v3457
        %v3742 = vunpack.c.l.b16 %v3458
        %v3743 = vunpack.c.h.b16 %v3458
        %v3744 = vunpack.c.l.b16 %v3459
        %v3745 = vunpack.c.h.b16 %v3459
        %v3746 = vunpack.c.l.b16 %v3460
        %v3747 = vunpack.c.h.b16 %v3460
        %v3748 = vunpack.c.l.b16 %v3461
        %v3749 = vunpack.c.h.b16 %v3461
        %v3750 = vunpack.c.l.b16 %v3462
        %v3751 = vunpack.c.h.b16 %v3462
        %v3752 = vunpack.c.l.b16 %v3463
        %v3753 = vunpack.c.h.b16 %v3463
        %v3754 = vunpack.c.l.b16 %v3464
        %v3755 = vunpack.c.h.b16 %v3464
        %v3756 = vunpack.c.l.b16 %v3465
        %v3757 = vunpack.c.h.b16 %v3465
        %v3758 = vunpack.c.l.b16 %v3466
        %v3759 = vunpack.c.h.b16 %v3466
        %v3760 = vunpack.c.l.b16 %v3467
        %v3761 = vunpack.c.h.b16 %v3467
        %v3762 = vunpack.c.l.b16 %v3468
        %v3763 = vunpack.c.h.b16 %v3468
        %v3764 = vunpack.c.l.b16 %v3469
        %v3765 = vunpack.c.h.b16 %v3469
        %v3766 = vunpack.c.l.b16 %v3470
        %v3767 = vunpack.c.h.b16 %v3470
        %v3768 = vunpack.c.l.b16 %v3471
        %v3769 = vunpack.c.h.b16 %v3471
        %v3770 = vunpack.c.l.b16 %v3472
        %v3771 = vunpack.c.h.b16 %v3472
        %v3772 = vunpack.c.l.b16 %v3473
        %v3773 = vunpack.c.h.b16 %v3473
        %v3774 = vunpack.c.l.b16 %v3474
        %v3775 = vunpack.c.h.b16 %v3474
        %v3776 = vunpack.c.l.b16 %v3475
        %v3777 = vunpack.c.h.b16 %v3475
        %v3778 = vunpack.c.l.b16 %v3476
        %v3779 = vunpack.c.h.b16 %v3476
        %v3780 = vunpack.c.l.b16 %v3477
        %v3781 = vunpack.c.h.b16 %v3477
        %v3782 = vunpack.c.l.b16 %v3478
        %v3783 = vunpack.c.h.b16 %v3478
        %v3784 = vunpack.c.l.b16 %v3479
        %v3785 = vunpack.c.h.b16 %v3479
        %v3786 = vunpack.c.l.b16 %v3480
        %v3787 = vunpack.c.h.b16 %v3480
        %v3788 = vunpack.c.l.b16 %v3481
        %v3789 = vunpack.c.h.b16 %v3481
        %v3790 = vunpack.c.l.b16 %v3482
        %v3791 = vunpack.c.h.b16 %v3482
        %v3792 = vunpack.c.l.b16 %v3483
        %v3793 = vunpack.c.h.b16 %v3483
        %v3794 = vunpack.c.l.b16 %v3484
        %v3795 = vunpack.c.h.b16 %v3484
        %v3796 = vunpack.c.l.b16 %v3485
        %v3797 = vunpack.c.h.b16 %v3485
        %v3798 = vunpack.c.l.b16 %v3486
        %v3799 = vunpack.c.h.b16 %v3486
        %v3800 = vunpack.c.l.b16 %v3487
        %v3801 = vunpack.c.h.b16 %v3487
        %v3802 = vunpack.c.l.b16 %v3488
        %v3803 = vunpack.c.h.b16 %v3488
        %v3804 = vunpack.c.l.b16 %v3489
        %v3805 = vunpack.c.h.b16 %v3489
        %v3806 = vunpack.c.l.b16 %v3490
        %v3807 = vunpack.c.h.b16 %v3490
        %v3808 = vunpack.c.l.b16 %v3491
        %v3809 = vunpack.c.h.b16 %v3491
        %v3810 = vunpack.c.l.b16 %v3492
        %v3811 = vunpack.c.h.b16 %v3492
        %v3812 = vunpack.c.l.b16 %v3493
        %v3813 = vunpack.c.h.b16 %v3493
        %v3814 = vunpack.c.l.b16 %v3494
        %v3815 = vunpack.c.h.b16 %v3494
        %v3816 = vunpack.c.l.b16 %v3495
        %v3817 = vunpack.c.h.b16 %v3495
        %v3818 = vunpack.c.l.b16 %v3496
        %v3819 = vunpack.c.h.b16 %v3496
        %v3820 = vunpack.c.l.b16 %v3497
        %v3821 = vunpack.c.h.b16 %v3497
        %v3822 = vunpack.c.l.b16 %v3498
        %v3823 = vunpack.c.h.b16 %v3498
        %v3824 = vunpack.c.l.b16 %v3499
        %v3825 = vunpack.c.h.b16 %v3499
        %v3826 = vunpack.c.l.b16 %v3500
        %v3827 = vunpack.c.h.b16 %v3500
        %v3828 = vunpack.c.l.b16 %v3501
        %v3829 = vunpack.c.h.b16 %v3501
        %v3830 = vunpack.c.l.b16 %v3502
        %v3831 = vunpack.c.h.b16 %v3502
        %v3832 = vunpack.c.l.b16 %v3503
        %v3833 = vunpack.c.h.b16 %v3503
        %v3834 = vunpack.c.l.b16 %v3504
        %v3835 = vunpack.c.h.b16 %v3504
        %v3836 = vunpack.c.l.b16 %v3505
        %v3837 = vunpack.c.h.b16 %v3505
        %v3838 = vunpack.c.l.b16 %v3506
        %v3839 = vunpack.c.h.b16 %v3506
        %v3840 = vunpack.c.l.b16 %v3507
        %v3841 = vunpack.c.h.b16 %v3507
        %v3842 = vunpack.c.l.b16 %v3508
        %v3843 = vunpack.c.h.b16 %v3508
        %v3844 = vunpack.c.l.b16 %v3509
        %v3845 = vunpack.c.h.b16 %v3509
        %v3846 = vunpack.c.l.b16 %v3510
        %v3847 = vunpack.c.h.b16 %v3510
        %v3848 = vunpack.c.l.b16 %v3511
        %v3849 = vunpack.c.h.b16 %v3511
        %v3850 = vunpack.c.l.b16 %v3512
        %v3851 = vunpack.c.h.b16 %v3512
        %v3852 = vunpack.c.l.b16 %v3513
        %v3853 = vunpack.c.h.b16 %v3513
        %v3854 = vunpack.c.l.b16 %v3514
        %v3855 = vunpack.c.h.b16 %v3514
        %v3856 = vunpack.c.l.b16 %v3515
        %v3857 = vunpack.c.h.b16 %v3515
        %v3858 = vunpack.c.l.b16 %v3516
        %v3859 = vunpack.c.h.b16 %v3516
        %v3860 = vunpack.c.l.b16 %v3517
        %v3861 = vunpack.c.h.b16 %v3517
        %v3862 = vunpack.c.l.b16 %v3518
        %v3863 = vunpack.c.h.b16 %v3518
        %v3864 = vunpack.c.l.b16 %v3519
        %v3865 = vunpack.c.h.b16 %v3519
        %v3866 = vunpack.c.l.b16 %v3520
        %v3867 = vunpack.c.h.b16 %v3520
        %v3868 = vunpack.c.l.b16 %v3521
        %v3869 = vunpack.c.h.b16 %v3521
        %v3870 = vunpack.c.l.b16 %v3522
        %v3871 = vunpack.c.h.b16 %v3522
        %v3872 = vunpack.c.l.b16 %v3523
        %v3873 = vunpack.c.h.b16 %v3523
        %v3874 = vunpack.c.l.b16 %v3524
        %v3875 = vunpack.c.h.b16 %v3524
        %v3876 = vunpack.c.l.b16 %v3525
        %v3877 = vunpack.c.h.b16 %v3525
        %v3878 = vunpack.c.l.b16 %v3526
        %v3879 = vunpack.c.h.b16 %v3526
        %v3880 = vunpack.c.l.b16 %v3527
        %v3881 = vunpack.c.h.b16 %v3527
        %v3882 = vunpack.c.l.b16 %v3528
        %v3883 = vunpack.c.h.b16 %v3528
        %v3884 = vunpack.c.l.b16 %v3529
        %v3885 = vunpack.c.h.b16 %v3529
        %v3886 = vunpack.c.l.b16 %v3530
        %v3887 = vunpack.c.h.b16 %v3530
        %v3888 = vunpack.c.l.b16 %v3531
        %v3889 = vunpack.c.h.b16 %v3531
        %v3890 = vunpack.c.l.b16 %v3532
        %v3891 = vunpack.c.h.b16 %v3532
        %v3892 = vunpack.c.l.b16 %v3533
        %v3893 = vunpack.c.h.b16 %v3533
        %v3894 = vunpack.c.l.b16 %v3534
        %v3895 = vunpack.c.h.b16 %v3534
        %v3896 = vunpack.c.l.b16 %v3535
        %v3897 = vunpack.c.h.b16 %v3535
        %v3898 = vunpack.c.l.b16 %v3536
        %v3899 = vunpack.c.h.b16 %v3536
        %v3900 = vunpack.c.l.b16 %v3537
        %v3901 = vunpack.c.h.b16 %v3537
        %v3902 = vunpack.c.l.b16 %v3538
        %v3903 = vunpack.c.h.b16 %v3538
        %v3904 = vunpack.c.l.b16 %v3539
        %v3905 = vunpack.c.h.b16 %v3539
        %v3906 = vunpack.c.l.b16 %v3540
        %v3907 = vunpack.c.h.b16 %v3540
        %v3908 = vunpack.c.l.b16 %v3541
        %v3909 = vunpack.c.h.b16 %v3541
        %v3910 = vunpack.c.l.b16 %v3542
        %v3911 = vunpack.c.h.b16 %v3542
        %v3912 = vunpack.c.l.b16 %v3543
        %v3913 = vunpack.c.h.b16 %v3543
        %v3914 = vunpack.c.l.b16 %v3544
        %v3915 = vunpack.c.h.b16 %v3544
        %v3916 = vunpack.c.l.b16 %v3545
        %v3917 = vunpack.c.h.b16 %v3545
        %v3918 = vunpack.c.l.b16 %v3546
        %v3919 = vunpack.c.h.b16 %v3546
        %v3920 = vunpack.c.l.b16 %v3547
        %v3921 = vunpack.c.h.b16 %v3547
        %v3922 = vunpack.c.l.b16 %v3548
        %v3923 = vunpack.c.h.b16 %v3548
        %v3924 = vunpack.c.l.b16 %v3549
        %v3925 = vunpack.c.h.b16 %v3549
        %v3926 = vunpack.c.l.b16 %v3550
        %v3927 = vunpack.c.h.b16 %v3550
        %v3928 = vunpack.c.l.b16 %v3551
        %v3929 = vunpack.c.h.b16 %v3551
        %v3930 = vunpack.c.l.b16 %v3552
        %v3931 = vunpack.c.h.b16 %v3552
        %v3932 = vunpack.c.l.b16 %v3553
        %v3933 = vunpack.c.h.b16 %v3553
        %v3934 = vunpack.c.l.b16 %v3554
        %v3935 = vunpack.c.h.b16 %v3554
        %v3936 = vunpack.c.l.b16 %v3555
        %v3937 = vunpack.c.h.b16 %v3555
        %v3938 = vunpack.c.l.b16 %v3556
        %v3939 = vunpack.c.h.b16 %v3556
        %v3940 = vunpack.c.l.b16 %v3557
        %v3941 = vunpack.c.h.b16 %v3557
        %v3942 = vunpack.c.l.b16 %v3558
        %v3943 = vunpack.c.h.b16 %v3558
        %v3944 = vunpack.c.l.b16 %v3559
        %v3945 = vunpack.c.h.b16 %v3559
        %v3946 = vunpack.c.l.b16 %v3560
        %v3947 = vunpack.c.h.b16 %v3560
        %v3948 = vunpack.c.l.b16 %v3561
        %v3949 = vunpack.c.h.b16 %v3561
        %v3950 = vunpack.c.l.b16 %v3562
        %v3951 = vunpack.c.h.b16 %v3562
        %v3952 = vunpack.c.l.b16 %v3563
        %v3953 = vunpack.c.h.b16 %v3563
        %v3954 = vpack.c.b16 %v3700, %v3698
        %v3955 = vpack.c.b16 %v3701, %v3699
        %v3956 = vpack.c.b16 %v3704, %v3702
        %v3957 = vpack.c.b16 %v3705, %v3703
        %v3958 = vpack.c.b16 %v3708, %v3706
        %v3959 = vpack.c.b16 %v3709, %v3707
        %v3960 = vpack.c.b16 %v3712, %v3710
        %v3961 = vpack.c.b16 %v3713, %v3711
        %v3962 = vpack.c.b16 %v3716, %v3714
        %v3963 = vpack.c.b16 %v3717, %v3715
        %v3964 = vpack.c.b16 %v3720, %v3718
        %v3965 = vpack.c.b16 %v3721, %v3719
        %v3966 = vpack.c.b16 %v3724, %v3722
        %v3967 = vpack.c.b16 %v3725, %v3723
        %v3968 = vpack.c.b16 %v3728, %v3726
        %v3969 = vpack.c.b16 %v3729, %v3727
        %v3970 = vpack.c.b16 %v3732, %v3730
        %v3971 = vpack.c.b16 %v3733, %v3731
        %v3972 = vpack.c.b16 %v3736, %v3734
        %v3973 = vpack.c.b16 %v3737, %v3735
        %v3974 = vpack.c.b16 %v3740, %v3738
        %v3975 = vpack.c.b16 %v3741, %v3739
        %v3976 = vpack.c.b16 %v3744, %v3742
        %v3977 = vpack.c.b16 %v3745, %v3743
        %v3978 = vpack.c.b16 %v3748, %v3746
        %v3979 = vpack.c.b16 %v3749, %v3747
        %v3980 = vpack.c.b16 %v3752, %v3750
        %v3981 = vpack.c.b16 %v3753, %v3751
        %v3982 = vpack.c.b16 %v3756, %v3754
        %v3983 = vpack.c.b16 %v3757, %v3755
        %v3984 = vpack.c.b16 %v3760, %v3758
        %v3985 = vpack.c.b16 %v3761, %v3759
        %v3986 = vpack.c.b16 %v3764, %v3762
        %v3987 = vpack.c.b16 %v3765, %v3763
        %v3988 = vpack.c.b16 %v3768, %v3766
        %v3989 = vpack.c.b16 %v3769, %v3767
        %v3990 = vpack.c.b16 %v3772, %v3770
        %v3991 = vpack.c.b16 %v3773, %v3771
        %v3992 = vpack.c.b16 %v3776, %v3774
        %v3993 = vpack.c.b16 %v3777, %v3775
        %v3994 = vpack.c.b16 %v3780, %v3778
        %v3995 = vpack.c.b16 %v3781, %v3779
        %v3996 = vpack.c.b16 %v3784, %v3782
        %v3997 = vpack.c.b16 %v3785, %v3783
        %v3998 = vpack.c.b16 %v3788, %v3786
        %v3999 = vpack.c.b16 %v3789, %v3787
        %v4000 = vpack.c.b16 %v3792, %v3790
        %v4001 = vpack.c.b16 %v3793, %v3791
        %v4002 = vpack.c.b16 %v3796, %v3794
        %v4003 = vpack.c.b16 %v3797, %v3795
        %v4004 = vpack.c.b16 %v3800, %v3798
        %v4005 = vpack.c.b16 %v3801, %v3799
        %v4006 = vpack.c.b16 %v3804, %v3802
        %v4007 = vpack.c.b16 %v3805, %v3803
        %v4008 = vpack.c.b16 %v3808, %v3806
        %v4009 = vpack.c.b16 %v3809, %v3807
        %v4010 = vpack.c.b16 %v3812, %v3810
        %v4011 = vpack.c.b16 %v3813, %v3811
        %v4012 = vpack.c.b16 %v3816, %v3814
        %v4013 = vpack.c.b16 %v3817, %v3815
        %v4014 = vpack.c.b16 %v3820, %v3818
        %v4015 = vpack.c.b16 %v3821, %v3819
        %v4016 = vpack.c.b16 %v3824, %v3822
        %v4017 = vpack.c.b16 %v3825, %v3823
        %v4018 = vpack.c.b16 %v3828, %v3826
        %v4019 = vpack.c.b16 %v3829, %v3827
        %v4020 = vpack.c.b16 %v3832, %v3830
        %v4021 = vpack.c.b16 %v3833, %v3831
        %v4022 = vpack.c.b16 %v3836, %v3834
        %v4023 = vpack.c.b16 %v3837, %v3835
        %v4024 = vpack.c.b16 %v3840, %v3838
        %v4025 = vpack.c.b16 %v3841, %v3839
        %v4026 = vpack.c.b16 %v3844, %v3842
        %v4027 = vpack.c.b16 %v3845, %v3843
        %v4028 = vpack.c.b16 %v3848, %v3846
        %v4029 = vpack.c.b16 %v3849, %v3847
        %v4030 = vpack.c.b16 %v3852, %v3850
        %v4031 = vpack.c.b16 %v3853, %v3851
        %v4032 = vpack.c.b16 %v3856, %v3854
        %v4033 = vpack.c.b16 %v3857, %v3855
        %v4034 = vpack.c.b16 %v3860, %v3858
        %v4035 = vpack.c.b16 %v3861, %v3859
        %v4036 = vpack.c.b16 %v3864, %v3862
        %v4037 = vpack.c.b16 %v3865, %v3863
        %v4038 = vpack.c.b16 %v3868, %v3866
        %v4039 = vpack.c.b16 %v3869, %v3867
        %v4040 = vpack.c.b16 %v3872, %v3870
        %v4041 = vpack.c.b16 %v3873, %v3871
        %v4042 = vpack.c.b16 %v3876, %v3874
        %v4043 = vpack.c.b16 %v3877, %v3875
        %v4044 = vpack.c.b16 %v3880, %v3878
        %v4045 = vpack.c.b16 %v3881, %v3879
        %v4046 = vpack.c.b16 %v3884, %v3882
        %v4047 = vpack.c.b16 %v3885, %v3883
        %v4048 = vpack.c.b16 %v3888, %v3886
        %v4049 = vpack.c.b16 %v3889, %v3887
        %v4050 = vpack.c.b16 %v3892, %v3890
        %v4051 = vpack.c.b16 %v3893, %v3891
        %v4052 = vpack.c.b16 %v3896, %v3894
        %v4053 = vpack.c.b16 %v3897, %v3895
        %v4054 = vpack.c.b16 %v3900, %v3898
        %v4055 = vpack.c.b16 %v3901, %v3899
        %v4056 = vpack.c.b16 %v3904, %v3902
        %v4057 = vpack.c.b16 %v3905, %v3903
        %v4058 = vpack.c.b16 %v3908, %v3906
        %v4059 = vpack.c.b16 %v3909, %v3907
        %v4060 = vpack.c.b16 %v3912, %v3910
        %v4061 = vpack.c.b16 %v3913, %v3911
        %v4062 = vpack.c.b16 %v3916, %v3914
        %v4063 = vpack.c.b16 %v3917, %v3915
        %v4064 = vpack.c.b16 %v3920, %v3918
        %v4065 = vpack.c.b16 %v3921, %v3919
        %v4066 = vpack.c.b16 %v3924, %v3922
        %v4067 = vpack.c.b16 %v3925, %v3923
        %v4068 = vpack.c.b16 %v3928, %v3926
        %v4069 = vpack.c.b16 %v3929, %v3927
        %v4070 = vpack.c.b16 %v3932, %v3930
        %v4071 = vpack.c.b16 %v3933, %v3931
        %v4072 = vpack.c.b16 %v3936, %v3934
        %v4073 = vpack.c.b16 %v3937, %v3935
        %v4074 = vpack.c.b16 %v3940, %v3938
        %v4075 = vpack.c.b16 %v3941, %v3939
        %v4076 = vpack.c.b16 %v3944, %v3942
        %v4077 = vpack.c.b16 %v3945, %v3943
        %v4078 = vpack.c.b16 %v3948, %v3946
        %v4079 = vpack.c.b16 %v3949, %v3947
        %v4080 = vpack.c.b16 %v3952, %v3950
        %v4081 = vpack.c.b16 %v3953, %v3951
        %4210 = vmatpush.bf16.msra.mxu0 %v3968
        %4211 = vmatpush.bf16.msra.mxu0 %v3966
        %4212 = vmatpush.bf16.msra.mxu0 %v3964
        %4213 = vmatpush.bf16.msra.mxu0 %v3962
        %4214 = vmatpush.bf16.msra.mxu0 %v3960
        %4215 = vmatpush.bf16.msra.mxu0 %v3958
        %4216 = vmatpush.bf16.msra.mxu0 %v3956
        %4217 = vmatpush.bf16.msra.mxu0 %v3954
        %4218 = vmatmul.bf16.gmra.mxu0 %v3428
        %v4219 = vpop.f32.mrf.mxu0
        %v4220 = vadd.f32 %v3566, %v4219
        %v4221 = vpop.f32.mrf.mxu0
        %v4222 = vadd.f32 %v3566, %v4221
        %4223 = vdwg.mxu0
        %4224 = vmatpush.bf16.msra.mxu0 %v3984
        %4225 = vmatpush.bf16.msra.mxu0 %v3982
        %4226 = vmatpush.bf16.msra.mxu0 %v3980
        %4227 = vmatpush.bf16.msra.mxu0 %v3978
        %4228 = vmatpush.bf16.msra.mxu0 %v3976
        %4229 = vmatpush.bf16.msra.mxu0 %v3974
        %4230 = vmatpush.bf16.msra.mxu0 %v3972
        %4231 = vmatpush.bf16.msra.mxu0 %v3970
        %4232 = vmatmul.bf16.gmra.mxu0 %v3429
        %v4233 = vpop.f32.mrf.mxu0
        %v4234 = vadd.f32 %v4220, %v4233
        %v4235 = vpop.f32.mrf.mxu0
        %v4236 = vadd.f32 %v4222, %v4235
        %4237 = vdwg.mxu0
        %4238 = vmatpush.bf16.msra.mxu0 %v4000
        %4239 = vmatpush.bf16.msra.mxu0 %v3998
        %4240 = vmatpush.bf16.msra.mxu0 %v3996
        %4241 = vmatpush.bf16.msra.mxu0 %v3994
        %4242 = vmatpush.bf16.msra.mxu0 %v3992
        %4243 = vmatpush.bf16.msra.mxu0 %v3990
        %4244 = vmatpush.bf16.msra.mxu0 %v3988
        %4245 = vmatpush.bf16.msra.mxu0 %v3986
        %4246 = vmatmul.bf16.gmra.mxu0 %v3430
        %v4247 = vpop.f32.mrf.mxu0
        %v4248 = vadd.f32 %v4234, %v4247
        %v4249 = vpop.f32.mrf.mxu0
        %v4250 = vadd.f32 %v4236, %v4249
        %4251 = vdwg.mxu0
        %4252 = vmatpush.bf16.msra.mxu0 %v4016
        %4253 = vmatpush.bf16.msra.mxu0 %v4014
        %4254 = vmatpush.bf16.msra.mxu0 %v4012
        %4255 = vmatpush.bf16.msra.mxu0 %v4010
        %4256 = vmatpush.bf16.msra.mxu0 %v4008
        %4257 = vmatpush.bf16.msra.mxu0 %v4006
        %4258 = vmatpush.bf16.msra.mxu0 %v4004
        %4259 = vmatpush.bf16.msra.mxu0 %v4002
        %4260 = vmatmul.bf16.gmra.mxu0 %v3431
        %v4261 = vpop.f32.mrf.mxu0
        %v4262 = vadd.f32 %v4248, %v4261
        %v4263 = vpop.f32.mrf.mxu0
        %v4264 = vadd.f32 %v4250, %v4263
        %4265 = vdwg.mxu0
        %4266 = vmatpush.bf16.msra.mxu0 %v4032
        %4267 = vmatpush.bf16.msra.mxu0 %v4030
        %4268 = vmatpush.bf16.msra.mxu0 %v4028
        %4269 = vmatpush.bf16.msra.mxu0 %v4026
        %4270 = vmatpush.bf16.msra.mxu0 %v4024
        %4271 = vmatpush.bf16.msra.mxu0 %v4022
        %4272 = vmatpush.bf16.msra.mxu0 %v4020
        %4273 = vmatpush.bf16.msra.mxu0 %v4018
        %4274 = vmatmul.bf16.gmra.mxu0 %v3432
        %v4275 = vpop.f32.mrf.mxu0
        %v4276 = vadd.f32 %v4262, %v4275
        %v4277 = vpop.f32.mrf.mxu0
        %v4278 = vadd.f32 %v4264, %v4277
        %4279 = vdwg.mxu0
        %4280 = vmatpush.bf16.msra.mxu0 %v4048
        %4281 = vmatpush.bf16.msra.mxu0 %v4046
        %4282 = vmatpush.bf16.msra.mxu0 %v4044
        %4283 = vmatpush.bf16.msra.mxu0 %v4042
        %4284 = vmatpush.bf16.msra.mxu0 %v4040
        %4285 = vmatpush.bf16.msra.mxu0 %v4038
        %4286 = vmatpush.bf16.msra.mxu0 %v4036
        %4287 = vmatpush.bf16.msra.mxu0 %v4034
        %4288 = vmatmul.bf16.gmra.mxu0 %v3433
        %v4289 = vpop.f32.mrf.mxu0
        %v4290 = vadd.f32 %v4276, %v4289
        %v4291 = vpop.f32.mrf.mxu0
        %v4292 = vadd.f32 %v4278, %v4291
        %4293 = vdwg.mxu0
        %4294 = vmatpush.bf16.msra.mxu0 %v4064
        %4295 = vmatpush.bf16.msra.mxu0 %v4062
        %4296 = vmatpush.bf16.msra.mxu0 %v4060
        %4297 = vmatpush.bf16.msra.mxu0 %v4058
        %4298 = vmatpush.bf16.msra.mxu0 %v4056
        %4299 = vmatpush.bf16.msra.mxu0 %v4054
        %4300 = vmatpush.bf16.msra.mxu0 %v4052
        %4301 = vmatpush.bf16.msra.mxu0 %v4050
        %4302 = vmatmul.bf16.gmra.mxu0 %v3434
        %v4303 = vpop.f32.mrf.mxu0
        %v4304 = vadd.f32 %v4290, %v4303
        %v4305 = vpop.f32.mrf.mxu0
        %v4306 = vadd.f32 %v4292, %v4305
        %4307 = vdwg.mxu0
        %4308 = vmatpush.bf16.msra.mxu0 %v4080
        %4309 = vmatpush.bf16.msra.mxu0 %v4078
        %4310 = vmatpush.bf16.msra.mxu0 %v4076
        %4311 = vmatpush.bf16.msra.mxu0 %v4074
        %4312 = vmatpush.bf16.msra.mxu0 %v4072
        %4313 = vmatpush.bf16.msra.mxu0 %v4070
        %4314 = vmatpush.bf16.msra.mxu0 %v4068
        %4315 = vmatpush.bf16.msra.mxu0 %v4066
        %4316 = vmatmul.bf16.gmra.mxu0 %v3435
        %v4317 = vpop.f32.mrf.mxu0
        %v4318 = vadd.f32 %v4304, %v4317
        %v4319 = vpop.f32.mrf.mxu0
        %v4320 = vadd.f32 %v4306, %v4319
        %4321 = vdwg.mxu0
        %4322 = vmatpush.bf16.msra.mxu0 %v3969
        %4323 = vmatpush.bf16.msra.mxu0 %v3967
        %4324 = vmatpush.bf16.msra.mxu0 %v3965
        %4325 = vmatpush.bf16.msra.mxu0 %v3963
        %4326 = vmatpush.bf16.msra.mxu0 %v3961
        %4327 = vmatpush.bf16.msra.mxu0 %v3959
        %4328 = vmatpush.bf16.msra.mxu0 %v3957
        %4329 = vmatpush.bf16.msra.mxu0 %v3955
        %4330 = vmatmul.bf16.gmra.mxu0 %v3428
        %v4331 = vpop.f32.mrf.mxu0
        %v4332 = vadd.f32 %v3567, %v4331
        %v4333 = vpop.f32.mrf.mxu0
        %v4334 = vadd.f32 %v3567, %v4333
        %4335 = vdwg.mxu0
        %4336 = vmatpush.bf16.msra.mxu0 %v3985
        %4337 = vmatpush.bf16.msra.mxu0 %v3983
        %4338 = vmatpush.bf16.msra.mxu0 %v3981
        %4339 = vmatpush.bf16.msra.mxu0 %v3979
        %4340 = vmatpush.bf16.msra.mxu0 %v3977
        %4341 = vmatpush.bf16.msra.mxu0 %v3975
        %4342 = vmatpush.bf16.msra.mxu0 %v3973
        %4343 = vmatpush.bf16.msra.mxu0 %v3971
        %4344 = vmatmul.bf16.gmra.mxu0 %v3429
        %v4345 = vpop.f32.mrf.mxu0
        %v4346 = vadd.f32 %v4332, %v4345
        %v4347 = vpop.f32.mrf.mxu0
        %v4348 = vadd.f32 %v4334, %v4347
        %4349 = vdwg.mxu0
        %4350 = vmatpush.bf16.msra.mxu0 %v4001
        %4351 = vmatpush.bf16.msra.mxu0 %v3999
        %4352 = vmatpush.bf16.msra.mxu0 %v3997
        %4353 = vmatpush.bf16.msra.mxu0 %v3995
        %4354 = vmatpush.bf16.msra.mxu0 %v3993
        %4355 = vmatpush.bf16.msra.mxu0 %v3991
        %4356 = vmatpush.bf16.msra.mxu0 %v3989
        %4357 = vmatpush.bf16.msra.mxu0 %v3987
        %4358 = vmatmul.bf16.gmra.mxu0 %v3430
        %v4359 = vpop.f32.mrf.mxu0
        %v4360 = vadd.f32 %v4346, %v4359
        %v4361 = vpop.f32.mrf.mxu0
        %v4362 = vadd.f32 %v4348, %v4361
        %4363 = vdwg.mxu0
        %4364 = vmatpush.bf16.msra.mxu0 %v4017
        %4365 = vmatpush.bf16.msra.mxu0 %v4015
        %4366 = vmatpush.bf16.msra.mxu0 %v4013
        %4367 = vmatpush.bf16.msra.mxu0 %v4011
        %4368 = vmatpush.bf16.msra.mxu0 %v4009
        %4369 = vmatpush.bf16.msra.mxu0 %v4007
        %4370 = vmatpush.bf16.msra.mxu0 %v4005
        %4371 = vmatpush.bf16.msra.mxu0 %v4003
        %4372 = vmatmul.bf16.gmra.mxu0 %v3431
        %v4373 = vpop.f32.mrf.mxu0
        %v4374 = vadd.f32 %v4360, %v4373
        %v4375 = vpop.f32.mrf.mxu0
        %v4376 = vadd.f32 %v4362, %v4375
        %4377 = vdwg.mxu0
        %4378 = vmatpush.bf16.msra.mxu0 %v4033
        %4379 = vmatpush.bf16.msra.mxu0 %v4031
        %4380 = vmatpush.bf16.msra.mxu0 %v4029
        %4381 = vmatpush.bf16.msra.mxu0 %v4027
        %4382 = vmatpush.bf16.msra.mxu0 %v4025
        %4383 = vmatpush.bf16.msra.mxu0 %v4023
        %4384 = vmatpush.bf16.msra.mxu0 %v4021
        %4385 = vmatpush.bf16.msra.mxu0 %v4019
        %4386 = vmatmul.bf16.gmra.mxu0 %v3432
        %v4387 = vpop.f32.mrf.mxu0
        %v4388 = vadd.f32 %v4374, %v4387
        %v4389 = vpop.f32.mrf.mxu0
        %v4390 = vadd.f32 %v4376, %v4389
        %4391 = vdwg.mxu0
        %4392 = vmatpush.bf16.msra.mxu0 %v4049
        %4393 = vmatpush.bf16.msra.mxu0 %v4047
        %4394 = vmatpush.bf16.msra.mxu0 %v4045
        %4395 = vmatpush.bf16.msra.mxu0 %v4043
        %4396 = vmatpush.bf16.msra.mxu0 %v4041
        %4397 = vmatpush.bf16.msra.mxu0 %v4039
        %4398 = vmatpush.bf16.msra.mxu0 %v4037
        %4399 = vmatpush.bf16.msra.mxu0 %v4035
        %4400 = vmatmul.bf16.gmra.mxu0 %v3433
        %v4401 = vpop.f32.mrf.mxu0
        %v4402 = vadd.f32 %v4388, %v4401
        %v4403 = vpop.f32.mrf.mxu0
        %v4404 = vadd.f32 %v4390, %v4403
        %4405 = vdwg.mxu0
        %4406 = vmatpush.bf16.msra.mxu0 %v4065
        %4407 = vmatpush.bf16.msra.mxu0 %v4063
        %4408 = vmatpush.bf16.msra.mxu0 %v4061
        %4409 = vmatpush.bf16.msra.mxu0 %v4059
        %4410 = vmatpush.bf16.msra.mxu0 %v4057
        %4411 = vmatpush.bf16.msra.mxu0 %v4055
        %4412 = vmatpush.bf16.msra.mxu0 %v4053
        %4413 = vmatpush.bf16.msra.mxu0 %v4051
        %4414 = vmatmul.bf16.gmra.mxu0 %v3434
        %v4415 = vpop.f32.mrf.mxu0
        %v4416 = vadd.f32 %v4402, %v4415
        %v4417 = vpop.f32.mrf.mxu0
        %v4418 = vadd.f32 %v4404, %v4417
        %4419 = vdwg.mxu0
        %4420 = vmatpush.bf16.msra.mxu0 %v4081
        %4421 = vmatpush.bf16.msra.mxu0 %v4079
        %4422 = vmatpush.bf16.msra.mxu0 %v4077
        %4423 = vmatpush.bf16.msra.mxu0 %v4075
        %4424 = vmatpush.bf16.msra.mxu0 %v4073
        %4425 = vmatpush.bf16.msra.mxu0 %v4071
        %4426 = vmatpush.bf16.msra.mxu0 %v4069
        %4427 = vmatpush.bf16.msra.mxu0 %v4067
        %4428 = vmatmul.bf16.gmra.mxu0 %v3435
        %v4429 = vpop.f32.mrf.mxu0
        %v4430 = vadd.f32 %v4416, %v4429
        %v4431 = vpop.f32.mrf.mxu0
        %v4432 = vadd.f32 %v4418, %v4431
        %4433 = vdwg.mxu0
        %v4434 = vadd.f32 %v2198, %v4318
        %v4435 = vadd.f32 %v2199, %v4430
        %v4436 = vadd.f32 %v2200, %v4320
        %v4437 = vadd.f32 %v2201, %v4432
        %4438 = vst [vmem:[#allocation2] sm:$0xff] %v4434
        %4439 = vst [vmem:[#allocation2 + $0x8] sm:$0xff] %v4435
        %4440 = vst [vmem:[#allocation2 + $0x10] sm:$0xff] %v4436
        %4441 = vst [vmem:[#allocation2 + $0x18] sm:$0xff] %v4437
        %p4442 = scmp.eq.s32.totalorder %s39, 1
        // Predicated region
        $region117: #{pallas_forward.1} parent=91 // pred_check
          %p4443 = pneg %p4442
        $region118: #{pallas_forward.1} parent=91 // pred_check_branch
          %4445 = sbr.rel (%p4443) target = $region120
        $region119: #{pallas_forward.1} parent=91 // pred_region
          %v4446 = vld [vmem:[%s14] sm:$0x3]
          %v4447 = vld [vmem:[%s15] sm:$0x3]
          %v4448 = vadd.f32 %v4434, %v4435
          %4449 = vadd.xlane.f32.xlu0 %v4448
          %v4450 = vpop.xlane.xlu0 %4449
          %v4451 = vadd.f32 %v4436, %v4437
          %4452 = vadd.xlane.f32.xlu0 %v4451
          %v4453 = vpop.xlane.xlu0 %4452
          %v4454 = vmul.f32 %v4450, %v889
          %v4455 = vmul.f32 %v4453, %v889
          %v4456 = vsub.f32 %v4434, %v4454
          %v4457 = vsub.f32 %v4435, %v4454
          %v4458 = vsub.f32 %v4436, %v4455
          %v4459 = vsub.f32 %v4437, %v4455
          %v4460 = vmul.f32 %v4456, %v4456
          %v4461 = vmul.f32 %v4457, %v4457
          %v4462 = vmul.f32 %v4458, %v4458
          %v4463 = vmul.f32 %v4459, %v4459
          %v4464 = vadd.f32 %v4460, %v4461
          %4465 = vadd.xlane.f32.xlu0 %v4464
          %v4466 = vpop.xlane.xlu0 %4465
          %v4467 = vadd.f32 %v4462, %v4463
          %4468 = vadd.xlane.f32.xlu0 %v4467
          %v4469 = vpop.xlane.xlu0 %4468
          %v4470 = vmul.f32 %v4466, %v889
          %v4471 = vmul.f32 %v4469, %v889
          %v4472 = vadd.f32 %v4470, 1e-05
          %v4473 = vadd.f32 %v4471, 1e-05
          %v4474 = vrsqrt.pop %v4472
          %v4475 = vmul.f32 %v4474, %v4472
          %v4476 = vmul.f32 %v4475, %v4474
          %v4477 = vmul.f32 0.5, %v4476
          %v4478 = vsub.f32 1.5, %v4477
          %v4479 = vmul.f32 %v4474, %v4478
          %vm4480 = vweird.f32 %v4472
          %vm4481 = vweird.f32 %v4474
          %vm4482 = vmor %vm4480, %vm4481
          %v4483 = vsel %vm4482, %v4474, %v4479
          %v4484 = vrsqrt.pop %v4473
          %v4485 = vmul.f32 %v4484, %v4473
          %v4486 = vmul.f32 %v4485, %v4484
          %v4487 = vmul.f32 0.5, %v4486
          %v4488 = vsub.f32 1.5, %v4487
          %v4489 = vmul.f32 %v4484, %v4488
          %vm4490 = vweird.f32 %v4473
          %vm4491 = vweird.f32 %v4484
          %vm4492 = vmor %vm4490, %vm4491
          %v4493 = vsel %vm4492, %v4484, %v4489
          %v4494 = vmul.f32 %v4456, %v4483
          %v4495 = vmul.f32 %v4457, %v4483
          %v4496 = vmul.f32 %v4458, %v4493
          %v4497 = vmul.f32 %v4459, %v4493
          %v4499 = vperm.slane %v4446, 0
          %v4500 = vperm.slane %v4446, 1
          %v4503 = vmul.f32 %v4494, %v4499
          %v4504 = vmul.f32 %v4495, %v4500
          %v4505 = vmul.f32 %v4496, %v4499
          %v4506 = vmul.f32 %v4497, %v4500
          %v4508 = vperm.slane %v4447, 0
          %v4509 = vperm.slane %v4447, 1
          %v4512 = vadd.f32 %v4503, %v4508
          %v4513 = vadd.f32 %v4504, %v4509
          %v4514 = vadd.f32 %v4505, %v4508
          %v4515 = vadd.f32 %v4506, %v4509
          %v4516 = vpack.c.bf16 %v4514, %v4512
          %v4517 = vpack.c.bf16 %v4515, %v4513
          %v4518 = vld [vmem:[#allocation12] sm:$0xff]
          %v4519 = vld [vmem:[#allocation12 + $0x8] sm:$0xff]
          %v4520 = vld [vmem:[#allocation12 + $0x10] sm:$0xff]
          %v4521 = vld [vmem:[#allocation12 + $0x18] sm:$0xff]
          %v4522 = vld [vmem:[#allocation12 + $0x20] sm:$0xff]
          %v4523 = vld [vmem:[#allocation12 + $0x28] sm:$0xff]
          %v4524 = vld [vmem:[#allocation12 + $0x30] sm:$0xff]
          %v4525 = vld [vmem:[#allocation12 + $0x38] sm:$0xff]
          %v4526 = vld [vmem:[#allocation12 + $0x40] sm:$0xff]
          %v4527 = vld [vmem:[#allocation12 + $0x48] sm:$0xff]
          %v4528 = vld [vmem:[#allocation12 + $0x50] sm:$0xff]
          %v4529 = vld [vmem:[#allocation12 + $0x58] sm:$0xff]
          %v4530 = vld [vmem:[#allocation12 + $0x60] sm:$0xff]
          %v4531 = vld [vmem:[#allocation12 + $0x68] sm:$0xff]
          %v4532 = vld [vmem:[#allocation12 + $0x70] sm:$0xff]
          %v4533 = vld [vmem:[#allocation12 + $0x78] sm:$0xff]
          %v4534 = vld [vmem:[#allocation12 + $0x80] sm:$0xff]
          %v4535 = vld [vmem:[#allocation12 + $0x88] sm:$0xff]
          %v4536 = vld [vmem:[#allocation12 + $0x90] sm:$0xff]
          %v4537 = vld [vmem:[#allocation12 + $0x98] sm:$0xff]
          %v4538 = vld [vmem:[#allocation12 + $0xa0] sm:$0xff]
          %v4539 = vld [vmem:[#allocation12 + $0xa8] sm:$0xff]
          %v4540 = vld [vmem:[#allocation12 + $0xb0] sm:$0xff]
          %v4541 = vld [vmem:[#allocation12 + $0xb8] sm:$0xff]
          %v4542 = vld [vmem:[#allocation12 + $0xc0] sm:$0xff]
          %v4543 = vld [vmem:[#allocation12 + $0xc8] sm:$0xff]
          %v4544 = vld [vmem:[#allocation12 + $0xd0] sm:$0xff]
          %v4545 = vld [vmem:[#allocation12 + $0xd8] sm:$0xff]
          %v4546 = vld [vmem:[#allocation12 + $0xe0] sm:$0xff]
          %v4547 = vld [vmem:[#allocation12 + $0xe8] sm:$0xff]
          %v4548 = vld [vmem:[#allocation12 + $0xf0] sm:$0xff]
          %v4549 = vld [vmem:[#allocation12 + $0xf8] sm:$0xff]
          %v4550 = vld [vmem:[#allocation12 + $0x100] sm:$0xff]
          %v4551 = vld [vmem:[#allocation12 + $0x108] sm:$0xff]
          %v4552 = vld [vmem:[#allocation12 + $0x110] sm:$0xff]
          %v4553 = vld [vmem:[#allocation12 + $0x118] sm:$0xff]
          %v4554 = vld [vmem:[#allocation12 + $0x120] sm:$0xff]
          %v4555 = vld [vmem:[#allocation12 + $0x128] sm:$0xff]
          %v4556 = vld [vmem:[#allocation12 + $0x130] sm:$0xff]
          %v4557 = vld [vmem:[#allocation12 + $0x138] sm:$0xff]
          %v4558 = vld [vmem:[#allocation12 + $0x140] sm:$0xff]
          %v4559 = vld [vmem:[#allocation12 + $0x148] sm:$0xff]
          %v4560 = vld [vmem:[#allocation12 + $0x150] sm:$0xff]
          %v4561 = vld [vmem:[#allocation12 + $0x158] sm:$0xff]
          %v4562 = vld [vmem:[#allocation12 + $0x160] sm:$0xff]
          %v4563 = vld [vmem:[#allocation12 + $0x168] sm:$0xff]
          %v4564 = vld [vmem:[#allocation12 + $0x170] sm:$0xff]
          %v4565 = vld [vmem:[#allocation12 + $0x178] sm:$0xff]
          %v4566 = vld [vmem:[#allocation12 + $0x180] sm:$0xff]
          %v4567 = vld [vmem:[#allocation12 + $0x188] sm:$0xff]
          %v4568 = vld [vmem:[#allocation12 + $0x190] sm:$0xff]
          %v4569 = vld [vmem:[#allocation12 + $0x198] sm:$0xff]
          %v4570 = vld [vmem:[#allocation12 + $0x1a0] sm:$0xff]
          %v4571 = vld [vmem:[#allocation12 + $0x1a8] sm:$0xff]
          %v4572 = vld [vmem:[#allocation12 + $0x1b0] sm:$0xff]
          %v4573 = vld [vmem:[#allocation12 + $0x1b8] sm:$0xff]
          %v4574 = vld [vmem:[#allocation12 + $0x1c0] sm:$0xff]
          %v4575 = vld [vmem:[#allocation12 + $0x1c8] sm:$0xff]
          %v4576 = vld [vmem:[#allocation12 + $0x1d0] sm:$0xff]
          %v4577 = vld [vmem:[#allocation12 + $0x1d8] sm:$0xff]
          %v4578 = vld [vmem:[#allocation12 + $0x1e0] sm:$0xff]
          %v4579 = vld [vmem:[#allocation12 + $0x1e8] sm:$0xff]
          %v4580 = vld [vmem:[#allocation12 + $0x1f0] sm:$0xff]
          %v4581 = vld [vmem:[#allocation12 + $0x1f8] sm:$0xff]
          %v4582 = vld [vmem:[%s17] sm:$0xf]
          %v4584 = vperm.slane %v4582, 0
          %v4585 = vperm.slane %v4582, 1
          %v4586 = vperm.slane %v4582, 2
          %v4587 = vperm.slane %v4582, 3
          %v4656 = vunpack.c.l.b16 %v4518
          %v4657 = vunpack.c.h.b16 %v4518
          %v4658 = vunpack.c.l.b16 %v4519
          %v4659 = vunpack.c.h.b16 %v4519
          %v4660 = vunpack.c.l.b16 %v4520
          %v4661 = vunpack.c.h.b16 %v4520
          %v4662 = vunpack.c.l.b16 %v4521
          %v4663 = vunpack.c.h.b16 %v4521
          %v4664 = vunpack.c.l.b16 %v4522
          %v4665 = vunpack.c.h.b16 %v4522
          %v4666 = vunpack.c.l.b16 %v4523
          %v4667 = vunpack.c.h.b16 %v4523
          %v4668 = vunpack.c.l.b16 %v4524
          %v4669 = vunpack.c.h.b16 %v4524
          %v4670 = vunpack.c.l.b16 %v4525
          %v4671 = vunpack.c.h.b16 %v4525
          %v4672 = vunpack.c.l.b16 %v4526
          %v4673 = vunpack.c.h.b16 %v4526
          %v4674 = vunpack.c.l.b16 %v4527
          %v4675 = vunpack.c.h.b16 %v4527
          %v4676 = vunpack.c.l.b16 %v4528
          %v4677 = vunpack.c.h.b16 %v4528
          %v4678 = vunpack.c.l.b16 %v4529
          %v4679 = vunpack.c.h.b16 %v4529
          %v4680 = vunpack.c.l.b16 %v4530
          %v4681 = vunpack.c.h.b16 %v4530
          %v4682 = vunpack.c.l.b16 %v4531
          %v4683 = vunpack.c.h.b16 %v4531
          %v4684 = vunpack.c.l.b16 %v4532
          %v4685 = vunpack.c.h.b16 %v4532
          %v4686 = vunpack.c.l.b16 %v4533
          %v4687 = vunpack.c.h.b16 %v4533
          %v4688 = vunpack.c.l.b16 %v4534
          %v4689 = vunpack.c.h.b16 %v4534
          %v4690 = vunpack.c.l.b16 %v4535
          %v4691 = vunpack.c.h.b16 %v4535
          %v4692 = vunpack.c.l.b16 %v4536
          %v4693 = vunpack.c.h.b16 %v4536
          %v4694 = vunpack.c.l.b16 %v4537
          %v4695 = vunpack.c.h.b16 %v4537
          %v4696 = vunpack.c.l.b16 %v4538
          %v4697 = vunpack.c.h.b16 %v4538
          %v4698 = vunpack.c.l.b16 %v4539
          %v4699 = vunpack.c.h.b16 %v4539
          %v4700 = vunpack.c.l.b16 %v4540
          %v4701 = vunpack.c.h.b16 %v4540
          %v4702 = vunpack.c.l.b16 %v4541
          %v4703 = vunpack.c.h.b16 %v4541
          %v4704 = vunpack.c.l.b16 %v4542
          %v4705 = vunpack.c.h.b16 %v4542
          %v4706 = vunpack.c.l.b16 %v4543
          %v4707 = vunpack.c.h.b16 %v4543
          %v4708 = vunpack.c.l.b16 %v4544
          %v4709 = vunpack.c.h.b16 %v4544
          %v4710 = vunpack.c.l.b16 %v4545
          %v4711 = vunpack.c.h.b16 %v4545
          %v4712 = vunpack.c.l.b16 %v4546
          %v4713 = vunpack.c.h.b16 %v4546
          %v4714 = vunpack.c.l.b16 %v4547
          %v4715 = vunpack.c.h.b16 %v4547
          %v4716 = vunpack.c.l.b16 %v4548
          %v4717 = vunpack.c.h.b16 %v4548
          %v4718 = vunpack.c.l.b16 %v4549
          %v4719 = vunpack.c.h.b16 %v4549
          %v4720 = vunpack.c.l.b16 %v4550
          %v4721 = vunpack.c.h.b16 %v4550
          %v4722 = vunpack.c.l.b16 %v4551
          %v4723 = vunpack.c.h.b16 %v4551
          %v4724 = vunpack.c.l.b16 %v4552
          %v4725 = vunpack.c.h.b16 %v4552
          %v4726 = vunpack.c.l.b16 %v4553
          %v4727 = vunpack.c.h.b16 %v4553
          %v4728 = vunpack.c.l.b16 %v4554
          %v4729 = vunpack.c.h.b16 %v4554
          %v4730 = vunpack.c.l.b16 %v4555
          %v4731 = vunpack.c.h.b16 %v4555
          %v4732 = vunpack.c.l.b16 %v4556
          %v4733 = vunpack.c.h.b16 %v4556
          %v4734 = vunpack.c.l.b16 %v4557
          %v4735 = vunpack.c.h.b16 %v4557
          %v4736 = vunpack.c.l.b16 %v4558
          %v4737 = vunpack.c.h.b16 %v4558
          %v4738 = vunpack.c.l.b16 %v4559
          %v4739 = vunpack.c.h.b16 %v4559
          %v4740 = vunpack.c.l.b16 %v4560
          %v4741 = vunpack.c.h.b16 %v4560
          %v4742 = vunpack.c.l.b16 %v4561
          %v4743 = vunpack.c.h.b16 %v4561
          %v4744 = vunpack.c.l.b16 %v4562
          %v4745 = vunpack.c.h.b16 %v4562
          %v4746 = vunpack.c.l.b16 %v4563
          %v4747 = vunpack.c.h.b16 %v4563
          %v4748 = vunpack.c.l.b16 %v4564
          %v4749 = vunpack.c.h.b16 %v4564
          %v4750 = vunpack.c.l.b16 %v4565
          %v4751 = vunpack.c.h.b16 %v4565
          %v4752 = vunpack.c.l.b16 %v4566
          %v4753 = vunpack.c.h.b16 %v4566
          %v4754 = vunpack.c.l.b16 %v4567
          %v4755 = vunpack.c.h.b16 %v4567
          %v4756 = vunpack.c.l.b16 %v4568
          %v4757 = vunpack.c.h.b16 %v4568
          %v4758 = vunpack.c.l.b16 %v4569
          %v4759 = vunpack.c.h.b16 %v4569
          %v4760 = vunpack.c.l.b16 %v4570
          %v4761 = vunpack.c.h.b16 %v4570
          %v4762 = vunpack.c.l.b16 %v4571
          %v4763 = vunpack.c.h.b16 %v4571
          %v4764 = vunpack.c.l.b16 %v4572
          %v4765 = vunpack.c.h.b16 %v4572
          %v4766 = vunpack.c.l.b16 %v4573
          %v4767 = vunpack.c.h.b16 %v4573
          %v4768 = vunpack.c.l.b16 %v4574
          %v4769 = vunpack.c.h.b16 %v4574
          %v4770 = vunpack.c.l.b16 %v4575
          %v4771 = vunpack.c.h.b16 %v4575
          %v4772 = vunpack.c.l.b16 %v4576
          %v4773 = vunpack.c.h.b16 %v4576
          %v4774 = vunpack.c.l.b16 %v4577
          %v4775 = vunpack.c.h.b16 %v4577
          %v4776 = vunpack.c.l.b16 %v4578
          %v4777 = vunpack.c.h.b16 %v4578
          %v4778 = vunpack.c.l.b16 %v4579
          %v4779 = vunpack.c.h.b16 %v4579
          %v4780 = vunpack.c.l.b16 %v4580
          %v4781 = vunpack.c.h.b16 %v4580
          %v4782 = vunpack.c.l.b16 %v4581
          %v4783 = vunpack.c.h.b16 %v4581
          %v4784 = vpack.c.b16 %v4660, %v4656
          %v4785 = vpack.c.b16 %v4661, %v4657
          %v4786 = vpack.c.b16 %v4662, %v4658
          %v4787 = vpack.c.b16 %v4663, %v4659
          %v4788 = vpack.c.b16 %v4668, %v4664
          %v4789 = vpack.c.b16 %v4669, %v4665
          %v4790 = vpack.c.b16 %v4670, %v4666
          %v4791 = vpack.c.b16 %v4671, %v4667
          %v4792 = vpack.c.b16 %v4676, %v4672
          %v4793 = vpack.c.b16 %v4677, %v4673
          %v4794 = vpack.c.b16 %v4678, %v4674
          %v4795 = vpack.c.b16 %v4679, %v4675
          %v4796 = vpack.c.b16 %v4684, %v4680
          %v4797 = vpack.c.b16 %v4685, %v4681
          %v4798 = vpack.c.b16 %v4686, %v4682
          %v4799 = vpack.c.b16 %v4687, %v4683
          %v4800 = vpack.c.b16 %v4692, %v4688
          %v4801 = vpack.c.b16 %v4693, %v4689
          %v4802 = vpack.c.b16 %v4694, %v4690
          %v4803 = vpack.c.b16 %v4695, %v4691
          %v4804 = vpack.c.b16 %v4700, %v4696
          %v4805 = vpack.c.b16 %v4701, %v4697
          %v4806 = vpack.c.b16 %v4702, %v4698
          %v4807 = vpack.c.b16 %v4703, %v4699
          %v4808 = vpack.c.b16 %v4708, %v4704
          %v4809 = vpack.c.b16 %v4709, %v4705
          %v4810 = vpack.c.b16 %v4710, %v4706
          %v4811 = vpack.c.b16 %v4711, %v4707
          %v4812 = vpack.c.b16 %v4716, %v4712
          %v4813 = vpack.c.b16 %v4717, %v4713
          %v4814 = vpack.c.b16 %v4718, %v4714
          %v4815 = vpack.c.b16 %v4719, %v4715
          %v4816 = vpack.c.b16 %v4724, %v4720
          %v4817 = vpack.c.b16 %v4725, %v4721
          %v4818 = vpack.c.b16 %v4726, %v4722
          %v4819 = vpack.c.b16 %v4727, %v4723
          %v4820 = vpack.c.b16 %v4732, %v4728
          %v4821 = vpack.c.b16 %v4733, %v4729
          %v4822 = vpack.c.b16 %v4734, %v4730
          %v4823 = vpack.c.b16 %v4735, %v4731
          %v4824 = vpack.c.b16 %v4740, %v4736
          %v4825 = vpack.c.b16 %v4741, %v4737
          %v4826 = vpack.c.b16 %v4742, %v4738
          %v4827 = vpack.c.b16 %v4743, %v4739
          %v4828 = vpack.c.b16 %v4748, %v4744
          %v4829 = vpack.c.b16 %v4749, %v4745
          %v4830 = vpack.c.b16 %v4750, %v4746
          %v4831 = vpack.c.b16 %v4751, %v4747
          %v4832 = vpack.c.b16 %v4756, %v4752
          %v4833 = vpack.c.b16 %v4757, %v4753
          %v4834 = vpack.c.b16 %v4758, %v4754
          %v4835 = vpack.c.b16 %v4759, %v4755
          %v4836 = vpack.c.b16 %v4764, %v4760
          %v4837 = vpack.c.b16 %v4765, %v4761
          %v4838 = vpack.c.b16 %v4766, %v4762
          %v4839 = vpack.c.b16 %v4767, %v4763
          %v4840 = vpack.c.b16 %v4772, %v4768
          %v4841 = vpack.c.b16 %v4773, %v4769
          %v4842 = vpack.c.b16 %v4774, %v4770
          %v4843 = vpack.c.b16 %v4775, %v4771
          %v4844 = vpack.c.b16 %v4780, %v4776
          %v4845 = vpack.c.b16 %v4781, %v4777
          %v4846 = vpack.c.b16 %v4782, %v4778
          %v4847 = vpack.c.b16 %v4783, %v4779
          %4912 = vmatpush.bf16.msra.mxu0 %v4812
          %4913 = vmatpush.bf16.msra.mxu0 %v4808
          %4914 = vmatpush.bf16.msra.mxu0 %v4804
          %4915 = vmatpush.bf16.msra.mxu0 %v4800
          %4916 = vmatpush.bf16.msra.mxu0 %v4796
          %4917 = vmatpush.bf16.msra.mxu0 %v4792
          %4918 = vmatpush.bf16.msra.mxu0 %v4788
          %4919 = vmatpush.bf16.msra.mxu0 %v4784
          %4920 = vmatmul.bf16.gmra.mxu0 %v4516
          %v4921 = vpop.f32.mrf.mxu0
          %v4922 = vadd.f32 %v4584, %v4921
          %v4923 = vpop.f32.mrf.mxu0
          %v4924 = vadd.f32 %v4584, %v4923
          %4925 = vdwg.mxu0
          %4926 = vmatpush.bf16.msra.mxu0 %v4844
          %4927 = vmatpush.bf16.msra.mxu0 %v4840
          %4928 = vmatpush.bf16.msra.mxu0 %v4836
          %4929 = vmatpush.bf16.msra.mxu0 %v4832
          %4930 = vmatpush.bf16.msra.mxu0 %v4828
          %4931 = vmatpush.bf16.msra.mxu0 %v4824
          %4932 = vmatpush.bf16.msra.mxu0 %v4820
          %4933 = vmatpush.bf16.msra.mxu0 %v4816
          %4934 = vmatmul.bf16.gmra.mxu0 %v4517
          %v4935 = vpop.f32.mrf.mxu0
          %v4936 = vadd.f32 %v4922, %v4935
          %v4937 = vpop.f32.mrf.mxu0
          %v4938 = vadd.f32 %v4924, %v4937
          %4939 = vdwg.mxu0
          %4940 = vmatpush.bf16.msra.mxu0 %v4813
          %4941 = vmatpush.bf16.msra.mxu0 %v4809
          %4942 = vmatpush.bf16.msra.mxu0 %v4805
          %4943 = vmatpush.bf16.msra.mxu0 %v4801
          %4944 = vmatpush.bf16.msra.mxu0 %v4797
          %4945 = vmatpush.bf16.msra.mxu0 %v4793
          %4946 = vmatpush.bf16.msra.mxu0 %v4789
          %4947 = vmatpush.bf16.msra.mxu0 %v4785
          %4948 = vmatmul.bf16.gmra.mxu0 %v4516
          %v4949 = vpop.f32.mrf.mxu0
          %v4950 = vadd.f32 %v4585, %v4949
          %v4951 = vpop.f32.mrf.mxu0
          %v4952 = vadd.f32 %v4585, %v4951
          %4953 = vdwg.mxu0
          %4954 = vmatpush.bf16.msra.mxu0 %v4845
          %4955 = vmatpush.bf16.msra.mxu0 %v4841
          %4956 = vmatpush.bf16.msra.mxu0 %v4837
          %4957 = vmatpush.bf16.msra.mxu0 %v4833
          %4958 = vmatpush.bf16.msra.mxu0 %v4829
          %4959 = vmatpush.bf16.msra.mxu0 %v4825
          %4960 = vmatpush.bf16.msra.mxu0 %v4821
          %4961 = vmatpush.bf16.msra.mxu0 %v4817
          %4962 = vmatmul.bf16.gmra.mxu0 %v4517
          %v4963 = vpop.f32.mrf.mxu0
          %v4964 = vadd.f32 %v4950, %v4963
          %v4965 = vpop.f32.mrf.mxu0
          %v4966 = vadd.f32 %v4952, %v4965
          %4967 = vdwg.mxu0
          %4968 = vmatpush.bf16.msra.mxu0 %v4814
          %4969 = vmatpush.bf16.msra.mxu0 %v4810
          %4970 = vmatpush.bf16.msra.mxu0 %v4806
          %4971 = vmatpush.bf16.msra.mxu0 %v4802
          %4972 = vmatpush.bf16.msra.mxu0 %v4798
          %4973 = vmatpush.bf16.msra.mxu0 %v4794
          %4974 = vmatpush.bf16.msra.mxu0 %v4790
          %4975 = vmatpush.bf16.msra.mxu0 %v4786
          %4976 = vmatmul.bf16.gmra.mxu0 %v4516
          %v4977 = vpop.f32.mrf.mxu0
          %v4978 = vadd.f32 %v4586, %v4977
          %v4979 = vpop.f32.mrf.mxu0
          %v4980 = vadd.f32 %v4586, %v4979
          %4981 = vdwg.mxu0
          %4982 = vmatpush.bf16.msra.mxu0 %v4846
          %4983 = vmatpush.bf16.msra.mxu0 %v4842
          %4984 = vmatpush.bf16.msra.mxu0 %v4838
          %4985 = vmatpush.bf16.msra.mxu0 %v4834
          %4986 = vmatpush.bf16.msra.mxu0 %v4830
          %4987 = vmatpush.bf16.msra.mxu0 %v4826
          %4988 = vmatpush.bf16.msra.mxu0 %v4822
          %4989 = vmatpush.bf16.msra.mxu0 %v4818
          %4990 = vmatmul.bf16.gmra.mxu0 %v4517
          %v4991 = vpop.f32.mrf.mxu0
          %v4992 = vadd.f32 %v4978, %v4991
          %v4993 = vpop.f32.mrf.mxu0
          %v4994 = vadd.f32 %v4980, %v4993
          %4995 = vdwg.mxu0
          %4996 = vmatpush.bf16.msra.mxu0 %v4815
          %4997 = vmatpush.bf16.msra.mxu0 %v4811
          %4998 = vmatpush.bf16.msra.mxu0 %v4807
          %4999 = vmatpush.bf16.msra.mxu0 %v4803
          %5000 = vmatpush.bf16.msra.mxu0 %v4799
          %5001 = vmatpush.bf16.msra.mxu0 %v4795
          %5002 = vmatpush.bf16.msra.mxu0 %v4791
          %5003 = vmatpush.bf16.msra.mxu0 %v4787
          %5004 = vmatmul.bf16.gmra.mxu0 %v4516
          %v5005 = vpop.f32.mrf.mxu0
          %v5006 = vadd.f32 %v4587, %v5005
          %v5007 = vpop.f32.mrf.mxu0
          %v5008 = vadd.f32 %v4587, %v5007
          %5009 = vdwg.mxu0
          %5010 = vmatpush.bf16.msra.mxu0 %v4847
          %5011 = vmatpush.bf16.msra.mxu0 %v4843
          %5012 = vmatpush.bf16.msra.mxu0 %v4839
          %5013 = vmatpush.bf16.msra.mxu0 %v4835
          %5014 = vmatpush.bf16.msra.mxu0 %v4831
          %5015 = vmatpush.bf16.msra.mxu0 %v4827
          %5016 = vmatpush.bf16.msra.mxu0 %v4823
          %5017 = vmatpush.bf16.msra.mxu0 %v4819
          %5018 = vmatmul.bf16.gmra.mxu0 %v4517
          %v5019 = vpop.f32.mrf.mxu0
          %v5020 = vadd.f32 %v5006, %v5019
          %v5021 = vpop.f32.mrf.mxu0
          %v5022 = vadd.f32 %v5008, %v5021
          %5023 = vdwg.mxu0
          %5024 = vst [vmem:[#allocation13] sm:$0xff] %v4936
          %5025 = vst [vmem:[#allocation13 + $0x8] sm:$0xff] %v4964
          %5026 = vst [vmem:[#allocation13 + $0x10] sm:$0xff] %v4992
          %5027 = vst [vmem:[#allocation13 + $0x18] sm:$0xff] %v5020
          %5028 = vst [vmem:[#allocation13 + $0x20] sm:$0xff] %v4938
          %5029 = vst [vmem:[#allocation13 + $0x28] sm:$0xff] %v4966
          %5030 = vst [vmem:[#allocation13 + $0x30] sm:$0xff] %v4994
          %5031 = vst [vmem:[#allocation13 + $0x38] sm:$0xff] %v5022
        $region120: #{pallas_forward.1} parent=91 // pred_fallthru
          _
        // Predicated region
        $region121: #{pallas_forward.1} parent=91 // pred_check
          %p5032 = pneg %p490
        $region122: #{pallas_forward.1} parent=91 // pred_check_branch
          %5034 = sbr.rel (%p5032) target = $region124
        $region123: #{pallas_forward.1} parent=91 // pred_region
          %5036 = vsyncadd [#allocation6], 0
          %s5037 = sshll.u32 [#allocation13], 4
          %s5038 = int_to_ptr.vmem [resolvable:$true] %s5037
          %s5039 = sshll.u32 %s18, 4
          %s5040 = int_to_ptr.hbm [resolvable:$true] %s5039
          %5045 = dma.vmem_to_hbm [thread:$0]  %s5038, 1024, %s5040, [#allocation6], 512, 512, 32
        $region124: #{pallas_forward.1} parent=91 // pred_fallthru
          _
        // Predicated region
        $region125: #{pallas_forward.1} parent=91 // pred_check
          %p5046 = pneg %p490
        $region126: #{pallas_forward.1} parent=91 // pred_check_branch
          %5048 = sbr.rel (%p5046) target = $region128
        $region127: #{pallas_forward.1} parent=91 // pred_region
          %5050 = dma.done [#allocation6], 1024
        $region128: #{pallas_forward.1} parent=91 // pred_fallthru
          _
      $region92: #{pallas_forward.1} parent=5 // pred_fallthru
        _
      %p5051 = scmp.le.s32.totalorder 2, %s34
      // Predicated region
      $region129: #{pallas_forward.1} parent=5 // pred_check
        %p5052 = pneg %p5051
      $region130: #{pallas_forward.1} parent=5 // pred_check_branch
        %5054 = sbr.rel (%p5052) target = $region132
      $region131: #{pallas_forward.1} parent=5 // pred_region
        %s5055 = ssub.s32 %s34, 2
      $region132: #{pallas_forward.1} parent=5 // pred_fallthru
        _
    $region6: #{pallas_forward.1} parent=1 // loop_footer
      %s38 = sadd.s32 1, %s34
    $region7: #{pallas_forward.1} parent=1 // loop_footer_branch
      %33 = sbr.rel target = $region3
    $region8: #{pallas_forward.1} parent=1 // loop_exit
      _
    %5056 = vsyncpa [#allocation5], 1
    %s5057 = scalar_lea.sflag [#allocation5], 1
    %5058 = vsyncpa %s5057, 1
    %5059 = vsyncpa [#allocation8], 1
    %s5060 = scalar_lea.sflag [#allocation8], 1
    %5061 = vsyncpa %s5060, 1
    %5062 = vsyncpa [#allocation11], 1
    %s5063 = scalar_lea.sflag [#allocation11], 1
    %5064 = vsyncpa %s5063, 1
    %5065 = vsyncpa [#allocation6], 1
    %s5066 = scalar_lea.sflag [#allocation6], 1
    %5067 = vsyncpa %s5066, 1

</llo_original>
